<compile_context>
chip_gen: v6e
topology: v6e:2x2x1
jax: 0.10.0
libtpu: 0.0.40
codegen_flags: <defaults>
</compile_context>

<pallas_src>
import functools
import math

import jax
import jax.numpy as jnp
from jax import lax
from jax.experimental import pallas as pl
from jax.experimental.pallas import tpu as pltpu


def _gnn_kernel(a_in_ref, a_out_ref, h_ref, w_ref, b_ref, out_ref,
                *, bb, n, hp, steps):
    """One batch-block of `bb` graphs; all `steps` GNNCell iterations fused."""
    M = bb * n

    # Tiny adjacency tiles (shipped as bf16; promoted once on the VPU).
    a_in = a_in_ref[...].astype(jnp.float32)        # (bb, n, n)
    a_out = a_out_ref[...].astype(jnp.float32)      # (bb, n, n)

    # Packed biases: one (8, hp) tile, sliced per row (sublane slices).
    bias = b_ref[...]
    b_ein, b_eout = bias[0:1, :], bias[1:2, :]
    b_iah, b_oah = bias[2:3, :], bias[3:4, :]
    b_r, b_i = bias[4:5, :], bias[5:6, :]
    b_ihn, b_hhn = bias[6:7, :], bias[7:8, :]

    # Lane-stacked weights; every slice boundary is a multiple of hp (>=128).
    #   columns [0, 5hp)   : [edge_in | edge_out | hh_r | hh_i | hh_n]
    #   columns [5hp, 8hp) : [in_r | in_i | in_n]
    #   columns [8hp,11hp) : [out_r | out_i | out_n]
    w_h = w_ref[:, 0:5 * hp]
    w_in = w_ref[:, 5 * hp:8 * hp]
    w_out = w_ref[:, 8 * hp:11 * hp]

    # NOTE: no explicit precision here -- native MXU f32 handling, not the
    # multi-pass "highest" decomposition.
    dot = functools.partial(jnp.dot, preferred_element_type=jnp.float32)

    def adj_apply(a, edge):
        # out[b, i, h] = sum_j a[b, i, j] * edge[b, j, h]
        if n <= 32:
            # VPU broadcast-MAC: the N-step contraction is far too small to
            # keep the MXU busy, and the VPU has slack here.
            acc = a[:, :, 0:1] * edge[:, 0:1, :]
            for j in range(1, n):
                acc = acc + a[:, :, j:j + 1] * edge[:, j:j + 1, :]
            return acc
        # Larger graphs: batched contraction on the MXU.
        return jnp.einsum("bij,bjh->bih", a, edge,
                          preferred_element_type=jnp.float32)

    def one_step(h2):
        # All hidden-side projections in ONE lane-stacked matmul.
        gh_all = dot(h2, w_h)                                    # (M, 5*hp)
        edge_in = (gh_all[:, 0:hp] + b_ein).reshape(bb, n, hp)
        edge_out = (gh_all[:, hp:2 * hp] + b_eout).reshape(bb, n, hp)

        inp_in = adj_apply(a_in, edge_in).reshape(M, hp) + b_iah
        inp_out = adj_apply(a_out, edge_out).reshape(M, hp) + b_oah

        g_in = dot(inp_in, w_in)                                 # (M, 3*hp)
        g_out = dot(inp_out, w_out)                              # (M, 3*hp)

        g_r = g_in[:, 0:hp] + g_out[:, 0:hp] + gh_all[:, 2 * hp:3 * hp] + b_r
        g_i = (g_in[:, hp:2 * hp] + g_out[:, hp:2 * hp]
               + gh_all[:, 3 * hp:4 * hp] + b_i)
        i_n = g_in[:, 2 * hp:3 * hp] + g_out[:, 2 * hp:3 * hp] + b_ihn
        h_n = gh_all[:, 4 * hp:5 * hp] + b_hhn

        resetgate = jax.nn.sigmoid(g_r)
        inputgate = jax.nn.sigmoid(g_i)
        newgate = jnp.tanh(i_n + resetgate * h_n)
        return newgate + inputgate * (h2 - newgate)

    h2 = h_ref[...].reshape(M, hp).astype(jnp.float32)

    if steps <= 2:
        for _ in range(steps):           # tiny static trip count: unrolled
            h2 = one_step(h2)
    else:
        # Rolled loop keeps vreg live ranges bounded for long recurrences.
        h2 = lax.fori_loop(0, steps, lambda _, h: one_step(h), h2)

    out_ref[...] = h2.reshape(bb, n, hp).astype(out_ref.dtype)


def _tpu_vmem_limit_bytes():
    """Generation-aware VMEM limit, above the 16/32 MiB scoped defaults."""
    cap = 64 * 1024 * 1024
    try:
        cap = int(getattr(pltpu.get_tpu_info(), "vmem_capacity_bytes", cap))
    except Exception:
        pass
    return max(32 * 1024 * 1024, (cap * 3) // 4)


def _min_grid_blocks():
    """>= 2 grid blocks on dual-TensorCore chips (v7x) so 'parallel' splits."""
    try:
        kind = jax.devices()[0].device_kind.lower()
        if "v7" in kind or "tpu7" in kind:
            return 2
    except Exception:
        pass
    return 1


def _choose_batch_block(B, N, Hp, act_budget_bytes, *, min_blocks=1,
                        target_rows=512):
    """Graphs per block: ~512 MXU rows, VMEM-bounded, no tail shrinkage."""
    bb = max(1, -(-target_rows // N))
    # Double-buffered per-block I/O (A as bf16, hidden/out as f32) plus an
    # allowance for in-kernel f32 intermediates (~16 Hp-wide rows per node).
    per_graph = 2 * (2 * N * N * 2) + 2 * (2 * N * Hp * 4) + 16 * N * Hp * 4
    bb = max(1, min(bb, act_budget_bytes // max(per_graph, 1)))
    bb = min(bb, B)
    min_blocks = max(1, min(min_blocks, B))
    n_blocks = max(-(-B // bb), min_blocks)
    bb = -(-B // n_blocks)            # round UP: pad the batch, never shrink rows
    return bb, n_blocks


def gnn_forward(A, hidden, params, step=1):
    """SR-GNN forward: `step` fused GNNCell iterations. A:(B,N,2N), hidden:(B,N,H)."""
    B, N, H = hidden.shape
    assert A.shape == (B, N, 2 * N)
    Hp = -(-H // 128) * 128                        # pad hidden dim to a lane multiple

    f32 = jnp.float32
    pad_w = lambda w: jnp.pad(w.astype(f32),
                              ((0, Hp - w.shape[0]), (0, Hp - w.shape[1])))
    pad_b = lambda v: jnp.pad(v.astype(f32), (0, Hp - v.shape[0]))

    # ---- pre-split / pre-transpose / pad parameters (plain XLA glue) ----
    w_ih_t = params["w_ih"].T                      # (2H, 3H): rows [in|out], cols [r|i|n]
    w_hh_t = params["w_hh"].T                      # (H, 3H)

    # One lane-stacked weight operand (Hp, 11*Hp):
    # [edge_in|edge_out|hh_r|hh_i|hh_n|in_r|in_i|in_n|out_r|out_i|out_n]
    w_packed = jnp.concatenate([pad_w(w) for w in (
        params["w_edge_in"].T, params["w_edge_out"].T,
        w_hh_t[:, 0:H], w_hh_t[:, H:2 * H], w_hh_t[:, 2 * H:],
        w_ih_t[:H, 0:H], w_ih_t[:H, H:2 * H], w_ih_t[:H, 2 * H:],
        w_ih_t[H:, 0:H], w_ih_t[H:, H:2 * H], w_ih_t[H:, 2 * H:],
    )], axis=1)                                    # (Hp, 11*Hp)

    b_ih, b_hh = params["b_ih"], params["b_hh"]
    bias_stack = jnp.stack([
        pad_b(params["b_edge_in"]), pad_b(params["b_edge_out"]),
        pad_b(params["b_iah"]), pad_b(params["b_oah"]),
        pad_b(b_ih[0:H] + b_hh[0:H]),              # combined r-gate bias
        pad_b(b_ih[H:2 * H] + b_hh[H:2 * H]),      # combined i-gate bias
        pad_b(b_ih[2 * H:]),                       # input-side  n-gate bias
        pad_b(b_hh[2 * H:]),                       # hidden-side n-gate bias
    ])                                             # (8, Hp)

    # ---- batch blocking (VMEM- and generation-aware) ----
    vmem_limit = _tpu_vmem_limit_bytes()
    w_bytes = w_packed.size * 4 + bias_stack.size * 4
    act_budget = max(4 << 20, vmem_limit - 2 * w_bytes - (8 << 20))
    bb, n_blocks = _choose_batch_block(B, N, Hp, act_budget,
                                       min_blocks=_min_grid_blocks())
    B_pad = bb * n_blocks

    def pad_batch(x):
        return jnp.pad(x, ((0, B_pad - B),) + ((0, 0),) * (x.ndim - 1))

    a_in = pad_batch(A[:, :, :N].astype(jnp.bfloat16))        # (B_pad, N, N) bf16
    a_out = pad_batch(A[:, :, N:2 * N].astype(jnp.bfloat16))  # halves A DMA bytes
    h_p = pad_batch(jnp.pad(hidden.astype(f32),
                            ((0, 0), (0, 0), (0, Hp - H))))   # (B_pad, N, Hp)

    kernel = functools.partial(_gnn_kernel, bb=bb, n=N, hp=Hp, steps=step)

    def run(single_buffer_weights):
        # Constant-index weight/bias operands gain nothing from double
        # buffering; a single buffer halves their VMEM footprint.
        const_kw = ({"pipeline_mode": pl.Buffered(1)}
                    if single_buffer_weights else {})
        grid_spec = pltpu.PrefetchScalarGridSpec(
            num_scalar_prefetch=0,
            grid=(n_blocks,),
            in_specs=[
                pl.BlockSpec((bb, N, N), lambda b: (b, 0, 0)),      # A_in
                pl.BlockSpec((bb, N, N), lambda b: (b, 0, 0)),      # A_out
                pl.BlockSpec((bb, N, Hp), lambda b: (b, 0, 0)),     # hidden
                pl.BlockSpec((Hp, 11 * Hp), lambda b: (0, 0), **const_kw),
                pl.BlockSpec((8, Hp), lambda b: (0, 0), **const_kw),
            ],
            out_specs=pl.BlockSpec((bb, N, Hp), lambda b: (b, 0, 0)),
        )
        res = pl.pallas_call(
            kernel,
            out_shape=jax.ShapeDtypeStruct((B_pad, N, Hp), f32),
            grid_spec=grid_spec,
            compiler_params=pltpu.CompilerParams(
                dimension_semantics=("parallel",),
                vmem_limit_bytes=vmem_limit),
        )(a_in, a_out, h_p, w_packed, bias_stack)
        return jax.block_until_ready(res)

    try:
        out = run(True)
    except Exception:   # pragma: no cover -- older jax without pipeline_mode
        out = run(False)

    return out[:B, :, :H].astype(hidden.dtype)


def init_params(hidden_size, key):
    """Deterministic init mirroring the PyTorch module's parameter shapes."""
    H = hidden_size
    gate, inp = 3 * H, 2 * H
    stdv = 1.0 / math.sqrt(H)
    keys = jax.random.split(key, 10)
    u = lambda k, shape: jax.random.uniform(k, shape, jnp.float32, -stdv, stdv)
    return {
        "w_ih": u(keys[0], (gate, inp)),
        "w_hh": u(keys[1], (gate, H)),
        "b_ih": u(keys[2], (gate,)),
        "b_hh": u(keys[3], (gate,)),
        "b_iah": u(keys[4], (H,)),
        "b_oah": u(keys[5], (H,)),
        "w_edge_in": u(keys[6], (H, H)),
        "b_edge_in": u(keys[7], (H,)),
        "w_edge_out": u(keys[8], (H, H)),
        "b_edge_out": u(keys[9], (H,)),
    }


def _reference(A, hidden, params, step=1):
    """Pure-JAX reference mirroring the PyTorch forward."""
    N = A.shape[1]
    H = hidden.shape[-1]
    for _ in range(step):
        edge_in = hidden @ params["w_edge_in"].T + params["b_edge_in"]
        edge_out = hidden @ params["w_edge_out"].T + params["b_edge_out"]
        input_in = jnp.matmul(A[:, :, :N], edge_in) + params["b_iah"]
        input_out = jnp.matmul(A[:, :, N:2 * N], edge_out) + params["b_oah"]
        inputs = jnp.concatenate([input_in, input_out], axis=2)
        gi = inputs @ params["w_ih"].T + params["b_ih"]
        gh = hidden @ params["w_hh"].T + params["b_hh"]
        i_r, i_i, i_n = gi[..., :H], gi[..., H:2 * H], gi[..., 2 * H:]
        h_r, h_i, h_n = gh[..., :H], gh[..., H:2 * H], gh[..., 2 * H:]
        resetgate = jax.nn.sigmoid(i_r + h_r)
        inputgate = jax.nn.sigmoid(i_i + h_i)
        newgate = jnp.tanh(i_n + resetgate * h_n)
        hidden = newgate + inputgate * (hidden - newgate)
    return hidden


if __name__ == "__main__":
    key = jax.random.PRNGKey(0)
    k_a, k_h, k_p = jax.random.split(key, 3)

    # Reference runs at "highest" matmul precision (scoped so it does NOT leak
    # into the Pallas kernel); the kernel uses the MXU's native f32 path and
    # bf16 adjacency tiles, hence the relaxed tolerance.
    TOL = dict(atol=3e-2, rtol=3e-2)

    # small shapes consistent with the module: 6 session graphs, 8 nodes each,
    # hidden_size=32, one propagation step
    B, N, H, STEP = 6, 8, 32, 1
    A = jax.random.uniform(k_a, (B, N, 2 * N), jnp.float32)
    hidden = jax.random.normal(k_h, (B, N, H), jnp.float32)
    params = init_params(H, k_p)

    out = jax.block_until_ready(gnn_forward(A, hidden, params, step=STEP))
    with jax.default_matmul_precision("highest"):
        ref = _reference(A, hidden, params, step=STEP)
    assert out.shape == (B, N, H)
    assert jnp.allclose(out, ref, **TOL), "mismatch vs reference"

    # second config: multi-block grid with a padded tail block + 2-step fused
    # recurrence (unrolled path)
    k_a2, k_h2 = jax.random.split(jax.random.PRNGKey(1))
    B2, STEP2 = 65, 2
    A2 = jax.random.uniform(k_a2, (B2, N, 2 * N), jnp.float32)
    h2 = jax.random.normal(k_h2, (B2, N, H), jnp.float32)
    out2 = jax.block_until_ready(gnn_forward(A2, h2, params, step=STEP2))
    with jax.default_matmul_precision("highest"):
        ref2 = _reference(A2, h2, params, step=STEP2)
    assert out2.shape == (B2, N, H)
    assert jnp.allclose(out2, ref2, **TOL), "mismatch vs reference (multi-step)"

    # third config: step > 2 exercises the lax.fori_loop recurrence path
    k_a3, k_h3 = jax.random.split(jax.random.PRNGKey(2))
    B3, STEP3 = 8, 4
    A3 = jax.random.uniform(k_a3, (B3, N, 2 * N), jnp.float32)
    h3 = jax.random.normal(k_h3, (B3, N, H), jnp.float32)
    out3 = jax.block_until_ready(gnn_forward(A3, h3, params, step=STEP3))
    with jax.default_matmul_precision("highest"):
        ref3 = _reference(A3, h3, params, step=STEP3)
    assert out3.shape == (B3, N, H)
    assert jnp.allclose(out3, ref3, **TOL), "mismatch vs reference (fori_loop)"

    print("KERNEL_OK")
</pallas_src>

<mosaic_0001>
module attributes {stable_mosaic.version = 11 : i64} {
  func.func @_gnn_kernel(%arg0: i32, %arg1: memref<6x8x8xbf16, #tpu.memory_space<vmem>>, %arg2: memref<6x8x8xbf16, #tpu.memory_space<vmem>>, %arg3: memref<6x8x128xf32, #tpu.memory_space<vmem>>, %arg4: memref<128x1408xf32, #tpu.memory_space<vmem>>, %arg5: memref<8x128xf32, #tpu.memory_space<vmem>>, %arg6: memref<6x8x128xf32, #tpu.memory_space<vmem>>) attributes {dimension_semantics = [#tpu.dimension_semantics<parallel>], iteration_bounds = array<i64: 1>, scalar_prefetch = 0 : i64, scratch_operands = 0 : i64, tpu.core_type = #tpu.core_type<tc>, window_params = [{transform_indices = @transform_0, window_bounds = array<i64: 6, 8, 8>}, {transform_indices = @transform_1, window_bounds = array<i64: 6, 8, 8>}, {transform_indices = @transform_2, window_bounds = array<i64: 6, 8, 128>}, {pipeline_mode = #tpu.pipeline_mode<synchronous>, transform_indices = @transform_3, window_bounds = array<i64: 128, 1408>}, {pipeline_mode = #tpu.pipeline_mode<synchronous>, transform_indices = @transform_4, window_bounds = array<i64: 8, 128>}, {transform_indices = @transform_5, window_bounds = array<i64: 6, 8, 128>}]} {
    %c0 = arith.constant 0 : index
    %c0_0 = arith.constant 0 : index
    %c0_1 = arith.constant 0 : index
    %0 = vector.load %arg1[%c0, %c0_0, %c0_1] : memref<6x8x8xbf16, #tpu.memory_space<vmem>>, vector<6x8x8xbf16>
    %1 = arith.extf %0 : vector<6x8x8xbf16> to vector<6x8x8xf32>
    %c0_2 = arith.constant 0 : index
    %c0_3 = arith.constant 0 : index
    %c0_4 = arith.constant 0 : index
    %2 = vector.load %arg2[%c0_2, %c0_3, %c0_4] : memref<6x8x8xbf16, #tpu.memory_space<vmem>>, vector<6x8x8xbf16>
    %3 = arith.extf %2 : vector<6x8x8xbf16> to vector<6x8x8xf32>
    %c0_5 = arith.constant 0 : index
    %c0_6 = arith.constant 0 : index
    %4 = vector.load %arg5[%c0_5, %c0_6] : memref<8x128xf32, #tpu.memory_space<vmem>>, vector<8x128xf32>
    %5 = vector.extract_strided_slice %4 {offsets = [0, 0], sizes = [1, 128], strides = [1, 1]} : vector<8x128xf32> to vector<1x128xf32>
    %6 = vector.extract_strided_slice %4 {offsets = [1, 0], sizes = [1, 128], strides = [1, 1]} : vector<8x128xf32> to vector<1x128xf32>
    %7 = vector.extract_strided_slice %4 {offsets = [2, 0], sizes = [1, 128], strides = [1, 1]} : vector<8x128xf32> to vector<1x128xf32>
    %8 = vector.extract_strided_slice %4 {offsets = [3, 0], sizes = [1, 128], strides = [1, 1]} : vector<8x128xf32> to vector<1x128xf32>
    %9 = vector.extract_strided_slice %4 {offsets = [4, 0], sizes = [1, 128], strides = [1, 1]} : vector<8x128xf32> to vector<1x128xf32>
    %10 = vector.extract_strided_slice %4 {offsets = [5, 0], sizes = [1, 128], strides = [1, 1]} : vector<8x128xf32> to vector<1x128xf32>
    %11 = vector.extract_strided_slice %4 {offsets = [6, 0], sizes = [1, 128], strides = [1, 1]} : vector<8x128xf32> to vector<1x128xf32>
    %12 = vector.extract_strided_slice %4 {offsets = [7, 0], sizes = [1, 128], strides = [1, 1]} : vector<8x128xf32> to vector<1x128xf32>
    %c0_7 = arith.constant 0 : index
    %c0_8 = arith.constant 0 : index
    %13 = vector.load %arg4[%c0_7, %c0_8] : memref<128x1408xf32, #tpu.memory_space<vmem>>, vector<128x640xf32>
    %c0_9 = arith.constant 0 : index
    %c640 = arith.constant 640 : index
    %14 = vector.load %arg4[%c0_9, %c640] : memref<128x1408xf32, #tpu.memory_space<vmem>>, vector<128x384xf32>
    %c0_10 = arith.constant 0 : index
    %c1024 = arith.constant 1024 : index
    %15 = vector.load %arg4[%c0_10, %c1024] : memref<128x1408xf32, #tpu.memory_space<vmem>>, vector<128x384xf32>
    %c0_11 = arith.constant 0 : index
    %c0_12 = arith.constant 0 : index
    %c0_13 = arith.constant 0 : index
    %16 = vector.load %arg3[%c0_11, %c0_12, %c0_13] : memref<6x8x128xf32, #tpu.memory_space<vmem>>, vector<6x8x128xf32>
    %17 = vector.shape_cast %16 : vector<6x8x128xf32> to vector<48x128xf32>
    %cst = arith.constant dense<0.000000e+00> : vector<48x640xf32>
    %18 = tpu.matmul %17, %13, %cst {dimension_numbers = #tpu.dot_dimension_numbers<[1], [0], [0], [1], [0, 0, 1, 1], [], []>} : vector<48x128xf32>, vector<128x640xf32>, vector<48x640xf32> -> vector<48x640xf32>
    %19 = vector.extract_strided_slice %18 {offsets = [0, 0], sizes = [48, 128], strides = [1, 1]} : vector<48x640xf32> to vector<48x128xf32>
    %20 = vector.broadcast %5 : vector<1x128xf32> to vector<48x128xf32>
    %21 = arith.addf %19, %20 : vector<48x128xf32>
    %22 = vector.shape_cast %21 : vector<48x128xf32> to vector<6x8x128xf32>
    %23 = vector.extract_strided_slice %18 {offsets = [0, 128], sizes = [48, 128], strides = [1, 1]} : vector<48x640xf32> to vector<48x128xf32>
    %24 = vector.broadcast %6 : vector<1x128xf32> to vector<48x128xf32>
    %25 = arith.addf %23, %24 : vector<48x128xf32>
    %26 = vector.shape_cast %25 : vector<48x128xf32> to vector<6x8x128xf32>
    %27 = vector.extract_strided_slice %1 {offsets = [0, 0, 0], sizes = [6, 8, 1], strides = [1, 1, 1]} : vector<6x8x8xf32> to vector<6x8x1xf32>
    %28 = vector.extract_strided_slice %22 {offsets = [0, 0, 0], sizes = [6, 1, 128], strides = [1, 1, 1]} : vector<6x8x128xf32> to vector<6x1x128xf32>
    %29 = vector.broadcast %27 : vector<6x8x1xf32> to vector<6x8x128xf32>
    %30 = vector.broadcast %28 : vector<6x1x128xf32> to vector<6x8x128xf32>
    %31 = arith.mulf %29, %30 : vector<6x8x128xf32>
    %32 = vector.extract_strided_slice %1 {offsets = [0, 0, 1], sizes = [6, 8, 1], strides = [1, 1, 1]} : vector<6x8x8xf32> to vector<6x8x1xf32>
    %33 = vector.extract_strided_slice %22 {offsets = [0, 1, 0], sizes = [6, 1, 128], strides = [1, 1, 1]} : vector<6x8x128xf32> to vector<6x1x128xf32>
    %34 = vector.broadcast %32 : vector<6x8x1xf32> to vector<6x8x128xf32>
    %35 = vector.broadcast %33 : vector<6x1x128xf32> to vector<6x8x128xf32>
    %36 = arith.mulf %34, %35 : vector<6x8x128xf32>
    %37 = arith.addf %31, %36 : vector<6x8x128xf32>
    %38 = vector.extract_strided_slice %1 {offsets = [0, 0, 2], sizes = [6, 8, 1], strides = [1, 1, 1]} : vector<6x8x8xf32> to vector<6x8x1xf32>
    %39 = vector.extract_strided_slice %22 {offsets = [0, 2, 0], sizes = [6, 1, 128], strides = [1, 1, 1]} : vector<6x8x128xf32> to vector<6x1x128xf32>
    %40 = vector.broadcast %38 : vector<6x8x1xf32> to vector<6x8x128xf32>
    %41 = vector.broadcast %39 : vector<6x1x128xf32> to vector<6x8x128xf32>
    %42 = arith.mulf %40, %41 : vector<6x8x128xf32>
    %43 = arith.addf %37, %42 : vector<6x8x128xf32>
    %44 = vector.extract_strided_slice %1 {offsets = [0, 0, 3], sizes = [6, 8, 1], strides = [1, 1, 1]} : vector<6x8x8xf32> to vector<6x8x1xf32>
    %45 = vector.extract_strided_slice %22 {offsets = [0, 3, 0], sizes = [6, 1, 128], strides = [1, 1, 1]} : vector<6x8x128xf32> to vector<6x1x128xf32>
    %46 = vector.broadcast %44 : vector<6x8x1xf32> to vector<6x8x128xf32>
    %47 = vector.broadcast %45 : vector<6x1x128xf32> to vector<6x8x128xf32>
    %48 = arith.mulf %46, %47 : vector<6x8x128xf32>
    %49 = arith.addf %43, %48 : vector<6x8x128xf32>
    %50 = vector.extract_strided_slice %1 {offsets = [0, 0, 4], sizes = [6, 8, 1], strides = [1, 1, 1]} : vector<6x8x8xf32> to vector<6x8x1xf32>
    %51 = vector.extract_strided_slice %22 {offsets = [0, 4, 0], sizes = [6, 1, 128], strides = [1, 1, 1]} : vector<6x8x128xf32> to vector<6x1x128xf32>
    %52 = vector.broadcast %50 : vector<6x8x1xf32> to vector<6x8x128xf32>
    %53 = vector.broadcast %51 : vector<6x1x128xf32> to vector<6x8x128xf32>
    %54 = arith.mulf %52, %53 : vector<6x8x128xf32>
    %55 = arith.addf %49, %54 : vector<6x8x128xf32>
    %56 = vector.extract_strided_slice %1 {offsets = [0, 0, 5], sizes = [6, 8, 1], strides = [1, 1, 1]} : vector<6x8x8xf32> to vector<6x8x1xf32>
    %57 = vector.extract_strided_slice %22 {offsets = [0, 5, 0], sizes = [6, 1, 128], strides = [1, 1, 1]} : vector<6x8x128xf32> to vector<6x1x128xf32>
    %58 = vector.broadcast %56 : vector<6x8x1xf32> to vector<6x8x128xf32>
    %59 = vector.broadcast %57 : vector<6x1x128xf32> to vector<6x8x128xf32>
    %60 = arith.mulf %58, %59 : vector<6x8x128xf32>
    %61 = arith.addf %55, %60 : vector<6x8x128xf32>
    %62 = vector.extract_strided_slice %1 {offsets = [0, 0, 6], sizes = [6, 8, 1], strides = [1, 1, 1]} : vector<6x8x8xf32> to vector<6x8x1xf32>
    %63 = vector.extract_strided_slice %22 {offsets = [0, 6, 0], sizes = [6, 1, 128], strides = [1, 1, 1]} : vector<6x8x128xf32> to vector<6x1x128xf32>
    %64 = vector.broadcast %62 : vector<6x8x1xf32> to vector<6x8x128xf32>
    %65 = vector.broadcast %63 : vector<6x1x128xf32> to vector<6x8x128xf32>
    %66 = arith.mulf %64, %65 : vector<6x8x128xf32>
    %67 = arith.addf %61, %66 : vector<6x8x128xf32>
    %68 = vector.extract_strided_slice %1 {offsets = [0, 0, 7], sizes = [6, 8, 1], strides = [1, 1, 1]} : vector<6x8x8xf32> to vector<6x8x1xf32>
    %69 = vector.extract_strided_slice %22 {offsets = [0, 7, 0], sizes = [6, 1, 128], strides = [1, 1, 1]} : vector<6x8x128xf32> to vector<6x1x128xf32>
    %70 = vector.broadcast %68 : vector<6x8x1xf32> to vector<6x8x128xf32>
    %71 = vector.broadcast %69 : vector<6x1x128xf32> to vector<6x8x128xf32>
    %72 = arith.mulf %70, %71 : vector<6x8x128xf32>
    %73 = arith.addf %67, %72 : vector<6x8x128xf32>
    %74 = vector.shape_cast %73 : vector<6x8x128xf32> to vector<48x128xf32>
    %75 = vector.broadcast %7 : vector<1x128xf32> to vector<48x128xf32>
    %76 = arith.addf %74, %75 : vector<48x128xf32>
    %77 = vector.extract_strided_slice %3 {offsets = [0, 0, 0], sizes = [6, 8, 1], strides = [1, 1, 1]} : vector<6x8x8xf32> to vector<6x8x1xf32>
    %78 = vector.extract_strided_slice %26 {offsets = [0, 0, 0], sizes = [6, 1, 128], strides = [1, 1, 1]} : vector<6x8x128xf32> to vector<6x1x128xf32>
    %79 = vector.broadcast %77 : vector<6x8x1xf32> to vector<6x8x128xf32>
    %80 = vector.broadcast %78 : vector<6x1x128xf32> to vector<6x8x128xf32>
    %81 = arith.mulf %79, %80 : vector<6x8x128xf32>
    %82 = vector.extract_strided_slice %3 {offsets = [0, 0, 1], sizes = [6, 8, 1], strides = [1, 1, 1]} : vector<6x8x8xf32> to vector<6x8x1xf32>
    %83 = vector.extract_strided_slice %26 {offsets = [0, 1, 0], sizes = [6, 1, 128], strides = [1, 1, 1]} : vector<6x8x128xf32> to vector<6x1x128xf32>
    %84 = vector.broadcast %82 : vector<6x8x1xf32> to vector<6x8x128xf32>
    %85 = vector.broadcast %83 : vector<6x1x128xf32> to vector<6x8x128xf32>
    %86 = arith.mulf %84, %85 : vector<6x8x128xf32>
    %87 = arith.addf %81, %86 : vector<6x8x128xf32>
    %88 = vector.extract_strided_slice %3 {offsets = [0, 0, 2], sizes = [6, 8, 1], strides = [1, 1, 1]} : vector<6x8x8xf32> to vector<6x8x1xf32>
    %89 = vector.extract_strided_slice %26 {offsets = [0, 2, 0], sizes = [6, 1, 128], strides = [1, 1, 1]} : vector<6x8x128xf32> to vector<6x1x128xf32>
    %90 = vector.broadcast %88 : vector<6x8x1xf32> to vector<6x8x128xf32>
    %91 = vector.broadcast %89 : vector<6x1x128xf32> to vector<6x8x128xf32>
    %92 = arith.mulf %90, %91 : vector<6x8x128xf32>
    %93 = arith.addf %87, %92 : vector<6x8x128xf32>
    %94 = vector.extract_strided_slice %3 {offsets = [0, 0, 3], sizes = [6, 8, 1], strides = [1, 1, 1]} : vector<6x8x8xf32> to vector<6x8x1xf32>
    %95 = vector.extract_strided_slice %26 {offsets = [0, 3, 0], sizes = [6, 1, 128], strides = [1, 1, 1]} : vector<6x8x128xf32> to vector<6x1x128xf32>
    %96 = vector.broadcast %94 : vector<6x8x1xf32> to vector<6x8x128xf32>
    %97 = vector.broadcast %95 : vector<6x1x128xf32> to vector<6x8x128xf32>
    %98 = arith.mulf %96, %97 : vector<6x8x128xf32>
    %99 = arith.addf %93, %98 : vector<6x8x128xf32>
    %100 = vector.extract_strided_slice %3 {offsets = [0, 0, 4], sizes = [6, 8, 1], strides = [1, 1, 1]} : vector<6x8x8xf32> to vector<6x8x1xf32>
    %101 = vector.extract_strided_slice %26 {offsets = [0, 4, 0], sizes = [6, 1, 128], strides = [1, 1, 1]} : vector<6x8x128xf32> to vector<6x1x128xf32>
    %102 = vector.broadcast %100 : vector<6x8x1xf32> to vector<6x8x128xf32>
    %103 = vector.broadcast %101 : vector<6x1x128xf32> to vector<6x8x128xf32>
    %104 = arith.mulf %102, %103 : vector<6x8x128xf32>
    %105 = arith.addf %99, %104 : vector<6x8x128xf32>
    %106 = vector.extract_strided_slice %3 {offsets = [0, 0, 5], sizes = [6, 8, 1], strides = [1, 1, 1]} : vector<6x8x8xf32> to vector<6x8x1xf32>
    %107 = vector.extract_strided_slice %26 {offsets = [0, 5, 0], sizes = [6, 1, 128], strides = [1, 1, 1]} : vector<6x8x128xf32> to vector<6x1x128xf32>
    %108 = vector.broadcast %106 : vector<6x8x1xf32> to vector<6x8x128xf32>
    %109 = vector.broadcast %107 : vector<6x1x128xf32> to vector<6x8x128xf32>
    %110 = arith.mulf %108, %109 : vector<6x8x128xf32>
    %111 = arith.addf %105, %110 : vector<6x8x128xf32>
    %112 = vector.extract_strided_slice %3 {offsets = [0, 0, 6], sizes = [6, 8, 1], strides = [1, 1, 1]} : vector<6x8x8xf32> to vector<6x8x1xf32>
    %113 = vector.extract_strided_slice %26 {offsets = [0, 6, 0], sizes = [6, 1, 128], strides = [1, 1, 1]} : vector<6x8x128xf32> to vector<6x1x128xf32>
    %114 = vector.broadcast %112 : vector<6x8x1xf32> to vector<6x8x128xf32>
    %115 = vector.broadcast %113 : vector<6x1x128xf32> to vector<6x8x128xf32>
    %116 = arith.mulf %114, %115 : vector<6x8x128xf32>
    %117 = arith.addf %111, %116 : vector<6x8x128xf32>
    %118 = vector.extract_strided_slice %3 {offsets = [0, 0, 7], sizes = [6, 8, 1], strides = [1, 1, 1]} : vector<6x8x8xf32> to vector<6x8x1xf32>
    %119 = vector.extract_strided_slice %26 {offsets = [0, 7, 0], sizes = [6, 1, 128], strides = [1, 1, 1]} : vector<6x8x128xf32> to vector<6x1x128xf32>
    %120 = vector.broadcast %118 : vector<6x8x1xf32> to vector<6x8x128xf32>
    %121 = vector.broadcast %119 : vector<6x1x128xf32> to vector<6x8x128xf32>
    %122 = arith.mulf %120, %121 : vector<6x8x128xf32>
    %123 = arith.addf %117, %122 : vector<6x8x128xf32>
    %124 = vector.shape_cast %123 : vector<6x8x128xf32> to vector<48x128xf32>
    %125 = vector.broadcast %8 : vector<1x128xf32> to vector<48x128xf32>
    %126 = arith.addf %124, %125 : vector<48x128xf32>
    %cst_14 = arith.constant dense<0.000000e+00> : vector<48x384xf32>
    %127 = tpu.matmul %76, %14, %cst_14 {dimension_numbers = #tpu.dot_dimension_numbers<[1], [0], [0], [1], [0, 0, 1, 1], [], []>} : vector<48x128xf32>, vector<128x384xf32>, vector<48x384xf32> -> vector<48x384xf32>
    %cst_15 = arith.constant dense<0.000000e+00> : vector<48x384xf32>
    %128 = tpu.matmul %126, %15, %cst_15 {dimension_numbers = #tpu.dot_dimension_numbers<[1], [0], [0], [1], [0, 0, 1, 1], [], []>} : vector<48x128xf32>, vector<128x384xf32>, vector<48x384xf32> -> vector<48x384xf32>
    %129 = vector.extract_strided_slice %127 {offsets = [0, 0], sizes = [48, 128], strides = [1, 1]} : vector<48x384xf32> to vector<48x128xf32>
    %130 = vector.extract_strided_slice %128 {offsets = [0, 0], sizes = [48, 128], strides = [1, 1]} : vector<48x384xf32> to vector<48x128xf32>
    %131 = arith.addf %129, %130 : vector<48x128xf32>
    %132 = vector.extract_strided_slice %18 {offsets = [0, 256], sizes = [48, 128], strides = [1, 1]} : vector<48x640xf32> to vector<48x128xf32>
    %133 = arith.addf %131, %132 : vector<48x128xf32>
    %134 = vector.broadcast %9 : vector<1x128xf32> to vector<48x128xf32>
    %135 = arith.addf %133, %134 : vector<48x128xf32>
    %136 = vector.extract_strided_slice %127 {offsets = [0, 128], sizes = [48, 128], strides = [1, 1]} : vector<48x384xf32> to vector<48x128xf32>
    %137 = vector.extract_strided_slice %128 {offsets = [0, 128], sizes = [48, 128], strides = [1, 1]} : vector<48x384xf32> to vector<48x128xf32>
    %138 = arith.addf %136, %137 : vector<48x128xf32>
    %139 = vector.extract_strided_slice %18 {offsets = [0, 384], sizes = [48, 128], strides = [1, 1]} : vector<48x640xf32> to vector<48x128xf32>
    %140 = arith.addf %138, %139 : vector<48x128xf32>
    %141 = vector.broadcast %10 : vector<1x128xf32> to vector<48x128xf32>
    %142 = arith.addf %140, %141 : vector<48x128xf32>
    %143 = vector.extract_strided_slice %127 {offsets = [0, 256], sizes = [48, 128], strides = [1, 1]} : vector<48x384xf32> to vector<48x128xf32>
    %144 = vector.extract_strided_slice %128 {offsets = [0, 256], sizes = [48, 128], strides = [1, 1]} : vector<48x384xf32> to vector<48x128xf32>
    %145 = arith.addf %143, %144 : vector<48x128xf32>
    %146 = vector.broadcast %11 : vector<1x128xf32> to vector<48x128xf32>
    %147 = arith.addf %145, %146 : vector<48x128xf32>
    %148 = vector.extract_strided_slice %18 {offsets = [0, 512], sizes = [48, 128], strides = [1, 1]} : vector<48x640xf32> to vector<48x128xf32>
    %149 = vector.broadcast %12 : vector<1x128xf32> to vector<48x128xf32>
    %150 = arith.addf %148, %149 : vector<48x128xf32>
    %151 = arith.negf %135 : vector<48x128xf32>
    %152 = math.exp %151 : vector<48x128xf32>
    %cst_16 = arith.constant 1.000000e+00 : f32
    %153 = vector.broadcast %cst_16 : f32 to vector<48x128xf32>
    %154 = arith.addf %153, %152 : vector<48x128xf32>
    %155 = arith.divf %153, %154 : vector<48x128xf32>
    %156 = arith.negf %142 : vector<48x128xf32>
    %157 = math.exp %156 : vector<48x128xf32>
    %cst_17 = arith.constant 1.000000e+00 : f32
    %158 = vector.broadcast %cst_17 : f32 to vector<48x128xf32>
    %159 = arith.addf %158, %157 : vector<48x128xf32>
    %160 = arith.divf %158, %159 : vector<48x128xf32>
    %161 = arith.mulf %155, %150 : vector<48x128xf32>
    %162 = arith.addf %147, %161 : vector<48x128xf32>
    %163 = math.tanh %162 : vector<48x128xf32>
    %164 = arith.subf %17, %163 : vector<48x128xf32>
    %165 = arith.mulf %160, %164 : vector<48x128xf32>
    %166 = arith.addf %163, %165 : vector<48x128xf32>
    %167 = vector.shape_cast %166 : vector<48x128xf32> to vector<6x8x128xf32>
    %c0_18 = arith.constant 0 : index
    %c0_19 = arith.constant 0 : index
    %c0_20 = arith.constant 0 : index
    %168 = vector.load %arg6[%c0_18, %c0_19, %c0_20] : memref<6x8x128xf32, #tpu.memory_space<vmem>>, vector<6x8x128xf32>
    tpu.vector_store %arg6[%c0_18, %c0_19, %c0_20], %167 {strides = array<i32>} : memref<6x8x128xf32, #tpu.memory_space<vmem>>, vector<6x8x128xf32>,
    return
  }
  func.func @transform_0(%arg0: i32) -> (i32, i32, i32) {
    %c0_i32 = arith.constant 0 : i32
    %c0_i32_0 = arith.constant 0 : i32
    %c0_i32_1 = arith.constant 0 : i32
    return %arg0, %c0_i32, %c0_i32_0 : i32, i32, i32
  }
  func.func @transform_1(%arg0: i32) -> (i32, i32, i32) {
    %c0_i32 = arith.constant 0 : i32
    %c0_i32_0 = arith.constant 0 : i32
    %c0_i32_1 = arith.constant 0 : i32
    return %arg0, %c0_i32, %c0_i32_0 : i32, i32, i32
  }
  func.func @transform_2(%arg0: i32) -> (i32, i32, i32) {
    %c0_i32 = arith.constant 0 : i32
    %c0_i32_0 = arith.constant 0 : i32
    %c0_i32_1 = arith.constant 0 : i32
    return %arg0, %c0_i32, %c0_i32_0 : i32, i32, i32
  }
  func.func @transform_3(%arg0: i32) -> (i32, i32) {
    %c0_i32 = arith.constant 0 : i32
    %c0_i32_0 = arith.constant 0 : i32
    %c0_i32_1 = arith.constant 0 : i32
    return %c0_i32, %c0_i32_0 : i32, i32
  }
  func.func @transform_4(%arg0: i32) -> (i32, i32) {
    %c0_i32 = arith.constant 0 : i32
    %c0_i32_0 = arith.constant 0 : i32
    %c0_i32_1 = arith.constant 0 : i32
    return %c0_i32, %c0_i32_0 : i32, i32
  }
  func.func @transform_5(%arg0: i32) -> (i32, i32, i32) {
    %c0_i32 = arith.constant 0 : i32
    %c0_i32_0 = arith.constant 0 : i32
    %c0_i32_1 = arith.constant 0 : i32
    return %arg0, %c0_i32, %c0_i32_0 : i32, i32, i32
  }
}

module attributes {stable_mosaic.version = 11 : i64} {
  func.func @_gnn_kernel(%arg0: i32, %arg1: memref<6x8x8xbf16, #tpu.memory_space<vmem>>, %arg2: memref<6x8x8xbf16, #tpu.memory_space<vmem>>, %arg3: memref<6x8x128xf32, #tpu.memory_space<vmem>>, %arg4: memref<128x1408xf32, #tpu.memory_space<vmem>>, %arg5: memref<8x128xf32, #tpu.memory_space<vmem>>, %arg6: memref<6x8x128xf32, #tpu.memory_space<vmem>>) attributes {dimension_semantics = [#tpu.dimension_semantics<parallel>], iteration_bounds = array<i64: 1>, scalar_prefetch = 0 : i64, scratch_operands = 0 : i64, tpu.core_type = #tpu.core_type<tc>, window_params = [{transform_indices = @transform_0, window_bounds = array<i64: 6, 8, 8>}, {transform_indices = @transform_1, window_bounds = array<i64: 6, 8, 8>}, {transform_indices = @transform_2, window_bounds = array<i64: 6, 8, 128>}, {pipeline_mode = #tpu.pipeline_mode<synchronous>, transform_indices = @transform_3, window_bounds = array<i64: 128, 1408>}, {pipeline_mode = #tpu.pipeline_mode<synchronous>, transform_indices = @transform_4, window_bounds = array<i64: 8, 128>}, {transform_indices = @transform_5, window_bounds = array<i64: 6, 8, 128>}]} {
    %c0 = arith.constant 0 : index
    %c0_0 = arith.constant 0 : index
    %c0_1 = arith.constant 0 : index
    %0 = vector.load %arg1[%c0, %c0_0, %c0_1] : memref<6x8x8xbf16, #tpu.memory_space<vmem>>, vector<6x8x8xbf16>
    %1 = arith.extf %0 : vector<6x8x8xbf16> to vector<6x8x8xf32>
    %c0_2 = arith.constant 0 : index
    %c0_3 = arith.constant 0 : index
    %c0_4 = arith.constant 0 : index
    %2 = vector.load %arg2[%c0_2, %c0_3, %c0_4] : memref<6x8x8xbf16, #tpu.memory_space<vmem>>, vector<6x8x8xbf16>
    %3 = arith.extf %2 : vector<6x8x8xbf16> to vector<6x8x8xf32>
    %c0_5 = arith.constant 0 : index
    %c0_6 = arith.constant 0 : index
    %4 = vector.load %arg5[%c0_5, %c0_6] : memref<8x128xf32, #tpu.memory_space<vmem>>, vector<8x128xf32>
    %5 = vector.extract_strided_slice %4 {offsets = [0, 0], sizes = [1, 128], strides = [1, 1]} : vector<8x128xf32> to vector<1x128xf32>
    %6 = vector.extract_strided_slice %4 {offsets = [1, 0], sizes = [1, 128], strides = [1, 1]} : vector<8x128xf32> to vector<1x128xf32>
    %7 = vector.extract_strided_slice %4 {offsets = [2, 0], sizes = [1, 128], strides = [1, 1]} : vector<8x128xf32> to vector<1x128xf32>
    %8 = vector.extract_strided_slice %4 {offsets = [3, 0], sizes = [1, 128], strides = [1, 1]} : vector<8x128xf32> to vector<1x128xf32>
    %9 = vector.extract_strided_slice %4 {offsets = [4, 0], sizes = [1, 128], strides = [1, 1]} : vector<8x128xf32> to vector<1x128xf32>
    %10 = vector.extract_strided_slice %4 {offsets = [5, 0], sizes = [1, 128], strides = [1, 1]} : vector<8x128xf32> to vector<1x128xf32>
    %11 = vector.extract_strided_slice %4 {offsets = [6, 0], sizes = [1, 128], strides = [1, 1]} : vector<8x128xf32> to vector<1x128xf32>
    %12 = vector.extract_strided_slice %4 {offsets = [7, 0], sizes = [1, 128], strides = [1, 1]} : vector<8x128xf32> to vector<1x128xf32>
    %c0_7 = arith.constant 0 : index
    %c0_8 = arith.constant 0 : index
    %13 = vector.load %arg4[%c0_7, %c0_8] : memref<128x1408xf32, #tpu.memory_space<vmem>>, vector<128x640xf32>
    %c0_9 = arith.constant 0 : index
    %c640 = arith.constant 640 : index
    %14 = vector.load %arg4[%c0_9, %c640] : memref<128x1408xf32, #tpu.memory_space<vmem>>, vector<128x384xf32>
    %c0_10 = arith.constant 0 : index
    %c1024 = arith.constant 1024 : index
    %15 = vector.load %arg4[%c0_10, %c1024] : memref<128x1408xf32, #tpu.memory_space<vmem>>, vector<128x384xf32>
    %c0_11 = arith.constant 0 : index
    %c0_12 = arith.constant 0 : index
    %c0_13 = arith.constant 0 : index
    %16 = vector.load %arg3[%c0_11, %c0_12, %c0_13] : memref<6x8x128xf32, #tpu.memory_space<vmem>>, vector<6x8x128xf32>
    %17 = vector.shape_cast %16 : vector<6x8x128xf32> to vector<48x128xf32>
    %cst = arith.constant dense<0.000000e+00> : vector<48x640xf32>
    %18 = tpu.matmul %17, %13, %cst {dimension_numbers = #tpu.dot_dimension_numbers<[1], [0], [0], [1], [0, 0, 1, 1], [], []>} : vector<48x128xf32>, vector<128x640xf32>, vector<48x640xf32> -> vector<48x640xf32>
    %19 = vector.extract_strided_slice %18 {offsets = [0, 0], sizes = [48, 128], strides = [1, 1]} : vector<48x640xf32> to vector<48x128xf32>
    %20 = vector.broadcast %5 : vector<1x128xf32> to vector<48x128xf32>
    %21 = arith.addf %19, %20 : vector<48x128xf32>
    %22 = vector.shape_cast %21 : vector<48x128xf32> to vector<6x8x128xf32>
    %23 = vector.extract_strided_slice %18 {offsets = [0, 128], sizes = [48, 128], strides = [1, 1]} : vector<48x640xf32> to vector<48x128xf32>
    %24 = vector.broadcast %6 : vector<1x128xf32> to vector<48x128xf32>
    %25 = arith.addf %23, %24 : vector<48x128xf32>
    %26 = vector.shape_cast %25 : vector<48x128xf32> to vector<6x8x128xf32>
    %27 = vector.extract_strided_slice %1 {offsets = [0, 0, 0], sizes = [6, 8, 1], strides = [1, 1, 1]} : vector<6x8x8xf32> to vector<6x8x1xf32>
    %28 = vector.extract_strided_slice %22 {offsets = [0, 0, 0], sizes = [6, 1, 128], strides = [1, 1, 1]} : vector<6x8x128xf32> to vector<6x1x128xf32>
    %29 = vector.broadcast %27 : vector<6x8x1xf32> to vector<6x8x128xf32>
    %30 = vector.broadcast %28 : vector<6x1x128xf32> to vector<6x8x128xf32>
    %31 = arith.mulf %29, %30 : vector<6x8x128xf32>
    %32 = vector.extract_strided_slice %1 {offsets = [0, 0, 1], sizes = [6, 8, 1], strides = [1, 1, 1]} : vector<6x8x8xf32> to vector<6x8x1xf32>
    %33 = vector.extract_strided_slice %22 {offsets = [0, 1, 0], sizes = [6, 1, 128], strides = [1, 1, 1]} : vector<6x8x128xf32> to vector<6x1x128xf32>
    %34 = vector.broadcast %32 : vector<6x8x1xf32> to vector<6x8x128xf32>
    %35 = vector.broadcast %33 : vector<6x1x128xf32> to vector<6x8x128xf32>
    %36 = arith.mulf %34, %35 : vector<6x8x128xf32>
    %37 = arith.addf %31, %36 : vector<6x8x128xf32>
    %38 = vector.extract_strided_slice %1 {offsets = [0, 0, 2], sizes = [6, 8, 1], strides = [1, 1, 1]} : vector<6x8x8xf32> to vector<6x8x1xf32>
    %39 = vector.extract_strided_slice %22 {offsets = [0, 2, 0], sizes = [6, 1, 128], strides = [1, 1, 1]} : vector<6x8x128xf32> to vector<6x1x128xf32>
    %40 = vector.broadcast %38 : vector<6x8x1xf32> to vector<6x8x128xf32>
    %41 = vector.broadcast %39 : vector<6x1x128xf32> to vector<6x8x128xf32>
    %42 = arith.mulf %40, %41 : vector<6x8x128xf32>
    %43 = arith.addf %37, %42 : vector<6x8x128xf32>
    %44 = vector.extract_strided_slice %1 {offsets = [0, 0, 3], sizes = [6, 8, 1], strides = [1, 1, 1]} : vector<6x8x8xf32> to vector<6x8x1xf32>
    %45 = vector.extract_strided_slice %22 {offsets = [0, 3, 0], sizes = [6, 1, 128], strides = [1, 1, 1]} : vector<6x8x128xf32> to vector<6x1x128xf32>
    %46 = vector.broadcast %44 : vector<6x8x1xf32> to vector<6x8x128xf32>
    %47 = vector.broadcast %45 : vector<6x1x128xf32> to vector<6x8x128xf32>
    %48 = arith.mulf %46, %47 : vector<6x8x128xf32>
    %49 = arith.addf %43, %48 : vector<6x8x128xf32>
    %50 = vector.extract_strided_slice %1 {offsets = [0, 0, 4], sizes = [6, 8, 1], strides = [1, 1, 1]} : vector<6x8x8xf32> to vector<6x8x1xf32>
    %51 = vector.extract_strided_slice %22 {offsets = [0, 4, 0], sizes = [6, 1, 128], strides = [1, 1, 1]} : vector<6x8x128xf32> to vector<6x1x128xf32>
    %52 = vector.broadcast %50 : vector<6x8x1xf32> to vector<6x8x128xf32>
    %53 = vector.broadcast %51 : vector<6x1x128xf32> to vector<6x8x128xf32>
    %54 = arith.mulf %52, %53 : vector<6x8x128xf32>
    %55 = arith.addf %49, %54 : vector<6x8x128xf32>
    %56 = vector.extract_strided_slice %1 {offsets = [0, 0, 5], sizes = [6, 8, 1], strides = [1, 1, 1]} : vector<6x8x8xf32> to vector<6x8x1xf32>
    %57 = vector.extract_strided_slice %22 {offsets = [0, 5, 0], sizes = [6, 1, 128], strides = [1, 1, 1]} : vector<6x8x128xf32> to vector<6x1x128xf32>
    %58 = vector.broadcast %56 : vector<6x8x1xf32> to vector<6x8x128xf32>
    %59 = vector.broadcast %57 : vector<6x1x128xf32> to vector<6x8x128xf32>
    %60 = arith.mulf %58, %59 : vector<6x8x128xf32>
    %61 = arith.addf %55, %60 : vector<6x8x128xf32>
    %62 = vector.extract_strided_slice %1 {offsets = [0, 0, 6], sizes = [6, 8, 1], strides = [1, 1, 1]} : vector<6x8x8xf32> to vector<6x8x1xf32>
    %63 = vector.extract_strided_slice %22 {offsets = [0, 6, 0], sizes = [6, 1, 128], strides = [1, 1, 1]} : vector<6x8x128xf32> to vector<6x1x128xf32>
    %64 = vector.broadcast %62 : vector<6x8x1xf32> to vector<6x8x128xf32>
    %65 = vector.broadcast %63 : vector<6x1x128xf32> to vector<6x8x128xf32>
    %66 = arith.mulf %64, %65 : vector<6x8x128xf32>
    %67 = arith.addf %61, %66 : vector<6x8x128xf32>
    %68 = vector.extract_strided_slice %1 {offsets = [0, 0, 7], sizes = [6, 8, 1], strides = [1, 1, 1]} : vector<6x8x8xf32> to vector<6x8x1xf32>
    %69 = vector.extract_strided_slice %22 {offsets = [0, 7, 0], sizes = [6, 1, 128], strides = [1, 1, 1]} : vector<6x8x128xf32> to vector<6x1x128xf32>
    %70 = vector.broadcast %68 : vector<6x8x1xf32> to vector<6x8x128xf32>
    %71 = vector.broadcast %69 : vector<6x1x128xf32> to vector<6x8x128xf32>
    %72 = arith.mulf %70, %71 : vector<6x8x128xf32>
    %73 = arith.addf %67, %72 : vector<6x8x128xf32>
    %74 = vector.shape_cast %73 : vector<6x8x128xf32> to vector<48x128xf32>
    %75 = vector.broadcast %7 : vector<1x128xf32> to vector<48x128xf32>
    %76 = arith.addf %74, %75 : vector<48x128xf32>
    %77 = vector.extract_strided_slice %3 {offsets = [0, 0, 0], sizes = [6, 8, 1], strides = [1, 1, 1]} : vector<6x8x8xf32> to vector<6x8x1xf32>
    %78 = vector.extract_strided_slice %26 {offsets = [0, 0, 0], sizes = [6, 1, 128], strides = [1, 1, 1]} : vector<6x8x128xf32> to vector<6x1x128xf32>
    %79 = vector.broadcast %77 : vector<6x8x1xf32> to vector<6x8x128xf32>
    %80 = vector.broadcast %78 : vector<6x1x128xf32> to vector<6x8x128xf32>
    %81 = arith.mulf %79, %80 : vector<6x8x128xf32>
    %82 = vector.extract_strided_slice %3 {offsets = [0, 0, 1], sizes = [6, 8, 1], strides = [1, 1, 1]} : vector<6x8x8xf32> to vector<6x8x1xf32>
    %83 = vector.extract_strided_slice %26 {offsets = [0, 1, 0], sizes = [6, 1, 128], strides = [1, 1, 1]} : vector<6x8x128xf32> to vector<6x1x128xf32>
    %84 = vector.broadcast %82 : vector<6x8x1xf32> to vector<6x8x128xf32>
    %85 = vector.broadcast %83 : vector<6x1x128xf32> to vector<6x8x128xf32>
    %86 = arith.mulf %84, %85 : vector<6x8x128xf32>
    %87 = arith.addf %81, %86 : vector<6x8x128xf32>
    %88 = vector.extract_strided_slice %3 {offsets = [0, 0, 2], sizes = [6, 8, 1], strides = [1, 1, 1]} : vector<6x8x8xf32> to vector<6x8x1xf32>
    %89 = vector.extract_strided_slice %26 {offsets = [0, 2, 0], sizes = [6, 1, 128], strides = [1, 1, 1]} : vector<6x8x128xf32> to vector<6x1x128xf32>
    %90 = vector.broadcast %88 : vector<6x8x1xf32> to vector<6x8x128xf32>
    %91 = vector.broadcast %89 : vector<6x1x128xf32> to vector<6x8x128xf32>
    %92 = arith.mulf %90, %91 : vector<6x8x128xf32>
    %93 = arith.addf %87, %92 : vector<6x8x128xf32>
    %94 = vector.extract_strided_slice %3 {offsets = [0, 0, 3], sizes = [6, 8, 1], strides = [1, 1, 1]} : vector<6x8x8xf32> to vector<6x8x1xf32>
    %95 = vector.extract_strided_slice %26 {offsets = [0, 3, 0], sizes = [6, 1, 128], strides = [1, 1, 1]} : vector<6x8x128xf32> to vector<6x1x128xf32>
    %96 = vector.broadcast %94 : vector<6x8x1xf32> to vector<6x8x128xf32>
    %97 = vector.broadcast %95 : vector<6x1x128xf32> to vector<6x8x128xf32>
    %98 = arith.mulf %96, %97 : vector<6x8x128xf32>
    %99 = arith.addf %93, %98 : vector<6x8x128xf32>
    %100 = vector.extract_strided_slice %3 {offsets = [0, 0, 4], sizes = [6, 8, 1], strides = [1, 1, 1]} : vector<6x8x8xf32> to vector<6x8x1xf32>
    %101 = vector.extract_strided_slice %26 {offsets = [0, 4, 0], sizes = [6, 1, 128], strides = [1, 1, 1]} : vector<6x8x128xf32> to vector<6x1x128xf32>
    %102 = vector.broadcast %100 : vector<6x8x1xf32> to vector<6x8x128xf32>
    %103 = vector.broadcast %101 : vector<6x1x128xf32> to vector<6x8x128xf32>
    %104 = arith.mulf %102, %103 : vector<6x8x128xf32>
    %105 = arith.addf %99, %104 : vector<6x8x128xf32>
    %106 = vector.extract_strided_slice %3 {offsets = [0, 0, 5], sizes = [6, 8, 1], strides = [1, 1, 1]} : vector<6x8x8xf32> to vector<6x8x1xf32>
    %107 = vector.extract_strided_slice %26 {offsets = [0, 5, 0], sizes = [6, 1, 128], strides = [1, 1, 1]} : vector<6x8x128xf32> to vector<6x1x128xf32>
    %108 = vector.broadcast %106 : vector<6x8x1xf32> to vector<6x8x128xf32>
    %109 = vector.broadcast %107 : vector<6x1x128xf32> to vector<6x8x128xf32>
    %110 = arith.mulf %108, %109 : vector<6x8x128xf32>
    %111 = arith.addf %105, %110 : vector<6x8x128xf32>
    %112 = vector.extract_strided_slice %3 {offsets = [0, 0, 6], sizes = [6, 8, 1], strides = [1, 1, 1]} : vector<6x8x8xf32> to vector<6x8x1xf32>
    %113 = vector.extract_strided_slice %26 {offsets = [0, 6, 0], sizes = [6, 1, 128], strides = [1, 1, 1]} : vector<6x8x128xf32> to vector<6x1x128xf32>
    %114 = vector.broadcast %112 : vector<6x8x1xf32> to vector<6x8x128xf32>
    %115 = vector.broadcast %113 : vector<6x1x128xf32> to vector<6x8x128xf32>
    %116 = arith.mulf %114, %115 : vector<6x8x128xf32>
    %117 = arith.addf %111, %116 : vector<6x8x128xf32>
    %118 = vector.extract_strided_slice %3 {offsets = [0, 0, 7], sizes = [6, 8, 1], strides = [1, 1, 1]} : vector<6x8x8xf32> to vector<6x8x1xf32>
    %119 = vector.extract_strided_slice %26 {offsets = [0, 7, 0], sizes = [6, 1, 128], strides = [1, 1, 1]} : vector<6x8x128xf32> to vector<6x1x128xf32>
    %120 = vector.broadcast %118 : vector<6x8x1xf32> to vector<6x8x128xf32>
    %121 = vector.broadcast %119 : vector<6x1x128xf32> to vector<6x8x128xf32>
    %122 = arith.mulf %120, %121 : vector<6x8x128xf32>
    %123 = arith.addf %117, %122 : vector<6x8x128xf32>
    %124 = vector.shape_cast %123 : vector<6x8x128xf32> to vector<48x128xf32>
    %125 = vector.broadcast %8 : vector<1x128xf32> to vector<48x128xf32>
    %126 = arith.addf %124, %125 : vector<48x128xf32>
    %cst_14 = arith.constant dense<0.000000e+00> : vector<48x384xf32>
    %127 = tpu.matmul %76, %14, %cst_14 {dimension_numbers = #tpu.dot_dimension_numbers<[1], [0], [0], [1], [0, 0, 1, 1], [], []>} : vector<48x128xf32>, vector<128x384xf32>, vector<48x384xf32> -> vector<48x384xf32>
    %cst_15 = arith.constant dense<0.000000e+00> : vector<48x384xf32>
    %128 = tpu.matmul %126, %15, %cst_15 {dimension_numbers = #tpu.dot_dimension_numbers<[1], [0], [0], [1], [0, 0, 1, 1], [], []>} : vector<48x128xf32>, vector<128x384xf32>, vector<48x384xf32> -> vector<48x384xf32>
    %129 = vector.extract_strided_slice %127 {offsets = [0, 0], sizes = [48, 128], strides = [1, 1]} : vector<48x384xf32> to vector<48x128xf32>
    %130 = vector.extract_strided_slice %128 {offsets = [0, 0], sizes = [48, 128], strides = [1, 1]} : vector<48x384xf32> to vector<48x128xf32>
    %131 = arith.addf %129, %130 : vector<48x128xf32>
    %132 = vector.extract_strided_slice %18 {offsets = [0, 256], sizes = [48, 128], strides = [1, 1]} : vector<48x640xf32> to vector<48x128xf32>
    %133 = arith.addf %131, %132 : vector<48x128xf32>
    %134 = vector.broadcast %9 : vector<1x128xf32> to vector<48x128xf32>
    %135 = arith.addf %133, %134 : vector<48x128xf32>
    %136 = vector.extract_strided_slice %127 {offsets = [0, 128], sizes = [48, 128], strides = [1, 1]} : vector<48x384xf32> to vector<48x128xf32>
    %137 = vector.extract_strided_slice %128 {offsets = [0, 128], sizes = [48, 128], strides = [1, 1]} : vector<48x384xf32> to vector<48x128xf32>
    %138 = arith.addf %136, %137 : vector<48x128xf32>
    %139 = vector.extract_strided_slice %18 {offsets = [0, 384], sizes = [48, 128], strides = [1, 1]} : vector<48x640xf32> to vector<48x128xf32>
    %140 = arith.addf %138, %139 : vector<48x128xf32>
    %141 = vector.broadcast %10 : vector<1x128xf32> to vector<48x128xf32>
    %142 = arith.addf %140, %141 : vector<48x128xf32>
    %143 = vector.extract_strided_slice %127 {offsets = [0, 256], sizes = [48, 128], strides = [1, 1]} : vector<48x384xf32> to vector<48x128xf32>
    %144 = vector.extract_strided_slice %128 {offsets = [0, 256], sizes = [48, 128], strides = [1, 1]} : vector<48x384xf32> to vector<48x128xf32>
    %145 = arith.addf %143, %144 : vector<48x128xf32>
    %146 = vector.broadcast %11 : vector<1x128xf32> to vector<48x128xf32>
    %147 = arith.addf %145, %146 : vector<48x128xf32>
    %148 = vector.extract_strided_slice %18 {offsets = [0, 512], sizes = [48, 128], strides = [1, 1]} : vector<48x640xf32> to vector<48x128xf32>
    %149 = vector.broadcast %12 : vector<1x128xf32> to vector<48x128xf32>
    %150 = arith.addf %148, %149 : vector<48x128xf32>
    %151 = arith.negf %135 : vector<48x128xf32>
    %152 = math.exp %151 : vector<48x128xf32>
    %cst_16 = arith.constant 1.000000e+00 : f32
    %153 = vector.broadcast %cst_16 : f32 to vector<48x128xf32>
    %154 = arith.addf %153, %152 : vector<48x128xf32>
    %155 = arith.divf %153, %154 : vector<48x128xf32>
    %156 = arith.negf %142 : vector<48x128xf32>
    %157 = math.exp %156 : vector<48x128xf32>
    %cst_17 = arith.constant 1.000000e+00 : f32
    %158 = vector.broadcast %cst_17 : f32 to vector<48x128xf32>
    %159 = arith.addf %158, %157 : vector<48x128xf32>
    %160 = arith.divf %158, %159 : vector<48x128xf32>
    %161 = arith.mulf %155, %150 : vector<48x128xf32>
    %162 = arith.addf %147, %161 : vector<48x128xf32>
    %163 = math.tanh %162 : vector<48x128xf32>
    %164 = arith.subf %17, %163 : vector<48x128xf32>
    %165 = arith.mulf %160, %164 : vector<48x128xf32>
    %166 = arith.addf %163, %165 : vector<48x128xf32>
    %167 = vector.shape_cast %166 : vector<48x128xf32> to vector<6x8x128xf32>
    %c0_18 = arith.constant 0 : index
    %c0_19 = arith.constant 0 : index
    %c0_20 = arith.constant 0 : index
    %168 = vector.load %arg6[%c0_18, %c0_19, %c0_20] : memref<6x8x128xf32, #tpu.memory_space<vmem>>, vector<6x8x128xf32>
    tpu.vector_store %arg6[%c0_18, %c0_19, %c0_20], %167 {strides = array<i32>} : memref<6x8x128xf32, #tpu.memory_space<vmem>>, vector<6x8x128xf32>,
    return
  }
  func.func @transform_0(%arg0: i32) -> (i32, i32, i32) {
    %c0_i32 = arith.constant 0 : i32
    %c0_i32_0 = arith.constant 0 : i32
    %c0_i32_1 = arith.constant 0 : i32
    return %arg0, %c0_i32, %c0_i32_0 : i32, i32, i32
  }
  func.func @transform_1(%arg0: i32) -> (i32, i32, i32) {
    %c0_i32 = arith.constant 0 : i32
    %c0_i32_0 = arith.constant 0 : i32
    %c0_i32_1 = arith.constant 0 : i32
    return %arg0, %c0_i32, %c0_i32_0 : i32, i32, i32
  }
  func.func @transform_2(%arg0: i32) -> (i32, i32, i32) {
    %c0_i32 = arith.constant 0 : i32
    %c0_i32_0 = arith.constant 0 : i32
    %c0_i32_1 = arith.constant 0 : i32
    return %arg0, %c0_i32, %c0_i32_0 : i32, i32, i32
  }
  func.func @transform_3(%arg0: i32) -> (i32, i32) {
    %c0_i32 = arith.constant 0 : i32
    %c0_i32_0 = arith.constant 0 : i32
    %c0_i32_1 = arith.constant 0 : i32
    return %c0_i32, %c0_i32_0 : i32, i32
  }
  func.func @transform_4(%arg0: i32) -> (i32, i32) {
    %c0_i32 = arith.constant 0 : i32
    %c0_i32_0 = arith.constant 0 : i32
    %c0_i32_1 = arith.constant 0 : i32
    return %c0_i32, %c0_i32_0 : i32, i32
  }
  func.func @transform_5(%arg0: i32) -> (i32, i32, i32) {
    %c0_i32 = arith.constant 0 : i32
    %c0_i32_0 = arith.constant 0 : i32
    %c0_i32_1 = arith.constant 0 : i32
    return %arg0, %c0_i32, %c0_i32_0 : i32, i32, i32
  }
}

</mosaic_0001>

<llo_original>
// kernel: tpu_custom_call.1
$region0: #{tpu_custom_call.1}
  #allocation0 [shape = 'u32[]', space=smem, size = 0x4, offset = 0x4, fixed_abs, tag = 'smem constant byte address 0x4 - core index']
  #allocation1 [shape = 'u32[144,128]{1,0:T(1,128)}', space=vmem, size = 0x12000, scoped, tag = 'internal scratch']
  %s0 = inlined_call_operand.hbm [shape: bf16[6,8,8], index: 0, kind: input, shape index: {}]
  %s1 = inlined_call_operand.hbm [shape: bf16[6,8,8], index: 1, kind: input, shape index: {}]
  %s2 = inlined_call_operand.hbm [shape: f32[6,8,128], index: 2, kind: input, shape index: {}]
  %s3 = inlined_call_operand.hbm [shape: f32[128,1408], index: 3, kind: input, shape index: {}]
  %s4 = inlined_call_operand.hbm [shape: f32[8,128], index: 4, kind: input, shape index: {}]
  %s5 = inlined_call_operand.hbm [shape: f32[6,8,128], index: 5, kind: output, shape index: {}]
  %s6 = sld [smem:[#allocation0]]
  $region50: #{tpu_custom_call.1} parent=0
    _
  %s8 = ssub.s32 1, %s6
  %s9 = scalar_select 0, %s8, %s6
  $region1: #{tpu_custom_call.1} parent=0
    #allocation2 [shape = 'u8[12288]{0}', space=vmem, size = 0x3000, scoped, tag = 'input window, operand 0, single buffered']
    #allocation3 [shape = 's32[1]{0}', space=sflag, size = 0x4, scoped, tag = 'scoped memory for tpu_custom_call.1']
    #allocation4 [shape = 's32[1]{0}', space=sflag, size = 0x4, scoped, tag = 'scoped memory for tpu_custom_call.1']
    #allocation5 [shape = 'u8[12288]{0}', space=vmem, size = 0x3000, scoped, tag = 'input window, operand 1, single buffered']
    #allocation6 [shape = 's32[1]{0}', space=sflag, size = 0x4, scoped, tag = 'scoped memory for tpu_custom_call.1']
    #allocation7 [shape = 'u8[24576]{0}', space=vmem, size = 0x6000, scoped, tag = 'input window, operand 2, single buffered']
    #allocation8 [shape = 'u8[720896]{0}', space=vmem, size = 0xb0000, scoped, tag = 'input window, operand 3, single buffered']
    #allocation9 [shape = 's32[1]{0}', space=sflag, size = 0x4, scoped, tag = 'scoped memory for tpu_custom_call.1']
    #allocation10 [shape = 'u8[4096]{0}', space=vmem, size = 0x1000, scoped, tag = 'input window, operand 4, single buffered']
    #allocation11 [shape = 'u8[24576]{0}', space=vmem, size = 0x6000, scoped, tag = 'output window, operand 0, single buffered']
    %10 = vsyncpa [#allocation3], 0
    %11 = vsyncpa [#allocation6], 0
    %12 = vsyncpa [#allocation9], 0
    %13 = vsyncpa [#allocation4], 0
    // Predicated region
    $region2: #{tpu_custom_call.1} parent=1 // pred_check
      _
    $region3: #{tpu_custom_call.1} parent=1 // pred_check_branch
      %15 = sbr.rel (0) target = $region5
    $region4: #{tpu_custom_call.1} parent=1 // pred_region
      %s17 = ssub.s32 384, 384
      %18 = vsyncadd [#allocation3], %s17
      %s19 = sshll.u32 [#allocation2], 4
      %s20 = int_to_ptr.vmem [resolvable:$true] %s19
      %25 = dma.hbm_to_vmem [thread:$0]  %s0, 384, %s20, [#allocation3], 64, 64, 4
    $region5: #{tpu_custom_call.1} parent=1 // pred_fallthru
      _
    // Predicated region
    $region6: #{tpu_custom_call.1} parent=1 // pred_check
      _
    $region7: #{tpu_custom_call.1} parent=1 // pred_check_branch
      %27 = sbr.rel (0) target = $region9
    $region8: #{tpu_custom_call.1} parent=1 // pred_region
      %s29 = ssub.s32 384, 384
      %30 = vsyncadd [#allocation6], %s29
      %s31 = sshll.u32 [#allocation5], 4
      %s32 = int_to_ptr.vmem [resolvable:$true] %s31
      %37 = dma.hbm_to_vmem [thread:$0]  %s1, 384, %s32, [#allocation6], 64, 64, 4
    $region9: #{tpu_custom_call.1} parent=1 // pred_fallthru
      _
    // Predicated region
    $region10: #{tpu_custom_call.1} parent=1 // pred_check
      _
    $region11: #{tpu_custom_call.1} parent=1 // pred_check_branch
      %39 = sbr.rel (0) target = $region13
    $region12: #{tpu_custom_call.1} parent=1 // pred_region
      %s41 = ssub.s32 768, 768
      %42 = vsyncadd [#allocation6], %s41
      %s43 = sshll.u32 [#allocation7], 4
      %s44 = int_to_ptr.vmem [resolvable:$true] %s43
      %49 = dma.hbm_to_vmem [thread:$0]  %s2, 768, %s44, [#allocation6], 128, 128, 8
    $region13: #{tpu_custom_call.1} parent=1 // pred_fallthru
      _
    // Predicated region
    $region14: #{tpu_custom_call.1} parent=1 // pred_check
      _
    $region15: #{tpu_custom_call.1} parent=1 // pred_check_branch
      %51 = sbr.rel (0) target = $region17
    $region16: #{tpu_custom_call.1} parent=1 // pred_region
      %s53 = ssub.s32 22528, 22528
      %54 = vsyncadd [#allocation9], %s53
      %s55 = sshll.u32 [#allocation8], 4
      %s56 = int_to_ptr.vmem [resolvable:$true] %s55
      %61 = dma.hbm_to_vmem [thread:$0]  %s3, 22528, %s56, [#allocation9], 1408, 1408, 88
    $region17: #{tpu_custom_call.1} parent=1 // pred_fallthru
      _
    // Predicated region
    $region18: #{tpu_custom_call.1} parent=1 // pred_check
      _
    $region19: #{tpu_custom_call.1} parent=1 // pred_check_branch
      %63 = sbr.rel (0) target = $region21
    $region20: #{tpu_custom_call.1} parent=1 // pred_region
      %s65 = ssub.s32 128, 128
      %66 = vsyncadd [#allocation9], %s65
      %s68 = sshll.u32 [#allocation10], 4
      %s69 = int_to_ptr.vmem [resolvable:$true] %s68
      %71 = dma.hbm_to_vmem [thread:$0]  %s4, 128, %s69, [#allocation9]
    $region21: #{tpu_custom_call.1} parent=1 // pred_fallthru
      _
    // Predicated region
    $region22: #{tpu_custom_call.1} parent=1 // pred_check
      _
    $region23: #{tpu_custom_call.1} parent=1 // pred_check_branch
      %73 = sbr.rel (0) target = $region25
    $region24: #{tpu_custom_call.1} parent=1 // pred_region
      %74 = dma.done [#allocation3], 384
    $region25: #{tpu_custom_call.1} parent=1 // pred_fallthru
      _
    // Predicated region
    $region26: #{tpu_custom_call.1} parent=1 // pred_check
      _
    $region27: #{tpu_custom_call.1} parent=1 // pred_check_branch
      %76 = sbr.rel (0) target = $region29
    $region28: #{tpu_custom_call.1} parent=1 // pred_region
      %77 = dma.done [#allocation6], 384
    $region29: #{tpu_custom_call.1} parent=1 // pred_fallthru
      _
    // Predicated region
    $region30: #{tpu_custom_call.1} parent=1 // pred_check
      _
    $region31: #{tpu_custom_call.1} parent=1 // pred_check_branch
      %79 = sbr.rel (0) target = $region33
    $region32: #{tpu_custom_call.1} parent=1 // pred_region
      %80 = dma.done [#allocation6], 768
    $region33: #{tpu_custom_call.1} parent=1 // pred_fallthru
      _
    // Predicated region
    $region34: #{tpu_custom_call.1} parent=1 // pred_check
      _
    $region35: #{tpu_custom_call.1} parent=1 // pred_check_branch
      %82 = sbr.rel (0) target = $region37
    $region36: #{tpu_custom_call.1} parent=1 // pred_region
      %83 = dma.done [#allocation9], 22528
    $region37: #{tpu_custom_call.1} parent=1 // pred_fallthru
      _
    // Predicated region
    $region38: #{tpu_custom_call.1} parent=1 // pred_check
      _
    $region39: #{tpu_custom_call.1} parent=1 // pred_check_branch
      %85 = sbr.rel (0) target = $region41
    $region40: #{tpu_custom_call.1} parent=1 // pred_region
      %86 = dma.done [#allocation9], 128
    $region41: #{tpu_custom_call.1} parent=1 // pred_fallthru
      _
    %v87 = vld [vmem:[#allocation2] sm:$0xf]
    %v88 = vld [vmem:[#allocation2 + $0x4] sm:$0xf]
    %v89 = vld [vmem:[#allocation2 + $0x8] sm:$0xf]
    %v90 = vld [vmem:[#allocation2 + $0xc] sm:$0xf]
    %v91 = vld [vmem:[#allocation2 + $0x10] sm:$0xf]
    %v92 = vld [vmem:[#allocation2 + $0x14] sm:$0xf]
    %v93 = vunpack.c.l.bf16 %v87
    %v94 = vunpack.c.l.bf16 %v88
    %v95 = vunpack.c.l.bf16 %v89
    %v96 = vunpack.c.l.bf16 %v90
    %v97 = vunpack.c.l.bf16 %v91
    %v98 = vunpack.c.l.bf16 %v92
    %v99 = vld [vmem:[#allocation5] sm:$0xf]
    %v100 = vld [vmem:[#allocation5 + $0x4] sm:$0xf]
    %v101 = vld [vmem:[#allocation5 + $0x8] sm:$0xf]
    %v102 = vld [vmem:[#allocation5 + $0xc] sm:$0xf]
    %v103 = vld [vmem:[#allocation5 + $0x10] sm:$0xf]
    %v104 = vld [vmem:[#allocation5 + $0x14] sm:$0xf]
    %v105 = vunpack.c.l.bf16 %v99
    %v106 = vunpack.c.l.bf16 %v100
    %v107 = vunpack.c.l.bf16 %v101
    %v108 = vunpack.c.l.bf16 %v102
    %v109 = vunpack.c.l.bf16 %v103
    %v110 = vunpack.c.l.bf16 %v104
    %v111 = vld [vmem:[#allocation10] sm:$0xff]
    %v112 = vld [vmem:[#allocation8] sm:$0xff]
    %v113 = vld [vmem:[#allocation8 + $0x8] sm:$0xff]
    %v114 = vld [vmem:[#allocation8 + $0x10] sm:$0xff]
    %v115 = vld [vmem:[#allocation8 + $0x18] sm:$0xff]
    %v116 = vld [vmem:[#allocation8 + $0x20] sm:$0xff]
    %v117 = vld [vmem:[#allocation8 + $0x58] sm:$0xff]
    %v118 = vld [vmem:[#allocation8 + $0x60] sm:$0xff]
    %v119 = vld [vmem:[#allocation8 + $0x68] sm:$0xff]
    %v120 = vld [vmem:[#allocation8 + $0x70] sm:$0xff]
    %v121 = vld [vmem:[#allocation8 + $0x78] sm:$0xff]
    %v122 = vld [vmem:[#allocation8 + $0xb0] sm:$0xff]
    %v123 = vld [vmem:[#allocation8 + $0xb8] sm:$0xff]
    %v124 = vld [vmem:[#allocation8 + $0xc0] sm:$0xff]
    %v125 = vld [vmem:[#allocation8 + $0xc8] sm:$0xff]
    %v126 = vld [vmem:[#allocation8 + $0xd0] sm:$0xff]
    %v127 = vld [vmem:[#allocation8 + $0x108] sm:$0xff]
    %v128 = vld [vmem:[#allocation8 + $0x110] sm:$0xff]
    %v129 = vld [vmem:[#allocation8 + $0x118] sm:$0xff]
    %v130 = vld [vmem:[#allocation8 + $0x120] sm:$0xff]
    %v131 = vld [vmem:[#allocation8 + $0x128] sm:$0xff]
    %v132 = vld [vmem:[#allocation8 + $0x160] sm:$0xff]
    %v133 = vld [vmem:[#allocation8 + $0x168] sm:$0xff]
    %v134 = vld [vmem:[#allocation8 + $0x170] sm:$0xff]
    %v135 = vld [vmem:[#allocation8 + $0x178] sm:$0xff]
    %v136 = vld [vmem:[#allocation8 + $0x180] sm:$0xff]
    %v137 = vld [vmem:[#allocation8 + $0x1b8] sm:$0xff]
    %v138 = vld [vmem:[#allocation8 + $0x1c0] sm:$0xff]
    %v139 = vld [vmem:[#allocation8 + $0x1c8] sm:$0xff]
    %v140 = vld [vmem:[#allocation8 + $0x1d0] sm:$0xff]
    %v141 = vld [vmem:[#allocation8 + $0x1d8] sm:$0xff]
    %v142 = vld [vmem:[#allocation8 + $0x210] sm:$0xff]
    %v143 = vld [vmem:[#allocation8 + $0x218] sm:$0xff]
    %v144 = vld [vmem:[#allocation8 + $0x220] sm:$0xff]
    %v145 = vld [vmem:[#allocation8 + $0x228] sm:$0xff]
    %v146 = vld [vmem:[#allocation8 + $0x230] sm:$0xff]
    %v147 = vld [vmem:[#allocation8 + $0x268] sm:$0xff]
    %v148 = vld [vmem:[#allocation8 + $0x270] sm:$0xff]
    %v149 = vld [vmem:[#allocation8 + $0x278] sm:$0xff]
    %v150 = vld [vmem:[#allocation8 + $0x280] sm:$0xff]
    %v151 = vld [vmem:[#allocation8 + $0x288] sm:$0xff]
    %v152 = vld [vmem:[#allocation8 + $0x2c0] sm:$0xff]
    %v153 = vld [vmem:[#allocation8 + $0x2c8] sm:$0xff]
    %v154 = vld [vmem:[#allocation8 + $0x2d0] sm:$0xff]
    %v155 = vld [vmem:[#allocation8 + $0x2d8] sm:$0xff]
    %v156 = vld [vmem:[#allocation8 + $0x2e0] sm:$0xff]
    %v157 = vld [vmem:[#allocation8 + $0x318] sm:$0xff]
    %v158 = vld [vmem:[#allocation8 + $0x320] sm:$0xff]
    %v159 = vld [vmem:[#allocation8 + $0x328] sm:$0xff]
    %v160 = vld [vmem:[#allocation8 + $0x330] sm:$0xff]
    %v161 = vld [vmem:[#allocation8 + $0x338] sm:$0xff]
    %v162 = vld [vmem:[#allocation8 + $0x370] sm:$0xff]
    %v163 = vld [vmem:[#allocation8 + $0x378] sm:$0xff]
    %v164 = vld [vmem:[#allocation8 + $0x380] sm:$0xff]
    %v165 = vld [vmem:[#allocation8 + $0x388] sm:$0xff]
    %v166 = vld [vmem:[#allocation8 + $0x390] sm:$0xff]
    %v167 = vld [vmem:[#allocation8 + $0x3c8] sm:$0xff]
    %v168 = vld [vmem:[#allocation8 + $0x3d0] sm:$0xff]
    %v169 = vld [vmem:[#allocation8 + $0x3d8] sm:$0xff]
    %v170 = vld [vmem:[#allocation8 + $0x3e0] sm:$0xff]
    %v171 = vld [vmem:[#allocation8 + $0x3e8] sm:$0xff]
    %v172 = vld [vmem:[#allocation8 + $0x420] sm:$0xff]
    %v173 = vld [vmem:[#allocation8 + $0x428] sm:$0xff]
    %v174 = vld [vmem:[#allocation8 + $0x430] sm:$0xff]
    %v175 = vld [vmem:[#allocation8 + $0x438] sm:$0xff]
    %v176 = vld [vmem:[#allocation8 + $0x440] sm:$0xff]
    %v177 = vld [vmem:[#allocation8 + $0x478] sm:$0xff]
    %v178 = vld [vmem:[#allocation8 + $0x480] sm:$0xff]
    %v179 = vld [vmem:[#allocation8 + $0x488] sm:$0xff]
    %v180 = vld [vmem:[#allocation8 + $0x490] sm:$0xff]
    %v181 = vld [vmem:[#allocation8 + $0x498] sm:$0xff]
    %v182 = vld [vmem:[#allocation8 + $0x4d0] sm:$0xff]
    %v183 = vld [vmem:[#allocation8 + $0x4d8] sm:$0xff]
    %v184 = vld [vmem:[#allocation8 + $0x4e0] sm:$0xff]
    %v185 = vld [vmem:[#allocation8 + $0x4e8] sm:$0xff]
    %v186 = vld [vmem:[#allocation8 + $0x4f0] sm:$0xff]
    %v187 = vld [vmem:[#allocation8 + $0x528] sm:$0xff]
    %v188 = vld [vmem:[#allocation8 + $0x530] sm:$0xff]
    %v189 = vld [vmem:[#allocation8 + $0x538] sm:$0xff]
    %v190 = vld [vmem:[#allocation8 + $0x540] sm:$0xff]
    %v191 = vld [vmem:[#allocation8 + $0x548] sm:$0xff]
    %v192 = vld [vmem:[#allocation8 + $0x28] sm:$0xff]
    %v193 = vld [vmem:[#allocation8 + $0x30] sm:$0xff]
    %v194 = vld [vmem:[#allocation8 + $0x38] sm:$0xff]
    %v195 = vld [vmem:[#allocation8 + $0x80] sm:$0xff]
    %v196 = vld [vmem:[#allocation8 + $0x88] sm:$0xff]
    %v197 = vld [vmem:[#allocation8 + $0x90] sm:$0xff]
    %v198 = vld [vmem:[#allocation8 + $0xd8] sm:$0xff]
    %v199 = vld [vmem:[#allocation8 + $0xe0] sm:$0xff]
    %v200 = vld [vmem:[#allocation8 + $0xe8] sm:$0xff]
    %v201 = vld [vmem:[#allocation8 + $0x130] sm:$0xff]
    %v202 = vld [vmem:[#allocation8 + $0x138] sm:$0xff]
    %v203 = vld [vmem:[#allocation8 + $0x140] sm:$0xff]
    %v204 = vld [vmem:[#allocation8 + $0x188] sm:$0xff]
    %v205 = vld [vmem:[#allocation8 + $0x190] sm:$0xff]
    %v206 = vld [vmem:[#allocation8 + $0x198] sm:$0xff]
    %v207 = vld [vmem:[#allocation8 + $0x1e0] sm:$0xff]
    %v208 = vld [vmem:[#allocation8 + $0x1e8] sm:$0xff]
    %v209 = vld [vmem:[#allocation8 + $0x1f0] sm:$0xff]
    %v210 = vld [vmem:[#allocation8 + $0x238] sm:$0xff]
    %v211 = vld [vmem:[#allocation8 + $0x240] sm:$0xff]
    %v212 = vld [vmem:[#allocation8 + $0x248] sm:$0xff]
    %v213 = vld [vmem:[#allocation8 + $0x290] sm:$0xff]
    %v214 = vld [vmem:[#allocation8 + $0x298] sm:$0xff]
    %v215 = vld [vmem:[#allocation8 + $0x2a0] sm:$0xff]
    %v216 = vld [vmem:[#allocation8 + $0x2e8] sm:$0xff]
    %v217 = vld [vmem:[#allocation8 + $0x2f0] sm:$0xff]
    %v218 = vld [vmem:[#allocation8 + $0x2f8] sm:$0xff]
    %v219 = vld [vmem:[#allocation8 + $0x340] sm:$0xff]
    %v220 = vld [vmem:[#allocation8 + $0x348] sm:$0xff]
    %v221 = vld [vmem:[#allocation8 + $0x350] sm:$0xff]
    %v222 = vld [vmem:[#allocation8 + $0x398] sm:$0xff]
    %v223 = vld [vmem:[#allocation8 + $0x3a0] sm:$0xff]
    %v224 = vld [vmem:[#allocation8 + $0x3a8] sm:$0xff]
    %v225 = vld [vmem:[#allocation8 + $0x3f0] sm:$0xff]
    %v226 = vld [vmem:[#allocation8 + $0x3f8] sm:$0xff]
    %v227 = vld [vmem:[#allocation8 + $0x400] sm:$0xff]
    %v228 = vld [vmem:[#allocation8 + $0x448] sm:$0xff]
    %v229 = vld [vmem:[#allocation8 + $0x450] sm:$0xff]
    %v230 = vld [vmem:[#allocation8 + $0x458] sm:$0xff]
    %v231 = vld [vmem:[#allocation8 + $0x4a0] sm:$0xff]
    %v232 = vld [vmem:[#allocation8 + $0x4a8] sm:$0xff]
    %v233 = vld [vmem:[#allocation8 + $0x4b0] sm:$0xff]
    %v234 = vld [vmem:[#allocation8 + $0x4f8] sm:$0xff]
    %v235 = vld [vmem:[#allocation8 + $0x500] sm:$0xff]
    %v236 = vld [vmem:[#allocation8 + $0x508] sm:$0xff]
    %v237 = vld [vmem:[#allocation8 + $0x550] sm:$0xff]
    %v238 = vld [vmem:[#allocation8 + $0x558] sm:$0xff]
    %v239 = vld [vmem:[#allocation8 + $0x560] sm:$0xff]
    %v240 = vld [vmem:[#allocation8 + $0x40] sm:$0xff]
    %v241 = vld [vmem:[#allocation8 + $0x48] sm:$0xff]
    %v242 = vld [vmem:[#allocation8 + $0x50] sm:$0xff]
    %v243 = vld [vmem:[#allocation8 + $0x98] sm:$0xff]
    %v244 = vld [vmem:[#allocation8 + $0xa0] sm:$0xff]
    %v245 = vld [vmem:[#allocation8 + $0xa8] sm:$0xff]
    %v246 = vld [vmem:[#allocation8 + $0xf0] sm:$0xff]
    %v247 = vld [vmem:[#allocation8 + $0xf8] sm:$0xff]
    %v248 = vld [vmem:[#allocation8 + $0x100] sm:$0xff]
    %v249 = vld [vmem:[#allocation8 + $0x148] sm:$0xff]
    %v250 = vld [vmem:[#allocation8 + $0x150] sm:$0xff]
    %v251 = vld [vmem:[#allocation8 + $0x158] sm:$0xff]
    %v252 = vld [vmem:[#allocation8 + $0x1a0] sm:$0xff]
    %v253 = vld [vmem:[#allocation8 + $0x1a8] sm:$0xff]
    %v254 = vld [vmem:[#allocation8 + $0x1b0] sm:$0xff]
    %v255 = vld [vmem:[#allocation8 + $0x1f8] sm:$0xff]
    %v256 = vld [vmem:[#allocation8 + $0x200] sm:$0xff]
    %v257 = vld [vmem:[#allocation8 + $0x208] sm:$0xff]
    %v258 = vld [vmem:[#allocation8 + $0x250] sm:$0xff]
    %v259 = vld [vmem:[#allocation8 + $0x258] sm:$0xff]
    %v260 = vld [vmem:[#allocation8 + $0x260] sm:$0xff]
    %v261 = vld [vmem:[#allocation8 + $0x2a8] sm:$0xff]
    %v262 = vld [vmem:[#allocation8 + $0x2b0] sm:$0xff]
    %v263 = vld [vmem:[#allocation8 + $0x2b8] sm:$0xff]
    %v264 = vld [vmem:[#allocation8 + $0x300] sm:$0xff]
    %v265 = vld [vmem:[#allocation8 + $0x308] sm:$0xff]
    %v266 = vld [vmem:[#allocation8 + $0x310] sm:$0xff]
    %v267 = vld [vmem:[#allocation8 + $0x358] sm:$0xff]
    %v268 = vld [vmem:[#allocation8 + $0x360] sm:$0xff]
    %v269 = vld [vmem:[#allocation8 + $0x368] sm:$0xff]
    %v270 = vld [vmem:[#allocation8 + $0x3b0] sm:$0xff]
    %v271 = vld [vmem:[#allocation8 + $0x3b8] sm:$0xff]
    %v272 = vld [vmem:[#allocation8 + $0x3c0] sm:$0xff]
    %v273 = vld [vmem:[#allocation8 + $0x408] sm:$0xff]
    %v274 = vld [vmem:[#allocation8 + $0x410] sm:$0xff]
    %v275 = vld [vmem:[#allocation8 + $0x418] sm:$0xff]
    %v276 = vld [vmem:[#allocation8 + $0x460] sm:$0xff]
    %v277 = vld [vmem:[#allocation8 + $0x468] sm:$0xff]
    %v278 = vld [vmem:[#allocation8 + $0x470] sm:$0xff]
    %v279 = vld [vmem:[#allocation8 + $0x4b8] sm:$0xff]
    %v280 = vld [vmem:[#allocation8 + $0x4c0] sm:$0xff]
    %v281 = vld [vmem:[#allocation8 + $0x4c8] sm:$0xff]
    %v282 = vld [vmem:[#allocation8 + $0x510] sm:$0xff]
    %v283 = vld [vmem:[#allocation8 + $0x518] sm:$0xff]
    %v284 = vld [vmem:[#allocation8 + $0x520] sm:$0xff]
    %v285 = vld [vmem:[#allocation8 + $0x568] sm:$0xff]
    %v286 = vld [vmem:[#allocation8 + $0x570] sm:$0xff]
    %v287 = vld [vmem:[#allocation8 + $0x578] sm:$0xff]
    %v288 = vld [vmem:[#allocation7] sm:$0xff]
    %v289 = vld [vmem:[#allocation7 + $0x8] sm:$0xff]
    %v290 = vld [vmem:[#allocation7 + $0x10] sm:$0xff]
    %v291 = vld [vmem:[#allocation7 + $0x18] sm:$0xff]
    %v292 = vld [vmem:[#allocation7 + $0x20] sm:$0xff]
    %v293 = vld [vmem:[#allocation7 + $0x28] sm:$0xff]
    %294 = vmatprep.subr.mxu0 %v188
    %295 = vmatpush1.msra.mxu0 %v187
    %296 = vmatprep.subr.mxu0 %v183
    %297 = vmatpush1.msra.mxu0 %v182
    %298 = vmatprep.subr.mxu0 %v178
    %299 = vmatpush1.msra.mxu0 %v177
    %300 = vmatprep.subr.mxu0 %v173
    %301 = vmatpush1.msra.mxu0 %v172
    %302 = vmatprep.subr.mxu0 %v168
    %303 = vmatpush1.msra.mxu0 %v167
    %304 = vmatprep.subr.mxu0 %v163
    %305 = vmatpush1.msra.mxu0 %v162
    %306 = vmatprep.subr.mxu0 %v158
    %307 = vmatpush1.msra.mxu0 %v157
    %308 = vmatprep.subr.mxu0 %v153
    %309 = vmatpush1.msra.mxu0 %v152
    %310 = vmatprep.subr.mxu0 %v148
    %311 = vmatpush1.msra.mxu0 %v147
    %312 = vmatprep.subr.mxu0 %v143
    %313 = vmatpush1.msra.mxu0 %v142
    %314 = vmatprep.subr.mxu0 %v138
    %315 = vmatpush1.msra.mxu0 %v137
    %316 = vmatprep.subr.mxu0 %v133
    %317 = vmatpush1.msra.mxu0 %v132
    %318 = vmatprep.subr.mxu0 %v128
    %319 = vmatpush1.msra.mxu0 %v127
    %320 = vmatprep.subr.mxu0 %v123
    %321 = vmatpush1.msra.mxu0 %v122
    %322 = vmatprep.subr.mxu0 %v118
    %323 = vmatpush1.msra.mxu0 %v117
    %324 = vmatprep.subr.mxu0 %v113
    %325 = vmatpush1.msra.mxu0 %v112
    %326 = vmatprep.subr.mxu0 0.0
    %327 = vmatpush2.msra.mxu0 0.0
    %328 = vmatprep.subr.mxu0 0.0
    %329 = vmatpush2.msra.mxu0 0.0
    %330 = vmatprep.subr.mxu0 0.0
    %331 = vmatpush2.msra.mxu0 0.0
    %332 = vmatprep.subr.mxu0 0.0
    %333 = vmatpush2.msra.mxu0 0.0
    %334 = vmatprep.subr.mxu0 0.0
    %335 = vmatpush2.msra.mxu0 0.0
    %336 = vmatprep.subr.mxu0 0.0
    %337 = vmatpush2.msra.mxu0 0.0
    %338 = vmatprep.subr.mxu0 0.0
    %339 = vmatpush2.msra.mxu0 0.0
    %340 = vmatprep.subr.mxu0 0.0
    %341 = vmatpush2.msra.mxu0 0.0
    %342 = vmatprep.subr.mxu0 0.0
    %343 = vmatpush2.msra.mxu0 0.0
    %344 = vmatprep.subr.mxu0 0.0
    %345 = vmatpush2.msra.mxu0 0.0
    %346 = vmatprep.subr.mxu0 0.0
    %347 = vmatpush2.msra.mxu0 0.0
    %348 = vmatprep.subr.mxu0 0.0
    %349 = vmatpush2.msra.mxu0 0.0
    %350 = vmatprep.subr.mxu0 0.0
    %351 = vmatpush2.msra.mxu0 0.0
    %352 = vmatprep.subr.mxu0 0.0
    %353 = vmatpush2.msra.mxu0 0.0
    %354 = vmatprep.subr.mxu0 0.0
    %355 = vmatpush2.msra.mxu0 0.0
    %356 = vmatprep.subr.mxu0 0.0
    %357 = vmatpush2.msra.mxu0 0.0
    %358 = vmatprep.mubr.f32.mxu0 0.0
    %359 = vmatmul.mubr.f32.gmra.mxu0 %v288
    %v360 = vpop.f32.mrf.mxu0
    %v361 = vadd.f32 0.0, %v360
    %v362 = vpop.f32.mrf.mxu0
    %v363 = vadd.f32 0.0, %v362
    %364 = vmatprep.mubr.f32.mxu0 0.0
    %365 = vmatmul.mubr.f32.gmra.mxu0 %v289
    %v366 = vpop.f32.mrf.mxu0
    %v367 = vadd.f32 0.0, %v366
    %v368 = vpop.f32.mrf.mxu0
    %v369 = vadd.f32 0.0, %v368
    %370 = vmatprep.mubr.f32.mxu0 0.0
    %371 = vmatmul.mubr.f32.gmra.mxu0 %v290
    %v372 = vpop.f32.mrf.mxu0
    %v373 = vadd.f32 0.0, %v372
    %v374 = vpop.f32.mrf.mxu0
    %v375 = vadd.f32 0.0, %v374
    %376 = vmatprep.mubr.f32.mxu0 0.0
    %377 = vmatmul.mubr.f32.gmra.mxu0 %v291
    %v378 = vpop.f32.mrf.mxu0
    %v379 = vadd.f32 0.0, %v378
    %v380 = vpop.f32.mrf.mxu0
    %v381 = vadd.f32 0.0, %v380
    %382 = vmatprep.mubr.f32.mxu0 0.0
    %383 = vmatmul.mubr.f32.gmra.mxu0 %v292
    %v384 = vpop.f32.mrf.mxu0
    %v385 = vadd.f32 0.0, %v384
    %v386 = vpop.f32.mrf.mxu0
    %v387 = vadd.f32 0.0, %v386
    %388 = vmatprep.mubr.f32.mxu0 0.0
    %389 = vmatmul.mubr.f32.gmra.mxu0 %v293
    %v390 = vpop.f32.mrf.mxu0
    %v391 = vadd.f32 0.0, %v390
    %v392 = vpop.f32.mrf.mxu0
    %v393 = vadd.f32 0.0, %v392
    %394 = vdwg.mxu0
    %395 = vmatprep.subr.mxu0 %v190
    %396 = vmatpush1.msra.mxu0 %v189
    %397 = vmatprep.subr.mxu0 %v185
    %398 = vmatpush1.msra.mxu0 %v184
    %399 = vmatprep.subr.mxu0 %v180
    %400 = vmatpush1.msra.mxu0 %v179
    %401 = vmatprep.subr.mxu0 %v175
    %402 = vmatpush1.msra.mxu0 %v174
    %403 = vmatprep.subr.mxu0 %v170
    %404 = vmatpush1.msra.mxu0 %v169
    %405 = vmatprep.subr.mxu0 %v165
    %406 = vmatpush1.msra.mxu0 %v164
    %407 = vmatprep.subr.mxu0 %v160
    %408 = vmatpush1.msra.mxu0 %v159
    %409 = vmatprep.subr.mxu0 %v155
    %410 = vmatpush1.msra.mxu0 %v154
    %411 = vmatprep.subr.mxu0 %v150
    %412 = vmatpush1.msra.mxu0 %v149
    %413 = vmatprep.subr.mxu0 %v145
    %414 = vmatpush1.msra.mxu0 %v144
    %415 = vmatprep.subr.mxu0 %v140
    %416 = vmatpush1.msra.mxu0 %v139
    %417 = vmatprep.subr.mxu0 %v135
    %418 = vmatpush1.msra.mxu0 %v134
    %419 = vmatprep.subr.mxu0 %v130
    %420 = vmatpush1.msra.mxu0 %v129
    %421 = vmatprep.subr.mxu0 %v125
    %422 = vmatpush1.msra.mxu0 %v124
    %423 = vmatprep.subr.mxu0 %v120
    %424 = vmatpush1.msra.mxu0 %v119
    %425 = vmatprep.subr.mxu0 %v115
    %426 = vmatpush1.msra.mxu0 %v114
    %427 = vmatprep.subr.mxu0 0.0
    %428 = vmatpush2.msra.mxu0 0.0
    %429 = vmatprep.subr.mxu0 0.0
    %430 = vmatpush2.msra.mxu0 0.0
    %431 = vmatprep.subr.mxu0 0.0
    %432 = vmatpush2.msra.mxu0 0.0
    %433 = vmatprep.subr.mxu0 0.0
    %434 = vmatpush2.msra.mxu0 0.0
    %435 = vmatprep.subr.mxu0 0.0
    %436 = vmatpush2.msra.mxu0 0.0
    %437 = vmatprep.subr.mxu0 0.0
    %438 = vmatpush2.msra.mxu0 0.0
    %439 = vmatprep.subr.mxu0 0.0
    %440 = vmatpush2.msra.mxu0 0.0
    %441 = vmatprep.subr.mxu0 0.0
    %442 = vmatpush2.msra.mxu0 0.0
    %443 = vmatprep.subr.mxu0 0.0
    %444 = vmatpush2.msra.mxu0 0.0
    %445 = vmatprep.subr.mxu0 0.0
    %446 = vmatpush2.msra.mxu0 0.0
    %447 = vmatprep.subr.mxu0 0.0
    %448 = vmatpush2.msra.mxu0 0.0
    %449 = vmatprep.subr.mxu0 0.0
    %450 = vmatpush2.msra.mxu0 0.0
    %451 = vmatprep.subr.mxu0 0.0
    %452 = vmatpush2.msra.mxu0 0.0
    %453 = vmatprep.subr.mxu0 0.0
    %454 = vmatpush2.msra.mxu0 0.0
    %455 = vmatprep.subr.mxu0 0.0
    %456 = vmatpush2.msra.mxu0 0.0
    %457 = vmatprep.subr.mxu0 0.0
    %458 = vmatpush2.msra.mxu0 0.0
    %459 = vmatprep.mubr.f32.mxu0 0.0
    %460 = vmatmul.mubr.f32.gmra.mxu0 %v288
    %v461 = vpop.f32.mrf.mxu0
    %v462 = vadd.f32 0.0, %v461
    %v463 = vpop.f32.mrf.mxu0
    %v464 = vadd.f32 0.0, %v463
    %465 = vmatprep.mubr.f32.mxu0 0.0
    %466 = vmatmul.mubr.f32.gmra.mxu0 %v289
    %v467 = vpop.f32.mrf.mxu0
    %v468 = vadd.f32 0.0, %v467
    %v469 = vpop.f32.mrf.mxu0
    %v470 = vadd.f32 0.0, %v469
    %471 = vmatprep.mubr.f32.mxu0 0.0
    %472 = vmatmul.mubr.f32.gmra.mxu0 %v290
    %v473 = vpop.f32.mrf.mxu0
    %v474 = vadd.f32 0.0, %v473
    %v475 = vpop.f32.mrf.mxu0
    %v476 = vadd.f32 0.0, %v475
    %477 = vmatprep.mubr.f32.mxu0 0.0
    %478 = vmatmul.mubr.f32.gmra.mxu0 %v291
    %v479 = vpop.f32.mrf.mxu0
    %v480 = vadd.f32 0.0, %v479
    %v481 = vpop.f32.mrf.mxu0
    %v482 = vadd.f32 0.0, %v481
    %483 = vmatprep.mubr.f32.mxu0 0.0
    %484 = vmatmul.mubr.f32.gmra.mxu0 %v292
    %v485 = vpop.f32.mrf.mxu0
    %v486 = vadd.f32 0.0, %v485
    %v487 = vpop.f32.mrf.mxu0
    %v488 = vadd.f32 0.0, %v487
    %489 = vmatprep.mubr.f32.mxu0 0.0
    %490 = vmatmul.mubr.f32.gmra.mxu0 %v293
    %v491 = vpop.f32.mrf.mxu0
    %v492 = vadd.f32 0.0, %v491
    %v493 = vpop.f32.mrf.mxu0
    %v494 = vadd.f32 0.0, %v493
    %495 = vdwg.mxu0
    %496 = vmatprep.subr.mxu0 0.0
    %497 = vmatpush1.msra.mxu0 %v191
    %498 = vmatprep.subr.mxu0 0.0
    %499 = vmatpush1.msra.mxu0 %v186
    %500 = vmatprep.subr.mxu0 0.0
    %501 = vmatpush1.msra.mxu0 %v181
    %502 = vmatprep.subr.mxu0 0.0
    %503 = vmatpush1.msra.mxu0 %v176
    %504 = vmatprep.subr.mxu0 0.0
    %505 = vmatpush1.msra.mxu0 %v171
    %506 = vmatprep.subr.mxu0 0.0
    %507 = vmatpush1.msra.mxu0 %v166
    %508 = vmatprep.subr.mxu0 0.0
    %509 = vmatpush1.msra.mxu0 %v161
    %510 = vmatprep.subr.mxu0 0.0
    %511 = vmatpush1.msra.mxu0 %v156
    %512 = vmatprep.subr.mxu0 0.0
    %513 = vmatpush1.msra.mxu0 %v151
    %514 = vmatprep.subr.mxu0 0.0
    %515 = vmatpush1.msra.mxu0 %v146
    %516 = vmatprep.subr.mxu0 0.0
    %517 = vmatpush1.msra.mxu0 %v141
    %518 = vmatprep.subr.mxu0 0.0
    %519 = vmatpush1.msra.mxu0 %v136
    %520 = vmatprep.subr.mxu0 0.0
    %521 = vmatpush1.msra.mxu0 %v131
    %522 = vmatprep.subr.mxu0 0.0
    %523 = vmatpush1.msra.mxu0 %v126
    %524 = vmatprep.subr.mxu0 0.0
    %525 = vmatpush1.msra.mxu0 %v121
    %526 = vmatprep.subr.mxu0 0.0
    %527 = vmatpush1.msra.mxu0 %v116
    %528 = vmatprep.subr.mxu0 0.0
    %529 = vmatpush2.msra.mxu0 0.0
    %530 = vmatprep.subr.mxu0 0.0
    %531 = vmatpush2.msra.mxu0 0.0
    %532 = vmatprep.subr.mxu0 0.0
    %533 = vmatpush2.msra.mxu0 0.0
    %534 = vmatprep.subr.mxu0 0.0
    %535 = vmatpush2.msra.mxu0 0.0
    %536 = vmatprep.subr.mxu0 0.0
    %537 = vmatpush2.msra.mxu0 0.0
    %538 = vmatprep.subr.mxu0 0.0
    %539 = vmatpush2.msra.mxu0 0.0
    %540 = vmatprep.subr.mxu0 0.0
    %541 = vmatpush2.msra.mxu0 0.0
    %542 = vmatprep.subr.mxu0 0.0
    %543 = vmatpush2.msra.mxu0 0.0
    %544 = vmatprep.subr.mxu0 0.0
    %545 = vmatpush2.msra.mxu0 0.0
    %546 = vmatprep.subr.mxu0 0.0
    %547 = vmatpush2.msra.mxu0 0.0
    %548 = vmatprep.subr.mxu0 0.0
    %549 = vmatpush2.msra.mxu0 0.0
    %550 = vmatprep.subr.mxu0 0.0
    %551 = vmatpush2.msra.mxu0 0.0
    %552 = vmatprep.subr.mxu0 0.0
    %553 = vmatpush2.msra.mxu0 0.0
    %554 = vmatprep.subr.mxu0 0.0
    %555 = vmatpush2.msra.mxu0 0.0
    %556 = vmatprep.subr.mxu0 0.0
    %557 = vmatpush2.msra.mxu0 0.0
    %558 = vmatprep.subr.mxu0 0.0
    %559 = vmatpush2.msra.mxu0 0.0
    %560 = vmatprep.mubr.f32.mxu0 0.0
    %561 = vmatmul.mubr.f32.gmra.mxu0 %v288
    %v562 = vpop.f32.mrf.mxu0
    %v563 = vadd.f32 0.0, %v562
    %v564 = vpop.f32.mrf.mxu0
    %565 = vmatprep.mubr.f32.mxu0 0.0
    %566 = vmatmul.mubr.f32.gmra.mxu0 %v289
    %v567 = vpop.f32.mrf.mxu0
    %v568 = vadd.f32 0.0, %v567
    %v569 = vpop.f32.mrf.mxu0
    %570 = vmatprep.mubr.f32.mxu0 0.0
    %571 = vmatmul.mubr.f32.gmra.mxu0 %v290
    %v572 = vpop.f32.mrf.mxu0
    %v573 = vadd.f32 0.0, %v572
    %v574 = vpop.f32.mrf.mxu0
    %575 = vmatprep.mubr.f32.mxu0 0.0
    %576 = vmatmul.mubr.f32.gmra.mxu0 %v291
    %v577 = vpop.f32.mrf.mxu0
    %v578 = vadd.f32 0.0, %v577
    %v579 = vpop.f32.mrf.mxu0
    %580 = vmatprep.mubr.f32.mxu0 0.0
    %581 = vmatmul.mubr.f32.gmra.mxu0 %v292
    %v582 = vpop.f32.mrf.mxu0
    %v583 = vadd.f32 0.0, %v582
    %v584 = vpop.f32.mrf.mxu0
    %585 = vmatprep.mubr.f32.mxu0 0.0
    %586 = vmatmul.mubr.f32.gmra.mxu0 %v293
    %v587 = vpop.f32.mrf.mxu0
    %v588 = vadd.f32 0.0, %v587
    %v589 = vpop.f32.mrf.mxu0
    %590 = vdwg.mxu0
    %v591 = vlaneseq
    %v592 = vshrl.u32 %v591, 7
    %v593 = vsub.s32 0, %v592
    %v594 = vrot.slane %v111, %v593
    %v595 = vadd.f32 %v361, %v594
    %v596 = vadd.f32 %v367, %v594
    %v597 = vadd.f32 %v373, %v594
    %v598 = vadd.f32 %v379, %v594
    %v599 = vadd.f32 %v385, %v594
    %v600 = vadd.f32 %v391, %v594
    %v601 = vlaneseq
    %v602 = vshrl.u32 %v601, 7
    %v603 = vsub.s32 1, %v602
    %v604 = vrot.slane %v111, %v603
    %v605 = vadd.f32 %v363, %v604
    %v606 = vadd.f32 %v369, %v604
    %v607 = vadd.f32 %v375, %v604
    %v608 = vadd.f32 %v381, %v604
    %v609 = vadd.f32 %v387, %v604
    %v610 = vadd.f32 %v393, %v604
    %612 = vset.pattern.permute.xlu0 0
    %613 = vperm.xlu0 %612, %v93
    %v614 = vpop.permute.xlu0 %613
    %617 = vset.pattern.permute.xlu0 0
    %618 = vperm.xlu0 %617, %v94
    %v619 = vpop.permute.xlu0 %618
    %622 = vset.pattern.permute.xlu0 0
    %623 = vperm.xlu0 %622, %v95
    %v624 = vpop.permute.xlu0 %623
    %627 = vset.pattern.permute.xlu0 0
    %628 = vperm.xlu0 %627, %v96
    %v629 = vpop.permute.xlu0 %628
    %632 = vset.pattern.permute.xlu0 0
    %633 = vperm.xlu0 %632, %v97
    %v634 = vpop.permute.xlu0 %633
    %637 = vset.pattern.permute.xlu0 0
    %638 = vperm.xlu0 %637, %v98
    %v639 = vpop.permute.xlu0 %638
    %v641 = vlaneseq
    %v642 = vshrl.u32 %v641, 7
    %v643 = vsub.s32 0, %v642
    %v644 = vrot.slane %v595, %v643
    %v645 = vlaneseq
    %v646 = vshrl.u32 %v645, 7
    %v647 = vsub.s32 0, %v646
    %v648 = vrot.slane %v596, %v647
    %v649 = vlaneseq
    %v650 = vshrl.u32 %v649, 7
    %v651 = vsub.s32 0, %v650
    %v652 = vrot.slane %v597, %v651
    %v653 = vlaneseq
    %v654 = vshrl.u32 %v653, 7
    %v655 = vsub.s32 0, %v654
    %v656 = vrot.slane %v598, %v655
    %v657 = vlaneseq
    %v658 = vshrl.u32 %v657, 7
    %v659 = vsub.s32 0, %v658
    %v660 = vrot.slane %v599, %v659
    %v661 = vlaneseq
    %v662 = vshrl.u32 %v661, 7
    %v663 = vsub.s32 0, %v662
    %v664 = vrot.slane %v600, %v663
    %v665 = vmul.f32 %v614, %v644
    %v666 = vmul.f32 %v619, %v648
    %v667 = vmul.f32 %v624, %v652
    %v668 = vmul.f32 %v629, %v656
    %v669 = vmul.f32 %v634, %v660
    %v670 = vmul.f32 %v639, %v664
    %671 = vset.pattern.permute.xlu0 1
    %672 = vperm.xlu0 %671, %v93
    %v673 = vpop.permute.xlu0 %672
    %675 = vset.pattern.permute.xlu0 1
    %676 = vperm.xlu0 %675, %v94
    %v677 = vpop.permute.xlu0 %676
    %679 = vset.pattern.permute.xlu0 1
    %680 = vperm.xlu0 %679, %v95
    %v681 = vpop.permute.xlu0 %680
    %683 = vset.pattern.permute.xlu0 1
    %684 = vperm.xlu0 %683, %v96
    %v685 = vpop.permute.xlu0 %684
    %687 = vset.pattern.permute.xlu0 1
    %688 = vperm.xlu0 %687, %v97
    %v689 = vpop.permute.xlu0 %688
    %691 = vset.pattern.permute.xlu0 1
    %692 = vperm.xlu0 %691, %v98
    %v693 = vpop.permute.xlu0 %692
    %v695 = vlaneseq
    %v696 = vshrl.u32 %v695, 7
    %v697 = vsub.s32 1, %v696
    %v698 = vrot.slane %v595, %v697
    %v699 = vlaneseq
    %v700 = vshrl.u32 %v699, 7
    %v701 = vsub.s32 1, %v700
    %v702 = vrot.slane %v596, %v701
    %v703 = vlaneseq
    %v704 = vshrl.u32 %v703, 7
    %v705 = vsub.s32 1, %v704
    %v706 = vrot.slane %v597, %v705
    %v707 = vlaneseq
    %v708 = vshrl.u32 %v707, 7
    %v709 = vsub.s32 1, %v708
    %v710 = vrot.slane %v598, %v709
    %v711 = vlaneseq
    %v712 = vshrl.u32 %v711, 7
    %v713 = vsub.s32 1, %v712
    %v714 = vrot.slane %v599, %v713
    %v715 = vlaneseq
    %v716 = vshrl.u32 %v715, 7
    %v717 = vsub.s32 1, %v716
    %v718 = vrot.slane %v600, %v717
    %v719 = vmul.f32 %v673, %v698
    %v720 = vmul.f32 %v677, %v702
    %v721 = vmul.f32 %v681, %v706
    %v722 = vmul.f32 %v685, %v710
    %v723 = vmul.f32 %v689, %v714
    %v724 = vmul.f32 %v693, %v718
    %v725 = vadd.f32 %v665, %v719
    %v726 = vadd.f32 %v666, %v720
    %v727 = vadd.f32 %v667, %v721
    %v728 = vadd.f32 %v668, %v722
    %v729 = vadd.f32 %v669, %v723
    %v730 = vadd.f32 %v670, %v724
    %731 = vset.pattern.permute.xlu0 2
    %732 = vperm.xlu0 %731, %v93
    %v733 = vpop.permute.xlu0 %732
    %735 = vset.pattern.permute.xlu0 2
    %736 = vperm.xlu0 %735, %v94
    %v737 = vpop.permute.xlu0 %736
    %739 = vset.pattern.permute.xlu0 2
    %740 = vperm.xlu0 %739, %v95
    %v741 = vpop.permute.xlu0 %740
    %743 = vset.pattern.permute.xlu0 2
    %744 = vperm.xlu0 %743, %v96
    %v745 = vpop.permute.xlu0 %744
    %747 = vset.pattern.permute.xlu0 2
    %748 = vperm.xlu0 %747, %v97
    %v749 = vpop.permute.xlu0 %748
    %751 = vset.pattern.permute.xlu0 2
    %752 = vperm.xlu0 %751, %v98
    %v753 = vpop.permute.xlu0 %752
    %v755 = vlaneseq
    %v756 = vshrl.u32 %v755, 7
    %v757 = vsub.s32 2, %v756
    %v758 = vrot.slane %v595, %v757
    %v759 = vlaneseq
    %v760 = vshrl.u32 %v759, 7
    %v761 = vsub.s32 2, %v760
    %v762 = vrot.slane %v596, %v761
    %v763 = vlaneseq
    %v764 = vshrl.u32 %v763, 7
    %v765 = vsub.s32 2, %v764
    %v766 = vrot.slane %v597, %v765
    %v767 = vlaneseq
    %v768 = vshrl.u32 %v767, 7
    %v769 = vsub.s32 2, %v768
    %v770 = vrot.slane %v598, %v769
    %v771 = vlaneseq
    %v772 = vshrl.u32 %v771, 7
    %v773 = vsub.s32 2, %v772
    %v774 = vrot.slane %v599, %v773
    %v775 = vlaneseq
    %v776 = vshrl.u32 %v775, 7
    %v777 = vsub.s32 2, %v776
    %v778 = vrot.slane %v600, %v777
    %v779 = vmul.f32 %v733, %v758
    %v780 = vmul.f32 %v737, %v762
    %v781 = vmul.f32 %v741, %v766
    %v782 = vmul.f32 %v745, %v770
    %v783 = vmul.f32 %v749, %v774
    %v784 = vmul.f32 %v753, %v778
    %v785 = vadd.f32 %v725, %v779
    %v786 = vadd.f32 %v726, %v780
    %v787 = vadd.f32 %v727, %v781
    %v788 = vadd.f32 %v728, %v782
    %v789 = vadd.f32 %v729, %v783
    %v790 = vadd.f32 %v730, %v784
    %791 = vset.pattern.permute.xlu0 3
    %792 = vperm.xlu0 %791, %v93
    %v793 = vpop.permute.xlu0 %792
    %795 = vset.pattern.permute.xlu0 3
    %796 = vperm.xlu0 %795, %v94
    %v797 = vpop.permute.xlu0 %796
    %799 = vset.pattern.permute.xlu0 3
    %800 = vperm.xlu0 %799, %v95
    %v801 = vpop.permute.xlu0 %800
    %803 = vset.pattern.permute.xlu0 3
    %804 = vperm.xlu0 %803, %v96
    %v805 = vpop.permute.xlu0 %804
    %807 = vset.pattern.permute.xlu0 3
    %808 = vperm.xlu0 %807, %v97
    %v809 = vpop.permute.xlu0 %808
    %811 = vset.pattern.permute.xlu0 3
    %812 = vperm.xlu0 %811, %v98
    %v813 = vpop.permute.xlu0 %812
    %v815 = vlaneseq
    %v816 = vshrl.u32 %v815, 7
    %v817 = vsub.s32 3, %v816
    %v818 = vrot.slane %v595, %v817
    %v819 = vlaneseq
    %v820 = vshrl.u32 %v819, 7
    %v821 = vsub.s32 3, %v820
    %v822 = vrot.slane %v596, %v821
    %v823 = vlaneseq
    %v824 = vshrl.u32 %v823, 7
    %v825 = vsub.s32 3, %v824
    %v826 = vrot.slane %v597, %v825
    %v827 = vlaneseq
    %v828 = vshrl.u32 %v827, 7
    %v829 = vsub.s32 3, %v828
    %v830 = vrot.slane %v598, %v829
    %v831 = vlaneseq
    %v832 = vshrl.u32 %v831, 7
    %v833 = vsub.s32 3, %v832
    %v834 = vrot.slane %v599, %v833
    %v835 = vlaneseq
    %v836 = vshrl.u32 %v835, 7
    %v837 = vsub.s32 3, %v836
    %v838 = vrot.slane %v600, %v837
    %v839 = vmul.f32 %v793, %v818
    %v840 = vmul.f32 %v797, %v822
    %v841 = vmul.f32 %v801, %v826
    %v842 = vmul.f32 %v805, %v830
    %v843 = vmul.f32 %v809, %v834
    %v844 = vmul.f32 %v813, %v838
    %v845 = vadd.f32 %v785, %v839
    %v846 = vadd.f32 %v786, %v840
    %v847 = vadd.f32 %v787, %v841
    %v848 = vadd.f32 %v788, %v842
    %v849 = vadd.f32 %v789, %v843
    %v850 = vadd.f32 %v790, %v844
    %851 = vset.pattern.permute.xlu0 4
    %852 = vperm.xlu0 %851, %v93
    %v853 = vpop.permute.xlu0 %852
    %855 = vset.pattern.permute.xlu0 4
    %856 = vperm.xlu0 %855, %v94
    %v857 = vpop.permute.xlu0 %856
    %859 = vset.pattern.permute.xlu0 4
    %860 = vperm.xlu0 %859, %v95
    %v861 = vpop.permute.xlu0 %860
    %863 = vset.pattern.permute.xlu0 4
    %864 = vperm.xlu0 %863, %v96
    %v865 = vpop.permute.xlu0 %864
    %867 = vset.pattern.permute.xlu0 4
    %868 = vperm.xlu0 %867, %v97
    %v869 = vpop.permute.xlu0 %868
    %871 = vset.pattern.permute.xlu0 4
    %872 = vperm.xlu0 %871, %v98
    %v873 = vpop.permute.xlu0 %872
    %v875 = vlaneseq
    %v876 = vshrl.u32 %v875, 7
    %v877 = vsub.s32 4, %v876
    %v878 = vrot.slane %v595, %v877
    %v879 = vlaneseq
    %v880 = vshrl.u32 %v879, 7
    %v881 = vsub.s32 4, %v880
    %v882 = vrot.slane %v596, %v881
    %v883 = vlaneseq
    %v884 = vshrl.u32 %v883, 7
    %v885 = vsub.s32 4, %v884
    %v886 = vrot.slane %v597, %v885
    %v887 = vlaneseq
    %v888 = vshrl.u32 %v887, 7
    %v889 = vsub.s32 4, %v888
    %v890 = vrot.slane %v598, %v889
    %v891 = vlaneseq
    %v892 = vshrl.u32 %v891, 7
    %v893 = vsub.s32 4, %v892
    %v894 = vrot.slane %v599, %v893
    %v895 = vlaneseq
    %v896 = vshrl.u32 %v895, 7
    %v897 = vsub.s32 4, %v896
    %v898 = vrot.slane %v600, %v897
    %v899 = vmul.f32 %v853, %v878
    %v900 = vmul.f32 %v857, %v882
    %v901 = vmul.f32 %v861, %v886
    %v902 = vmul.f32 %v865, %v890
    %v903 = vmul.f32 %v869, %v894
    %v904 = vmul.f32 %v873, %v898
    %v905 = vadd.f32 %v845, %v899
    %v906 = vadd.f32 %v846, %v900
    %v907 = vadd.f32 %v847, %v901
    %v908 = vadd.f32 %v848, %v902
    %v909 = vadd.f32 %v849, %v903
    %v910 = vadd.f32 %v850, %v904
    %911 = vset.pattern.permute.xlu0 5
    %912 = vperm.xlu0 %911, %v93
    %v913 = vpop.permute.xlu0 %912
    %915 = vset.pattern.permute.xlu0 5
    %916 = vperm.xlu0 %915, %v94
    %v917 = vpop.permute.xlu0 %916
    %919 = vset.pattern.permute.xlu0 5
    %920 = vperm.xlu0 %919, %v95
    %v921 = vpop.permute.xlu0 %920
    %923 = vset.pattern.permute.xlu0 5
    %924 = vperm.xlu0 %923, %v96
    %v925 = vpop.permute.xlu0 %924
    %927 = vset.pattern.permute.xlu0 5
    %928 = vperm.xlu0 %927, %v97
    %v929 = vpop.permute.xlu0 %928
    %931 = vset.pattern.permute.xlu0 5
    %932 = vperm.xlu0 %931, %v98
    %v933 = vpop.permute.xlu0 %932
    %v935 = vlaneseq
    %v936 = vshrl.u32 %v935, 7
    %v937 = vsub.s32 5, %v936
    %v938 = vrot.slane %v595, %v937
    %v939 = vlaneseq
    %v940 = vshrl.u32 %v939, 7
    %v941 = vsub.s32 5, %v940
    %v942 = vrot.slane %v596, %v941
    %v943 = vlaneseq
    %v944 = vshrl.u32 %v943, 7
    %v945 = vsub.s32 5, %v944
    %v946 = vrot.slane %v597, %v945
    %v947 = vlaneseq
    %v948 = vshrl.u32 %v947, 7
    %v949 = vsub.s32 5, %v948
    %v950 = vrot.slane %v598, %v949
    %v951 = vlaneseq
    %v952 = vshrl.u32 %v951, 7
    %v953 = vsub.s32 5, %v952
    %v954 = vrot.slane %v599, %v953
    %v955 = vlaneseq
    %v956 = vshrl.u32 %v955, 7
    %v957 = vsub.s32 5, %v956
    %v958 = vrot.slane %v600, %v957
    %v959 = vmul.f32 %v913, %v938
    %v960 = vmul.f32 %v917, %v942
    %v961 = vmul.f32 %v921, %v946
    %v962 = vmul.f32 %v925, %v950
    %v963 = vmul.f32 %v929, %v954
    %v964 = vmul.f32 %v933, %v958
    %v965 = vadd.f32 %v905, %v959
    %v966 = vadd.f32 %v906, %v960
    %v967 = vadd.f32 %v907, %v961
    %v968 = vadd.f32 %v908, %v962
    %v969 = vadd.f32 %v909, %v963
    %v970 = vadd.f32 %v910, %v964
    %971 = vset.pattern.permute.xlu0 6
    %972 = vperm.xlu0 %971, %v93
    %v973 = vpop.permute.xlu0 %972
    %975 = vset.pattern.permute.xlu0 6
    %976 = vperm.xlu0 %975, %v94
    %v977 = vpop.permute.xlu0 %976
    %979 = vset.pattern.permute.xlu0 6
    %980 = vperm.xlu0 %979, %v95
    %v981 = vpop.permute.xlu0 %980
    %983 = vset.pattern.permute.xlu0 6
    %984 = vperm.xlu0 %983, %v96
    %v985 = vpop.permute.xlu0 %984
    %987 = vset.pattern.permute.xlu0 6
    %988 = vperm.xlu0 %987, %v97
    %v989 = vpop.permute.xlu0 %988
    %991 = vset.pattern.permute.xlu0 6
    %992 = vperm.xlu0 %991, %v98
    %v993 = vpop.permute.xlu0 %992
    %v995 = vlaneseq
    %v996 = vshrl.u32 %v995, 7
    %v997 = vsub.s32 6, %v996
    %v998 = vrot.slane %v595, %v997
    %v999 = vlaneseq
    %v1000 = vshrl.u32 %v999, 7
    %v1001 = vsub.s32 6, %v1000
    %v1002 = vrot.slane %v596, %v1001
    %v1003 = vlaneseq
    %v1004 = vshrl.u32 %v1003, 7
    %v1005 = vsub.s32 6, %v1004
    %v1006 = vrot.slane %v597, %v1005
    %v1007 = vlaneseq
    %v1008 = vshrl.u32 %v1007, 7
    %v1009 = vsub.s32 6, %v1008
    %v1010 = vrot.slane %v598, %v1009
    %v1011 = vlaneseq
    %v1012 = vshrl.u32 %v1011, 7
    %v1013 = vsub.s32 6, %v1012
    %v1014 = vrot.slane %v599, %v1013
    %v1015 = vlaneseq
    %v1016 = vshrl.u32 %v1015, 7
    %v1017 = vsub.s32 6, %v1016
    %v1018 = vrot.slane %v600, %v1017
    %v1019 = vmul.f32 %v973, %v998
    %v1020 = vmul.f32 %v977, %v1002
    %v1021 = vmul.f32 %v981, %v1006
    %v1022 = vmul.f32 %v985, %v1010
    %v1023 = vmul.f32 %v989, %v1014
    %v1024 = vmul.f32 %v993, %v1018
    %v1025 = vadd.f32 %v965, %v1019
    %v1026 = vadd.f32 %v966, %v1020
    %v1027 = vadd.f32 %v967, %v1021
    %v1028 = vadd.f32 %v968, %v1022
    %v1029 = vadd.f32 %v969, %v1023
    %v1030 = vadd.f32 %v970, %v1024
    %1031 = vset.pattern.permute.xlu0 7
    %1032 = vperm.xlu0 %1031, %v93
    %v1033 = vpop.permute.xlu0 %1032
    %1035 = vset.pattern.permute.xlu0 7
    %1036 = vperm.xlu0 %1035, %v94
    %v1037 = vpop.permute.xlu0 %1036
    %1039 = vset.pattern.permute.xlu0 7
    %1040 = vperm.xlu0 %1039, %v95
    %v1041 = vpop.permute.xlu0 %1040
    %1043 = vset.pattern.permute.xlu0 7
    %1044 = vperm.xlu0 %1043, %v96
    %v1045 = vpop.permute.xlu0 %1044
    %1047 = vset.pattern.permute.xlu0 7
    %1048 = vperm.xlu0 %1047, %v97
    %v1049 = vpop.permute.xlu0 %1048
    %1051 = vset.pattern.permute.xlu0 7
    %1052 = vperm.xlu0 %1051, %v98
    %v1053 = vpop.permute.xlu0 %1052
    %v1055 = vlaneseq
    %v1056 = vshrl.u32 %v1055, 7
    %v1057 = vsub.s32 7, %v1056
    %v1058 = vrot.slane %v595, %v1057
    %v1059 = vlaneseq
    %v1060 = vshrl.u32 %v1059, 7
    %v1061 = vsub.s32 7, %v1060
    %v1062 = vrot.slane %v596, %v1061
    %v1063 = vlaneseq
    %v1064 = vshrl.u32 %v1063, 7
    %v1065 = vsub.s32 7, %v1064
    %v1066 = vrot.slane %v597, %v1065
    %v1067 = vlaneseq
    %v1068 = vshrl.u32 %v1067, 7
    %v1069 = vsub.s32 7, %v1068
    %v1070 = vrot.slane %v598, %v1069
    %v1071 = vlaneseq
    %v1072 = vshrl.u32 %v1071, 7
    %v1073 = vsub.s32 7, %v1072
    %v1074 = vrot.slane %v599, %v1073
    %v1075 = vlaneseq
    %v1076 = vshrl.u32 %v1075, 7
    %v1077 = vsub.s32 7, %v1076
    %v1078 = vrot.slane %v600, %v1077
    %v1079 = vmul.f32 %v1033, %v1058
    %v1080 = vmul.f32 %v1037, %v1062
    %v1081 = vmul.f32 %v1041, %v1066
    %v1082 = vmul.f32 %v1045, %v1070
    %v1083 = vmul.f32 %v1049, %v1074
    %v1084 = vmul.f32 %v1053, %v1078
    %v1085 = vadd.f32 %v1025, %v1079
    %v1086 = vadd.f32 %v1026, %v1080
    %v1087 = vadd.f32 %v1027, %v1081
    %v1088 = vadd.f32 %v1028, %v1082
    %v1089 = vadd.f32 %v1029, %v1083
    %v1090 = vadd.f32 %v1030, %v1084
    %v1091 = vlaneseq
    %v1092 = vshrl.u32 %v1091, 7
    %v1093 = vsub.s32 2, %v1092
    %v1094 = vrot.slane %v111, %v1093
    %v1095 = vadd.f32 %v1085, %v1094
    %v1096 = vadd.f32 %v1086, %v1094
    %v1097 = vadd.f32 %v1087, %v1094
    %v1098 = vadd.f32 %v1088, %v1094
    %v1099 = vadd.f32 %v1089, %v1094
    %v1100 = vadd.f32 %v1090, %v1094
    %1102 = vset.pattern.permute.xlu0 0
    %1103 = vperm.xlu0 %1102, %v105
    %v1104 = vpop.permute.xlu0 %1103
    %1107 = vset.pattern.permute.xlu0 0
    %1108 = vperm.xlu0 %1107, %v106
    %v1109 = vpop.permute.xlu0 %1108
    %1112 = vset.pattern.permute.xlu0 0
    %1113 = vperm.xlu0 %1112, %v107
    %v1114 = vpop.permute.xlu0 %1113
    %1117 = vset.pattern.permute.xlu0 0
    %1118 = vperm.xlu0 %1117, %v108
    %v1119 = vpop.permute.xlu0 %1118
    %1122 = vset.pattern.permute.xlu0 0
    %1123 = vperm.xlu0 %1122, %v109
    %v1124 = vpop.permute.xlu0 %1123
    %1127 = vset.pattern.permute.xlu0 0
    %1128 = vperm.xlu0 %1127, %v110
    %v1129 = vpop.permute.xlu0 %1128
    %v1131 = vlaneseq
    %v1132 = vshrl.u32 %v1131, 7
    %v1133 = vsub.s32 0, %v1132
    %v1134 = vrot.slane %v605, %v1133
    %v1135 = vlaneseq
    %v1136 = vshrl.u32 %v1135, 7
    %v1137 = vsub.s32 0, %v1136
    %v1138 = vrot.slane %v606, %v1137
    %v1139 = vlaneseq
    %v1140 = vshrl.u32 %v1139, 7
    %v1141 = vsub.s32 0, %v1140
    %v1142 = vrot.slane %v607, %v1141
    %v1143 = vlaneseq
    %v1144 = vshrl.u32 %v1143, 7
    %v1145 = vsub.s32 0, %v1144
    %v1146 = vrot.slane %v608, %v1145
    %v1147 = vlaneseq
    %v1148 = vshrl.u32 %v1147, 7
    %v1149 = vsub.s32 0, %v1148
    %v1150 = vrot.slane %v609, %v1149
    %v1151 = vlaneseq
    %v1152 = vshrl.u32 %v1151, 7
    %v1153 = vsub.s32 0, %v1152
    %v1154 = vrot.slane %v610, %v1153
    %v1155 = vmul.f32 %v1104, %v1134
    %v1156 = vmul.f32 %v1109, %v1138
    %v1157 = vmul.f32 %v1114, %v1142
    %v1158 = vmul.f32 %v1119, %v1146
    %v1159 = vmul.f32 %v1124, %v1150
    %v1160 = vmul.f32 %v1129, %v1154
    %1161 = vset.pattern.permute.xlu0 1
    %1162 = vperm.xlu0 %1161, %v105
    %v1163 = vpop.permute.xlu0 %1162
    %1165 = vset.pattern.permute.xlu0 1
    %1166 = vperm.xlu0 %1165, %v106
    %v1167 = vpop.permute.xlu0 %1166
    %1169 = vset.pattern.permute.xlu0 1
    %1170 = vperm.xlu0 %1169, %v107
    %v1171 = vpop.permute.xlu0 %1170
    %1173 = vset.pattern.permute.xlu0 1
    %1174 = vperm.xlu0 %1173, %v108
    %v1175 = vpop.permute.xlu0 %1174
    %1177 = vset.pattern.permute.xlu0 1
    %1178 = vperm.xlu0 %1177, %v109
    %v1179 = vpop.permute.xlu0 %1178
    %1181 = vset.pattern.permute.xlu0 1
    %1182 = vperm.xlu0 %1181, %v110
    %v1183 = vpop.permute.xlu0 %1182
    %v1185 = vlaneseq
    %v1186 = vshrl.u32 %v1185, 7
    %v1187 = vsub.s32 1, %v1186
    %v1188 = vrot.slane %v605, %v1187
    %v1189 = vlaneseq
    %v1190 = vshrl.u32 %v1189, 7
    %v1191 = vsub.s32 1, %v1190
    %v1192 = vrot.slane %v606, %v1191
    %v1193 = vlaneseq
    %v1194 = vshrl.u32 %v1193, 7
    %v1195 = vsub.s32 1, %v1194
    %v1196 = vrot.slane %v607, %v1195
    %v1197 = vlaneseq
    %v1198 = vshrl.u32 %v1197, 7
    %v1199 = vsub.s32 1, %v1198
    %v1200 = vrot.slane %v608, %v1199
    %v1201 = vlaneseq
    %v1202 = vshrl.u32 %v1201, 7
    %v1203 = vsub.s32 1, %v1202
    %v1204 = vrot.slane %v609, %v1203
    %v1205 = vlaneseq
    %v1206 = vshrl.u32 %v1205, 7
    %v1207 = vsub.s32 1, %v1206
    %v1208 = vrot.slane %v610, %v1207
    %v1209 = vmul.f32 %v1163, %v1188
    %v1210 = vmul.f32 %v1167, %v1192
    %v1211 = vmul.f32 %v1171, %v1196
    %v1212 = vmul.f32 %v1175, %v1200
    %v1213 = vmul.f32 %v1179, %v1204
    %v1214 = vmul.f32 %v1183, %v1208
    %v1215 = vadd.f32 %v1155, %v1209
    %v1216 = vadd.f32 %v1156, %v1210
    %v1217 = vadd.f32 %v1157, %v1211
    %v1218 = vadd.f32 %v1158, %v1212
    %v1219 = vadd.f32 %v1159, %v1213
    %v1220 = vadd.f32 %v1160, %v1214
    %1221 = vset.pattern.permute.xlu0 2
    %1222 = vperm.xlu0 %1221, %v105
    %v1223 = vpop.permute.xlu0 %1222
    %1225 = vset.pattern.permute.xlu0 2
    %1226 = vperm.xlu0 %1225, %v106
    %v1227 = vpop.permute.xlu0 %1226
    %1229 = vset.pattern.permute.xlu0 2
    %1230 = vperm.xlu0 %1229, %v107
    %v1231 = vpop.permute.xlu0 %1230
    %1233 = vset.pattern.permute.xlu0 2
    %1234 = vperm.xlu0 %1233, %v108
    %v1235 = vpop.permute.xlu0 %1234
    %1237 = vset.pattern.permute.xlu0 2
    %1238 = vperm.xlu0 %1237, %v109
    %v1239 = vpop.permute.xlu0 %1238
    %1241 = vset.pattern.permute.xlu0 2
    %1242 = vperm.xlu0 %1241, %v110
    %v1243 = vpop.permute.xlu0 %1242
    %v1245 = vlaneseq
    %v1246 = vshrl.u32 %v1245, 7
    %v1247 = vsub.s32 2, %v1246
    %v1248 = vrot.slane %v605, %v1247
    %v1249 = vlaneseq
    %v1250 = vshrl.u32 %v1249, 7
    %v1251 = vsub.s32 2, %v1250
    %v1252 = vrot.slane %v606, %v1251
    %v1253 = vlaneseq
    %v1254 = vshrl.u32 %v1253, 7
    %v1255 = vsub.s32 2, %v1254
    %v1256 = vrot.slane %v607, %v1255
    %v1257 = vlaneseq
    %v1258 = vshrl.u32 %v1257, 7
    %v1259 = vsub.s32 2, %v1258
    %v1260 = vrot.slane %v608, %v1259
    %v1261 = vlaneseq
    %v1262 = vshrl.u32 %v1261, 7
    %v1263 = vsub.s32 2, %v1262
    %v1264 = vrot.slane %v609, %v1263
    %v1265 = vlaneseq
    %v1266 = vshrl.u32 %v1265, 7
    %v1267 = vsub.s32 2, %v1266
    %v1268 = vrot.slane %v610, %v1267
    %v1269 = vmul.f32 %v1223, %v1248
    %v1270 = vmul.f32 %v1227, %v1252
    %v1271 = vmul.f32 %v1231, %v1256
    %v1272 = vmul.f32 %v1235, %v1260
    %v1273 = vmul.f32 %v1239, %v1264
    %v1274 = vmul.f32 %v1243, %v1268
    %v1275 = vadd.f32 %v1215, %v1269
    %v1276 = vadd.f32 %v1216, %v1270
    %v1277 = vadd.f32 %v1217, %v1271
    %v1278 = vadd.f32 %v1218, %v1272
    %v1279 = vadd.f32 %v1219, %v1273
    %v1280 = vadd.f32 %v1220, %v1274
    %1281 = vset.pattern.permute.xlu0 3
    %1282 = vperm.xlu0 %1281, %v105
    %v1283 = vpop.permute.xlu0 %1282
    %1285 = vset.pattern.permute.xlu0 3
    %1286 = vperm.xlu0 %1285, %v106
    %v1287 = vpop.permute.xlu0 %1286
    %1289 = vset.pattern.permute.xlu0 3
    %1290 = vperm.xlu0 %1289, %v107
    %v1291 = vpop.permute.xlu0 %1290
    %1293 = vset.pattern.permute.xlu0 3
    %1294 = vperm.xlu0 %1293, %v108
    %v1295 = vpop.permute.xlu0 %1294
    %1297 = vset.pattern.permute.xlu0 3
    %1298 = vperm.xlu0 %1297, %v109
    %v1299 = vpop.permute.xlu0 %1298
    %1301 = vset.pattern.permute.xlu0 3
    %1302 = vperm.xlu0 %1301, %v110
    %v1303 = vpop.permute.xlu0 %1302
    %v1305 = vlaneseq
    %v1306 = vshrl.u32 %v1305, 7
    %v1307 = vsub.s32 3, %v1306
    %v1308 = vrot.slane %v605, %v1307
    %v1309 = vlaneseq
    %v1310 = vshrl.u32 %v1309, 7
    %v1311 = vsub.s32 3, %v1310
    %v1312 = vrot.slane %v606, %v1311
    %v1313 = vlaneseq
    %v1314 = vshrl.u32 %v1313, 7
    %v1315 = vsub.s32 3, %v1314
    %v1316 = vrot.slane %v607, %v1315
    %v1317 = vlaneseq
    %v1318 = vshrl.u32 %v1317, 7
    %v1319 = vsub.s32 3, %v1318
    %v1320 = vrot.slane %v608, %v1319
    %v1321 = vlaneseq
    %v1322 = vshrl.u32 %v1321, 7
    %v1323 = vsub.s32 3, %v1322
    %v1324 = vrot.slane %v609, %v1323
    %v1325 = vlaneseq
    %v1326 = vshrl.u32 %v1325, 7
    %v1327 = vsub.s32 3, %v1326
    %v1328 = vrot.slane %v610, %v1327
    %v1329 = vmul.f32 %v1283, %v1308
    %v1330 = vmul.f32 %v1287, %v1312
    %v1331 = vmul.f32 %v1291, %v1316
    %v1332 = vmul.f32 %v1295, %v1320
    %v1333 = vmul.f32 %v1299, %v1324
    %v1334 = vmul.f32 %v1303, %v1328
    %v1335 = vadd.f32 %v1275, %v1329
    %v1336 = vadd.f32 %v1276, %v1330
    %v1337 = vadd.f32 %v1277, %v1331
    %v1338 = vadd.f32 %v1278, %v1332
    %v1339 = vadd.f32 %v1279, %v1333
    %v1340 = vadd.f32 %v1280, %v1334
    %1341 = vset.pattern.permute.xlu0 4
    %1342 = vperm.xlu0 %1341, %v105
    %v1343 = vpop.permute.xlu0 %1342
    %1345 = vset.pattern.permute.xlu0 4
    %1346 = vperm.xlu0 %1345, %v106
    %v1347 = vpop.permute.xlu0 %1346
    %1349 = vset.pattern.permute.xlu0 4
    %1350 = vperm.xlu0 %1349, %v107
    %v1351 = vpop.permute.xlu0 %1350
    %1353 = vset.pattern.permute.xlu0 4
    %1354 = vperm.xlu0 %1353, %v108
    %v1355 = vpop.permute.xlu0 %1354
    %1357 = vset.pattern.permute.xlu0 4
    %1358 = vperm.xlu0 %1357, %v109
    %v1359 = vpop.permute.xlu0 %1358
    %1361 = vset.pattern.permute.xlu0 4
    %1362 = vperm.xlu0 %1361, %v110
    %v1363 = vpop.permute.xlu0 %1362
    %v1365 = vlaneseq
    %v1366 = vshrl.u32 %v1365, 7
    %v1367 = vsub.s32 4, %v1366
    %v1368 = vrot.slane %v605, %v1367
    %v1369 = vlaneseq
    %v1370 = vshrl.u32 %v1369, 7
    %v1371 = vsub.s32 4, %v1370
    %v1372 = vrot.slane %v606, %v1371
    %v1373 = vlaneseq
    %v1374 = vshrl.u32 %v1373, 7
    %v1375 = vsub.s32 4, %v1374
    %v1376 = vrot.slane %v607, %v1375
    %v1377 = vlaneseq
    %v1378 = vshrl.u32 %v1377, 7
    %v1379 = vsub.s32 4, %v1378
    %v1380 = vrot.slane %v608, %v1379
    %v1381 = vlaneseq
    %v1382 = vshrl.u32 %v1381, 7
    %v1383 = vsub.s32 4, %v1382
    %v1384 = vrot.slane %v609, %v1383
    %v1385 = vlaneseq
    %v1386 = vshrl.u32 %v1385, 7
    %v1387 = vsub.s32 4, %v1386
    %v1388 = vrot.slane %v610, %v1387
    %v1389 = vmul.f32 %v1343, %v1368
    %v1390 = vmul.f32 %v1347, %v1372
    %v1391 = vmul.f32 %v1351, %v1376
    %v1392 = vmul.f32 %v1355, %v1380
    %v1393 = vmul.f32 %v1359, %v1384
    %v1394 = vmul.f32 %v1363, %v1388
    %v1395 = vadd.f32 %v1335, %v1389
    %v1396 = vadd.f32 %v1336, %v1390
    %v1397 = vadd.f32 %v1337, %v1391
    %v1398 = vadd.f32 %v1338, %v1392
    %v1399 = vadd.f32 %v1339, %v1393
    %v1400 = vadd.f32 %v1340, %v1394
    %1401 = vset.pattern.permute.xlu0 5
    %1402 = vperm.xlu0 %1401, %v105
    %v1403 = vpop.permute.xlu0 %1402
    %1405 = vset.pattern.permute.xlu0 5
    %1406 = vperm.xlu0 %1405, %v106
    %v1407 = vpop.permute.xlu0 %1406
    %1409 = vset.pattern.permute.xlu0 5
    %1410 = vperm.xlu0 %1409, %v107
    %v1411 = vpop.permute.xlu0 %1410
    %1413 = vset.pattern.permute.xlu0 5
    %1414 = vperm.xlu0 %1413, %v108
    %v1415 = vpop.permute.xlu0 %1414
    %1417 = vset.pattern.permute.xlu0 5
    %1418 = vperm.xlu0 %1417, %v109
    %v1419 = vpop.permute.xlu0 %1418
    %1421 = vset.pattern.permute.xlu0 5
    %1422 = vperm.xlu0 %1421, %v110
    %v1423 = vpop.permute.xlu0 %1422
    %v1425 = vlaneseq
    %v1426 = vshrl.u32 %v1425, 7
    %v1427 = vsub.s32 5, %v1426
    %v1428 = vrot.slane %v605, %v1427
    %v1429 = vlaneseq
    %v1430 = vshrl.u32 %v1429, 7
    %v1431 = vsub.s32 5, %v1430
    %v1432 = vrot.slane %v606, %v1431
    %v1433 = vlaneseq
    %v1434 = vshrl.u32 %v1433, 7
    %v1435 = vsub.s32 5, %v1434
    %v1436 = vrot.slane %v607, %v1435
    %v1437 = vlaneseq
    %v1438 = vshrl.u32 %v1437, 7
    %v1439 = vsub.s32 5, %v1438
    %v1440 = vrot.slane %v608, %v1439
    %v1441 = vlaneseq
    %v1442 = vshrl.u32 %v1441, 7
    %v1443 = vsub.s32 5, %v1442
    %v1444 = vrot.slane %v609, %v1443
    %v1445 = vlaneseq
    %v1446 = vshrl.u32 %v1445, 7
    %v1447 = vsub.s32 5, %v1446
    %v1448 = vrot.slane %v610, %v1447
    %v1449 = vmul.f32 %v1403, %v1428
    %v1450 = vmul.f32 %v1407, %v1432
    %v1451 = vmul.f32 %v1411, %v1436
    %v1452 = vmul.f32 %v1415, %v1440
    %v1453 = vmul.f32 %v1419, %v1444
    %v1454 = vmul.f32 %v1423, %v1448
    %v1455 = vadd.f32 %v1395, %v1449
    %v1456 = vadd.f32 %v1396, %v1450
    %v1457 = vadd.f32 %v1397, %v1451
    %v1458 = vadd.f32 %v1398, %v1452
    %v1459 = vadd.f32 %v1399, %v1453
    %v1460 = vadd.f32 %v1400, %v1454
    %1461 = vset.pattern.permute.xlu0 6
    %1462 = vperm.xlu0 %1461, %v105
    %v1463 = vpop.permute.xlu0 %1462
    %1465 = vset.pattern.permute.xlu0 6
    %1466 = vperm.xlu0 %1465, %v106
    %v1467 = vpop.permute.xlu0 %1466
    %1469 = vset.pattern.permute.xlu0 6
    %1470 = vperm.xlu0 %1469, %v107
    %v1471 = vpop.permute.xlu0 %1470
    %1473 = vset.pattern.permute.xlu0 6
    %1474 = vperm.xlu0 %1473, %v108
    %v1475 = vpop.permute.xlu0 %1474
    %1477 = vset.pattern.permute.xlu0 6
    %1478 = vperm.xlu0 %1477, %v109
    %v1479 = vpop.permute.xlu0 %1478
    %1481 = vset.pattern.permute.xlu0 6
    %1482 = vperm.xlu0 %1481, %v110
    %v1483 = vpop.permute.xlu0 %1482
    %v1485 = vlaneseq
    %v1486 = vshrl.u32 %v1485, 7
    %v1487 = vsub.s32 6, %v1486
    %v1488 = vrot.slane %v605, %v1487
    %v1489 = vlaneseq
    %v1490 = vshrl.u32 %v1489, 7
    %v1491 = vsub.s32 6, %v1490
    %v1492 = vrot.slane %v606, %v1491
    %v1493 = vlaneseq
    %v1494 = vshrl.u32 %v1493, 7
    %v1495 = vsub.s32 6, %v1494
    %v1496 = vrot.slane %v607, %v1495
    %v1497 = vlaneseq
    %v1498 = vshrl.u32 %v1497, 7
    %v1499 = vsub.s32 6, %v1498
    %v1500 = vrot.slane %v608, %v1499
    %v1501 = vlaneseq
    %v1502 = vshrl.u32 %v1501, 7
    %v1503 = vsub.s32 6, %v1502
    %v1504 = vrot.slane %v609, %v1503
    %v1505 = vlaneseq
    %v1506 = vshrl.u32 %v1505, 7
    %v1507 = vsub.s32 6, %v1506
    %v1508 = vrot.slane %v610, %v1507
    %v1509 = vmul.f32 %v1463, %v1488
    %v1510 = vmul.f32 %v1467, %v1492
    %v1511 = vmul.f32 %v1471, %v1496
    %v1512 = vmul.f32 %v1475, %v1500
    %v1513 = vmul.f32 %v1479, %v1504
    %v1514 = vmul.f32 %v1483, %v1508
    %v1515 = vadd.f32 %v1455, %v1509
    %v1516 = vadd.f32 %v1456, %v1510
    %v1517 = vadd.f32 %v1457, %v1511
    %v1518 = vadd.f32 %v1458, %v1512
    %v1519 = vadd.f32 %v1459, %v1513
    %v1520 = vadd.f32 %v1460, %v1514
    %1521 = vset.pattern.permute.xlu0 7
    %1522 = vperm.xlu0 %1521, %v105
    %v1523 = vpop.permute.xlu0 %1522
    %1525 = vset.pattern.permute.xlu0 7
    %1526 = vperm.xlu0 %1525, %v106
    %v1527 = vpop.permute.xlu0 %1526
    %1529 = vset.pattern.permute.xlu0 7
    %1530 = vperm.xlu0 %1529, %v107
    %v1531 = vpop.permute.xlu0 %1530
    %1533 = vset.pattern.permute.xlu0 7
    %1534 = vperm.xlu0 %1533, %v108
    %v1535 = vpop.permute.xlu0 %1534
    %1537 = vset.pattern.permute.xlu0 7
    %1538 = vperm.xlu0 %1537, %v109
    %v1539 = vpop.permute.xlu0 %1538
    %1541 = vset.pattern.permute.xlu0 7
    %1542 = vperm.xlu0 %1541, %v110
    %v1543 = vpop.permute.xlu0 %1542
    %v1545 = vlaneseq
    %v1546 = vshrl.u32 %v1545, 7
    %v1547 = vsub.s32 7, %v1546
    %v1548 = vrot.slane %v605, %v1547
    %v1549 = vlaneseq
    %v1550 = vshrl.u32 %v1549, 7
    %v1551 = vsub.s32 7, %v1550
    %v1552 = vrot.slane %v606, %v1551
    %v1553 = vlaneseq
    %v1554 = vshrl.u32 %v1553, 7
    %v1555 = vsub.s32 7, %v1554
    %v1556 = vrot.slane %v607, %v1555
    %v1557 = vlaneseq
    %v1558 = vshrl.u32 %v1557, 7
    %v1559 = vsub.s32 7, %v1558
    %v1560 = vrot.slane %v608, %v1559
    %v1561 = vlaneseq
    %v1562 = vshrl.u32 %v1561, 7
    %v1563 = vsub.s32 7, %v1562
    %v1564 = vrot.slane %v609, %v1563
    %v1565 = vlaneseq
    %v1566 = vshrl.u32 %v1565, 7
    %v1567 = vsub.s32 7, %v1566
    %v1568 = vrot.slane %v610, %v1567
    %v1569 = vmul.f32 %v1523, %v1548
    %v1570 = vmul.f32 %v1527, %v1552
    %v1571 = vmul.f32 %v1531, %v1556
    %v1572 = vmul.f32 %v1535, %v1560
    %v1573 = vmul.f32 %v1539, %v1564
    %v1574 = vmul.f32 %v1543, %v1568
    %v1575 = vadd.f32 %v1515, %v1569
    %v1576 = vadd.f32 %v1516, %v1570
    %v1577 = vadd.f32 %v1517, %v1571
    %v1578 = vadd.f32 %v1518, %v1572
    %v1579 = vadd.f32 %v1519, %v1573
    %v1580 = vadd.f32 %v1520, %v1574
    %v1581 = vlaneseq
    %v1582 = vshrl.u32 %v1581, 7
    %v1583 = vsub.s32 3, %v1582
    %v1584 = vrot.slane %v111, %v1583
    %v1585 = vadd.f32 %v1575, %v1584
    %v1586 = vadd.f32 %v1576, %v1584
    %v1587 = vadd.f32 %v1577, %v1584
    %v1588 = vadd.f32 %v1578, %v1584
    %v1589 = vadd.f32 %v1579, %v1584
    %v1590 = vadd.f32 %v1580, %v1584
    %1591 = vmatprep.subr.mxu0 %v238
    %1592 = vmatpush1.msra.mxu0 %v237
    %1593 = vmatprep.subr.mxu0 %v235
    %1594 = vmatpush1.msra.mxu0 %v234
    %1595 = vmatprep.subr.mxu0 %v232
    %1596 = vmatpush1.msra.mxu0 %v231
    %1597 = vmatprep.subr.mxu0 %v229
    %1598 = vmatpush1.msra.mxu0 %v228
    %1599 = vmatprep.subr.mxu0 %v226
    %1600 = vmatpush1.msra.mxu0 %v225
    %1601 = vmatprep.subr.mxu0 %v223
    %1602 = vmatpush1.msra.mxu0 %v222
    %1603 = vmatprep.subr.mxu0 %v220
    %1604 = vmatpush1.msra.mxu0 %v219
    %1605 = vmatprep.subr.mxu0 %v217
    %1606 = vmatpush1.msra.mxu0 %v216
    %1607 = vmatprep.subr.mxu0 %v214
    %1608 = vmatpush1.msra.mxu0 %v213
    %1609 = vmatprep.subr.mxu0 %v211
    %1610 = vmatpush1.msra.mxu0 %v210
    %1611 = vmatprep.subr.mxu0 %v208
    %1612 = vmatpush1.msra.mxu0 %v207
    %1613 = vmatprep.subr.mxu0 %v205
    %1614 = vmatpush1.msra.mxu0 %v204
    %1615 = vmatprep.subr.mxu0 %v202
    %1616 = vmatpush1.msra.mxu0 %v201
    %1617 = vmatprep.subr.mxu0 %v199
    %1618 = vmatpush1.msra.mxu0 %v198
    %1619 = vmatprep.subr.mxu0 %v196
    %1620 = vmatpush1.msra.mxu0 %v195
    %1621 = vmatprep.subr.mxu0 %v193
    %1622 = vmatpush1.msra.mxu0 %v192
    %1623 = vmatprep.subr.mxu0 0.0
    %1624 = vmatpush2.msra.mxu0 0.0
    %1625 = vmatprep.subr.mxu0 0.0
    %1626 = vmatpush2.msra.mxu0 0.0
    %1627 = vmatprep.subr.mxu0 0.0
    %1628 = vmatpush2.msra.mxu0 0.0
    %1629 = vmatprep.subr.mxu0 0.0
    %1630 = vmatpush2.msra.mxu0 0.0
    %1631 = vmatprep.subr.mxu0 0.0
    %1632 = vmatpush2.msra.mxu0 0.0
    %1633 = vmatprep.subr.mxu0 0.0
    %1634 = vmatpush2.msra.mxu0 0.0
    %1635 = vmatprep.subr.mxu0 0.0
    %1636 = vmatpush2.msra.mxu0 0.0
    %1637 = vmatprep.subr.mxu0 0.0
    %1638 = vmatpush2.msra.mxu0 0.0
    %1639 = vmatprep.subr.mxu0 0.0
    %1640 = vmatpush2.msra.mxu0 0.0
    %1641 = vmatprep.subr.mxu0 0.0
    %1642 = vmatpush2.msra.mxu0 0.0
    %1643 = vmatprep.subr.mxu0 0.0
    %1644 = vmatpush2.msra.mxu0 0.0
    %1645 = vmatprep.subr.mxu0 0.0
    %1646 = vmatpush2.msra.mxu0 0.0
    %1647 = vmatprep.subr.mxu0 0.0
    %1648 = vmatpush2.msra.mxu0 0.0
    %1649 = vmatprep.subr.mxu0 0.0
    %1650 = vmatpush2.msra.mxu0 0.0
    %1651 = vmatprep.subr.mxu0 0.0
    %1652 = vmatpush2.msra.mxu0 0.0
    %1653 = vmatprep.subr.mxu0 0.0
    %1654 = vmatpush2.msra.mxu0 0.0
    %1655 = vmatprep.mubr.f32.mxu0 0.0
    %1656 = vmatmul.mubr.f32.gmra.mxu0 %v1095
    %v1657 = vpop.f32.mrf.mxu0
    %v1658 = vadd.f32 0.0, %v1657
    %v1659 = vpop.f32.mrf.mxu0
    %v1660 = vadd.f32 0.0, %v1659
    %1661 = vmatprep.mubr.f32.mxu0 0.0
    %1662 = vmatmul.mubr.f32.gmra.mxu0 %v1096
    %v1663 = vpop.f32.mrf.mxu0
    %v1664 = vadd.f32 0.0, %v1663
    %v1665 = vpop.f32.mrf.mxu0
    %v1666 = vadd.f32 0.0, %v1665
    %1667 = vmatprep.mubr.f32.mxu0 0.0
    %1668 = vmatmul.mubr.f32.gmra.mxu0 %v1097
    %v1669 = vpop.f32.mrf.mxu0
    %v1670 = vadd.f32 0.0, %v1669
    %v1671 = vpop.f32.mrf.mxu0
    %v1672 = vadd.f32 0.0, %v1671
    %1673 = vmatprep.mubr.f32.mxu0 0.0
    %1674 = vmatmul.mubr.f32.gmra.mxu0 %v1098
    %v1675 = vpop.f32.mrf.mxu0
    %v1676 = vadd.f32 0.0, %v1675
    %v1677 = vpop.f32.mrf.mxu0
    %v1678 = vadd.f32 0.0, %v1677
    %1679 = vmatprep.mubr.f32.mxu0 0.0
    %1680 = vmatmul.mubr.f32.gmra.mxu0 %v1099
    %v1681 = vpop.f32.mrf.mxu0
    %v1682 = vadd.f32 0.0, %v1681
    %v1683 = vpop.f32.mrf.mxu0
    %v1684 = vadd.f32 0.0, %v1683
    %1685 = vmatprep.mubr.f32.mxu0 0.0
    %1686 = vmatmul.mubr.f32.gmra.mxu0 %v1100
    %v1687 = vpop.f32.mrf.mxu0
    %v1688 = vadd.f32 0.0, %v1687
    %v1689 = vpop.f32.mrf.mxu0
    %v1690 = vadd.f32 0.0, %v1689
    %1691 = vdwg.mxu0
    %1692 = vmatprep.subr.mxu0 0.0
    %1693 = vmatpush1.msra.mxu0 %v239
    %1694 = vmatprep.subr.mxu0 0.0
    %1695 = vmatpush1.msra.mxu0 %v236
    %1696 = vmatprep.subr.mxu0 0.0
    %1697 = vmatpush1.msra.mxu0 %v233
    %1698 = vmatprep.subr.mxu0 0.0
    %1699 = vmatpush1.msra.mxu0 %v230
    %1700 = vmatprep.subr.mxu0 0.0
    %1701 = vmatpush1.msra.mxu0 %v227
    %1702 = vmatprep.subr.mxu0 0.0
    %1703 = vmatpush1.msra.mxu0 %v224
    %1704 = vmatprep.subr.mxu0 0.0
    %1705 = vmatpush1.msra.mxu0 %v221
    %1706 = vmatprep.subr.mxu0 0.0
    %1707 = vmatpush1.msra.mxu0 %v218
    %1708 = vmatprep.subr.mxu0 0.0
    %1709 = vmatpush1.msra.mxu0 %v215
    %1710 = vmatprep.subr.mxu0 0.0
    %1711 = vmatpush1.msra.mxu0 %v212
    %1712 = vmatprep.subr.mxu0 0.0
    %1713 = vmatpush1.msra.mxu0 %v209
    %1714 = vmatprep.subr.mxu0 0.0
    %1715 = vmatpush1.msra.mxu0 %v206
    %1716 = vmatprep.subr.mxu0 0.0
    %1717 = vmatpush1.msra.mxu0 %v203
    %1718 = vmatprep.subr.mxu0 0.0
    %1719 = vmatpush1.msra.mxu0 %v200
    %1720 = vmatprep.subr.mxu0 0.0
    %1721 = vmatpush1.msra.mxu0 %v197
    %1722 = vmatprep.subr.mxu0 0.0
    %1723 = vmatpush1.msra.mxu0 %v194
    %1724 = vmatprep.subr.mxu0 0.0
    %1725 = vmatpush2.msra.mxu0 0.0
    %1726 = vmatprep.subr.mxu0 0.0
    %1727 = vmatpush2.msra.mxu0 0.0
    %1728 = vmatprep.subr.mxu0 0.0
    %1729 = vmatpush2.msra.mxu0 0.0
    %1730 = vmatprep.subr.mxu0 0.0
    %1731 = vmatpush2.msra.mxu0 0.0
    %1732 = vmatprep.subr.mxu0 0.0
    %1733 = vmatpush2.msra.mxu0 0.0
    %1734 = vmatprep.subr.mxu0 0.0
    %1735 = vmatpush2.msra.mxu0 0.0
    %1736 = vmatprep.subr.mxu0 0.0
    %1737 = vmatpush2.msra.mxu0 0.0
    %1738 = vmatprep.subr.mxu0 0.0
    %1739 = vmatpush2.msra.mxu0 0.0
    %1740 = vmatprep.subr.mxu0 0.0
    %1741 = vmatpush2.msra.mxu0 0.0
    %1742 = vmatprep.subr.mxu0 0.0
    %1743 = vmatpush2.msra.mxu0 0.0
    %1744 = vmatprep.subr.mxu0 0.0
    %1745 = vmatpush2.msra.mxu0 0.0
    %1746 = vmatprep.subr.mxu0 0.0
    %1747 = vmatpush2.msra.mxu0 0.0
    %1748 = vmatprep.subr.mxu0 0.0
    %1749 = vmatpush2.msra.mxu0 0.0
    %1750 = vmatprep.subr.mxu0 0.0
    %1751 = vmatpush2.msra.mxu0 0.0
    %1752 = vmatprep.subr.mxu0 0.0
    %1753 = vmatpush2.msra.mxu0 0.0
    %1754 = vmatprep.subr.mxu0 0.0
    %1755 = vmatpush2.msra.mxu0 0.0
    %1756 = vmatprep.mubr.f32.mxu0 0.0
    %1757 = vmatmul.mubr.f32.gmra.mxu0 %v1095
    %v1758 = vpop.f32.mrf.mxu0
    %v1759 = vadd.f32 0.0, %v1758
    %v1760 = vpop.f32.mrf.mxu0
    %1761 = vmatprep.mubr.f32.mxu0 0.0
    %1762 = vmatmul.mubr.f32.gmra.mxu0 %v1096
    %v1763 = vpop.f32.mrf.mxu0
    %v1764 = vadd.f32 0.0, %v1763
    %v1765 = vpop.f32.mrf.mxu0
    %1766 = vmatprep.mubr.f32.mxu0 0.0
    %1767 = vmatmul.mubr.f32.gmra.mxu0 %v1097
    %v1768 = vpop.f32.mrf.mxu0
    %v1769 = vadd.f32 0.0, %v1768
    %v1770 = vpop.f32.mrf.mxu0
    %1771 = vmatprep.mubr.f32.mxu0 0.0
    %1772 = vmatmul.mubr.f32.gmra.mxu0 %v1098
    %v1773 = vpop.f32.mrf.mxu0
    %v1774 = vadd.f32 0.0, %v1773
    %v1775 = vpop.f32.mrf.mxu0
    %1776 = vmatprep.mubr.f32.mxu0 0.0
    %1777 = vmatmul.mubr.f32.gmra.mxu0 %v1099
    %v1778 = vpop.f32.mrf.mxu0
    %v1779 = vadd.f32 0.0, %v1778
    %v1780 = vpop.f32.mrf.mxu0
    %1781 = vmatprep.mubr.f32.mxu0 0.0
    %1782 = vmatmul.mubr.f32.gmra.mxu0 %v1100
    %v1783 = vpop.f32.mrf.mxu0
    %v1784 = vadd.f32 0.0, %v1783
    %v1785 = vpop.f32.mrf.mxu0
    %1786 = vdwg.mxu0
    %1787 = vmatprep.subr.mxu0 %v286
    %1788 = vmatpush1.msra.mxu0 %v285
    %1789 = vmatprep.subr.mxu0 %v283
    %1790 = vmatpush1.msra.mxu0 %v282
    %1791 = vmatprep.subr.mxu0 %v280
    %1792 = vmatpush1.msra.mxu0 %v279
    %1793 = vmatprep.subr.mxu0 %v277
    %1794 = vmatpush1.msra.mxu0 %v276
    %1795 = vmatprep.subr.mxu0 %v274
    %1796 = vmatpush1.msra.mxu0 %v273
    %1797 = vmatprep.subr.mxu0 %v271
    %1798 = vmatpush1.msra.mxu0 %v270
    %1799 = vmatprep.subr.mxu0 %v268
    %1800 = vmatpush1.msra.mxu0 %v267
    %1801 = vmatprep.subr.mxu0 %v265
    %1802 = vmatpush1.msra.mxu0 %v264
    %1803 = vmatprep.subr.mxu0 %v262
    %1804 = vmatpush1.msra.mxu0 %v261
    %1805 = vmatprep.subr.mxu0 %v259
    %1806 = vmatpush1.msra.mxu0 %v258
    %1807 = vmatprep.subr.mxu0 %v256
    %1808 = vmatpush1.msra.mxu0 %v255
    %1809 = vmatprep.subr.mxu0 %v253
    %1810 = vmatpush1.msra.mxu0 %v252
    %1811 = vmatprep.subr.mxu0 %v250
    %1812 = vmatpush1.msra.mxu0 %v249
    %1813 = vmatprep.subr.mxu0 %v247
    %1814 = vmatpush1.msra.mxu0 %v246
    %1815 = vmatprep.subr.mxu0 %v244
    %1816 = vmatpush1.msra.mxu0 %v243
    %1817 = vmatprep.subr.mxu0 %v241
    %1818 = vmatpush1.msra.mxu0 %v240
    %1819 = vmatprep.subr.mxu0 0.0
    %1820 = vmatpush2.msra.mxu0 0.0
    %1821 = vmatprep.subr.mxu0 0.0
    %1822 = vmatpush2.msra.mxu0 0.0
    %1823 = vmatprep.subr.mxu0 0.0
    %1824 = vmatpush2.msra.mxu0 0.0
    %1825 = vmatprep.subr.mxu0 0.0
    %1826 = vmatpush2.msra.mxu0 0.0
    %1827 = vmatprep.subr.mxu0 0.0
    %1828 = vmatpush2.msra.mxu0 0.0
    %1829 = vmatprep.subr.mxu0 0.0
    %1830 = vmatpush2.msra.mxu0 0.0
    %1831 = vmatprep.subr.mxu0 0.0
    %1832 = vmatpush2.msra.mxu0 0.0
    %1833 = vmatprep.subr.mxu0 0.0
    %1834 = vmatpush2.msra.mxu0 0.0
    %1835 = vmatprep.subr.mxu0 0.0
    %1836 = vmatpush2.msra.mxu0 0.0
    %1837 = vmatprep.subr.mxu0 0.0
    %1838 = vmatpush2.msra.mxu0 0.0
    %1839 = vmatprep.subr.mxu0 0.0
    %1840 = vmatpush2.msra.mxu0 0.0
    %1841 = vmatprep.subr.mxu0 0.0
    %1842 = vmatpush2.msra.mxu0 0.0
    %1843 = vmatprep.subr.mxu0 0.0
    %1844 = vmatpush2.msra.mxu0 0.0
    %1845 = vmatprep.subr.mxu0 0.0
    %1846 = vmatpush2.msra.mxu0 0.0
    %1847 = vmatprep.subr.mxu0 0.0
    %1848 = vmatpush2.msra.mxu0 0.0
    %1849 = vmatprep.subr.mxu0 0.0
    %1850 = vmatpush2.msra.mxu0 0.0
    %1851 = vmatprep.mubr.f32.mxu0 0.0
    %1852 = vmatmul.mubr.f32.gmra.mxu0 %v1585
    %v1853 = vpop.f32.mrf.mxu0
    %v1854 = vadd.f32 0.0, %v1853
    %v1855 = vpop.f32.mrf.mxu0
    %v1856 = vadd.f32 0.0, %v1855
    %1857 = vmatprep.mubr.f32.mxu0 0.0
    %1858 = vmatmul.mubr.f32.gmra.mxu0 %v1586
    %v1859 = vpop.f32.mrf.mxu0
    %v1860 = vadd.f32 0.0, %v1859
    %v1861 = vpop.f32.mrf.mxu0
    %v1862 = vadd.f32 0.0, %v1861
    %1863 = vmatprep.mubr.f32.mxu0 0.0
    %1864 = vmatmul.mubr.f32.gmra.mxu0 %v1587
    %v1865 = vpop.f32.mrf.mxu0
    %v1866 = vadd.f32 0.0, %v1865
    %v1867 = vpop.f32.mrf.mxu0
    %v1868 = vadd.f32 0.0, %v1867
    %1869 = vmatprep.mubr.f32.mxu0 0.0
    %1870 = vmatmul.mubr.f32.gmra.mxu0 %v1588
    %v1871 = vpop.f32.mrf.mxu0
    %v1872 = vadd.f32 0.0, %v1871
    %v1873 = vpop.f32.mrf.mxu0
    %v1874 = vadd.f32 0.0, %v1873
    %1875 = vmatprep.mubr.f32.mxu0 0.0
    %1876 = vmatmul.mubr.f32.gmra.mxu0 %v1589
    %v1877 = vpop.f32.mrf.mxu0
    %v1878 = vadd.f32 0.0, %v1877
    %v1879 = vpop.f32.mrf.mxu0
    %v1880 = vadd.f32 0.0, %v1879
    %1881 = vmatprep.mubr.f32.mxu0 0.0
    %1882 = vmatmul.mubr.f32.gmra.mxu0 %v1590
    %v1883 = vpop.f32.mrf.mxu0
    %v1884 = vadd.f32 0.0, %v1883
    %v1885 = vpop.f32.mrf.mxu0
    %v1886 = vadd.f32 0.0, %v1885
    %1887 = vdwg.mxu0
    %1888 = vmatprep.subr.mxu0 0.0
    %1889 = vmatpush1.msra.mxu0 %v287
    %1890 = vmatprep.subr.mxu0 0.0
    %1891 = vmatpush1.msra.mxu0 %v284
    %1892 = vmatprep.subr.mxu0 0.0
    %1893 = vmatpush1.msra.mxu0 %v281
    %1894 = vmatprep.subr.mxu0 0.0
    %1895 = vmatpush1.msra.mxu0 %v278
    %1896 = vmatprep.subr.mxu0 0.0
    %1897 = vmatpush1.msra.mxu0 %v275
    %1898 = vmatprep.subr.mxu0 0.0
    %1899 = vmatpush1.msra.mxu0 %v272
    %1900 = vmatprep.subr.mxu0 0.0
    %1901 = vmatpush1.msra.mxu0 %v269
    %1902 = vmatprep.subr.mxu0 0.0
    %1903 = vmatpush1.msra.mxu0 %v266
    %1904 = vmatprep.subr.mxu0 0.0
    %1905 = vmatpush1.msra.mxu0 %v263
    %1906 = vmatprep.subr.mxu0 0.0
    %1907 = vmatpush1.msra.mxu0 %v260
    %1908 = vmatprep.subr.mxu0 0.0
    %1909 = vmatpush1.msra.mxu0 %v257
    %1910 = vmatprep.subr.mxu0 0.0
    %1911 = vmatpush1.msra.mxu0 %v254
    %1912 = vmatprep.subr.mxu0 0.0
    %1913 = vmatpush1.msra.mxu0 %v251
    %1914 = vmatprep.subr.mxu0 0.0
    %1915 = vmatpush1.msra.mxu0 %v248
    %1916 = vmatprep.subr.mxu0 0.0
    %1917 = vmatpush1.msra.mxu0 %v245
    %1918 = vmatprep.subr.mxu0 0.0
    %1919 = vmatpush1.msra.mxu0 %v242
    %1920 = vmatprep.subr.mxu0 0.0
    %1921 = vmatpush2.msra.mxu0 0.0
    %1922 = vmatprep.subr.mxu0 0.0
    %1923 = vmatpush2.msra.mxu0 0.0
    %1924 = vmatprep.subr.mxu0 0.0
    %1925 = vmatpush2.msra.mxu0 0.0
    %1926 = vmatprep.subr.mxu0 0.0
    %1927 = vmatpush2.msra.mxu0 0.0
    %1928 = vmatprep.subr.mxu0 0.0
    %1929 = vmatpush2.msra.mxu0 0.0
    %1930 = vmatprep.subr.mxu0 0.0
    %1931 = vmatpush2.msra.mxu0 0.0
    %1932 = vmatprep.subr.mxu0 0.0
    %1933 = vmatpush2.msra.mxu0 0.0
    %1934 = vmatprep.subr.mxu0 0.0
    %1935 = vmatpush2.msra.mxu0 0.0
    %1936 = vmatprep.subr.mxu0 0.0
    %1937 = vmatpush2.msra.mxu0 0.0
    %1938 = vmatprep.subr.mxu0 0.0
    %1939 = vmatpush2.msra.mxu0 0.0
    %1940 = vmatprep.subr.mxu0 0.0
    %1941 = vmatpush2.msra.mxu0 0.0
    %1942 = vmatprep.subr.mxu0 0.0
    %1943 = vmatpush2.msra.mxu0 0.0
    %1944 = vmatprep.subr.mxu0 0.0
    %1945 = vmatpush2.msra.mxu0 0.0
    %1946 = vmatprep.subr.mxu0 0.0
    %1947 = vmatpush2.msra.mxu0 0.0
    %1948 = vmatprep.subr.mxu0 0.0
    %1949 = vmatpush2.msra.mxu0 0.0
    %1950 = vmatprep.subr.mxu0 0.0
    %1951 = vmatpush2.msra.mxu0 0.0
    %1952 = vmatprep.mubr.f32.mxu0 0.0
    %1953 = vmatmul.mubr.f32.gmra.mxu0 %v1585
    %v1954 = vpop.f32.mrf.mxu0
    %v1955 = vadd.f32 0.0, %v1954
    %v1956 = vpop.f32.mrf.mxu0
    %1957 = vmatprep.mubr.f32.mxu0 0.0
    %1958 = vmatmul.mubr.f32.gmra.mxu0 %v1586
    %v1959 = vpop.f32.mrf.mxu0
    %v1960 = vadd.f32 0.0, %v1959
    %v1961 = vpop.f32.mrf.mxu0
    %1962 = vmatprep.mubr.f32.mxu0 0.0
    %1963 = vmatmul.mubr.f32.gmra.mxu0 %v1587
    %v1964 = vpop.f32.mrf.mxu0
    %v1965 = vadd.f32 0.0, %v1964
    %v1966 = vpop.f32.mrf.mxu0
    %1967 = vmatprep.mubr.f32.mxu0 0.0
    %1968 = vmatmul.mubr.f32.gmra.mxu0 %v1588
    %v1969 = vpop.f32.mrf.mxu0
    %v1970 = vadd.f32 0.0, %v1969
    %v1971 = vpop.f32.mrf.mxu0
    %1972 = vmatprep.mubr.f32.mxu0 0.0
    %1973 = vmatmul.mubr.f32.gmra.mxu0 %v1589
    %v1974 = vpop.f32.mrf.mxu0
    %v1975 = vadd.f32 0.0, %v1974
    %v1976 = vpop.f32.mrf.mxu0
    %1977 = vmatprep.mubr.f32.mxu0 0.0
    %1978 = vmatmul.mubr.f32.gmra.mxu0 %v1590
    %v1979 = vpop.f32.mrf.mxu0
    %v1980 = vadd.f32 0.0, %v1979
    %v1981 = vpop.f32.mrf.mxu0
    %1982 = vdwg.mxu0
    %v1983 = vadd.f32 %v1658, %v1854
    %v1984 = vadd.f32 %v1664, %v1860
    %v1985 = vadd.f32 %v1670, %v1866
    %v1986 = vadd.f32 %v1676, %v1872
    %v1987 = vadd.f32 %v1682, %v1878
    %v1988 = vadd.f32 %v1688, %v1884
    %v1989 = vadd.f32 %v1983, %v462
    %v1990 = vadd.f32 %v1984, %v468
    %v1991 = vadd.f32 %v1985, %v474
    %v1992 = vadd.f32 %v1986, %v480
    %v1993 = vadd.f32 %v1987, %v486
    %v1994 = vadd.f32 %v1988, %v492
    %v1995 = vlaneseq
    %v1996 = vshrl.u32 %v1995, 7
    %v1997 = vsub.s32 4, %v1996
    %v1998 = vrot.slane %v111, %v1997
    %v1999 = vadd.f32 %v1989, %v1998
    %v2000 = vadd.f32 %v1990, %v1998
    %v2001 = vadd.f32 %v1991, %v1998
    %v2002 = vadd.f32 %v1992, %v1998
    %v2003 = vadd.f32 %v1993, %v1998
    %v2004 = vadd.f32 %v1994, %v1998
    %v2005 = vadd.f32 %v1660, %v1856
    %v2006 = vadd.f32 %v1666, %v1862
    %v2007 = vadd.f32 %v1672, %v1868
    %v2008 = vadd.f32 %v1678, %v1874
    %v2009 = vadd.f32 %v1684, %v1880
    %v2010 = vadd.f32 %v1690, %v1886
    %v2011 = vadd.f32 %v2005, %v464
    %v2012 = vadd.f32 %v2006, %v470
    %v2013 = vadd.f32 %v2007, %v476
    %v2014 = vadd.f32 %v2008, %v482
    %v2015 = vadd.f32 %v2009, %v488
    %v2016 = vadd.f32 %v2010, %v494
    %v2017 = vlaneseq
    %v2018 = vshrl.u32 %v2017, 7
    %v2019 = vsub.s32 5, %v2018
    %v2020 = vrot.slane %v111, %v2019
    %v2021 = vadd.f32 %v2011, %v2020
    %v2022 = vadd.f32 %v2012, %v2020
    %v2023 = vadd.f32 %v2013, %v2020
    %v2024 = vadd.f32 %v2014, %v2020
    %v2025 = vadd.f32 %v2015, %v2020
    %v2026 = vadd.f32 %v2016, %v2020
    %v2027 = vadd.f32 %v1759, %v1955
    %v2028 = vadd.f32 %v1764, %v1960
    %v2029 = vadd.f32 %v1769, %v1965
    %v2030 = vadd.f32 %v1774, %v1970
    %v2031 = vadd.f32 %v1779, %v1975
    %v2032 = vadd.f32 %v1784, %v1980
    %v2033 = vlaneseq
    %v2034 = vshrl.u32 %v2033, 7
    %v2035 = vsub.s32 6, %v2034
    %v2036 = vrot.slane %v111, %v2035
    %v2037 = vadd.f32 %v2027, %v2036
    %v2038 = vadd.f32 %v2028, %v2036
    %v2039 = vadd.f32 %v2029, %v2036
    %v2040 = vadd.f32 %v2030, %v2036
    %v2041 = vadd.f32 %v2031, %v2036
    %v2042 = vadd.f32 %v2032, %v2036
    %v2043 = vlaneseq
    %v2044 = vshrl.u32 %v2043, 7
    %v2045 = vsub.s32 7, %v2044
    %v2046 = vrot.slane %v111, %v2045
    %v2047 = vadd.f32 %v563, %v2046
    %v2048 = vadd.f32 %v568, %v2046
    %v2049 = vadd.f32 %v573, %v2046
    %v2050 = vadd.f32 %v578, %v2046
    %v2051 = vadd.f32 %v583, %v2046
    %v2052 = vadd.f32 %v588, %v2046
    %v2053 = vxor.u32 %v1999, 2147483648
    %v2054 = vxor.u32 %v2000, 2147483648
    %v2055 = vxor.u32 %v2001, 2147483648
    %v2056 = vxor.u32 %v2002, 2147483648
    %v2057 = vxor.u32 %v2003, 2147483648
    %v2058 = vxor.u32 %v2004, 2147483648
    %v2059 = vmul.f32 %v2053, 1.442695
    %v2060 = vpow.pop %v2059
    %v2061 = vmul.f32 %v2054, 1.442695
    %v2062 = vpow.pop %v2061
    %v2063 = vmul.f32 %v2055, 1.442695
    %v2064 = vpow.pop %v2063
    %v2065 = vmul.f32 %v2056, 1.442695
    %v2066 = vpow.pop %v2065
    %v2067 = vmul.f32 %v2057, 1.442695
    %v2068 = vpow.pop %v2067
    %v2069 = vmul.f32 %v2058, 1.442695
    %v2070 = vpow.pop %v2069
    %v2071 = vadd.f32 %v2060, 1.0
    %v2072 = vadd.f32 %v2062, 1.0
    %v2073 = vadd.f32 %v2064, 1.0
    %v2074 = vadd.f32 %v2066, 1.0
    %v2075 = vadd.f32 %v2068, 1.0
    %v2076 = vadd.f32 %v2070, 1.0
    %v2077 = vrcp.pop %v2071
    %v2078 = vmul.f32 1.0, %v2077
    %v2079 = vrcp.pop %v2072
    %v2080 = vmul.f32 1.0, %v2079
    %v2081 = vrcp.pop %v2073
    %v2082 = vmul.f32 1.0, %v2081
    %v2083 = vrcp.pop %v2074
    %v2084 = vmul.f32 1.0, %v2083
    %v2085 = vrcp.pop %v2075
    %v2086 = vmul.f32 1.0, %v2085
    %v2087 = vrcp.pop %v2076
    %v2088 = vmul.f32 1.0, %v2087
    %v2089 = vxor.u32 %v2021, 2147483648
    %v2090 = vxor.u32 %v2022, 2147483648
    %v2091 = vxor.u32 %v2023, 2147483648
    %v2092 = vxor.u32 %v2024, 2147483648
    %v2093 = vxor.u32 %v2025, 2147483648
    %v2094 = vxor.u32 %v2026, 2147483648
    %v2095 = vmul.f32 %v2089, 1.442695
    %v2096 = vpow.pop %v2095
    %v2097 = vmul.f32 %v2090, 1.442695
    %v2098 = vpow.pop %v2097
    %v2099 = vmul.f32 %v2091, 1.442695
    %v2100 = vpow.pop %v2099
    %v2101 = vmul.f32 %v2092, 1.442695
    %v2102 = vpow.pop %v2101
    %v2103 = vmul.f32 %v2093, 1.442695
    %v2104 = vpow.pop %v2103
    %v2105 = vmul.f32 %v2094, 1.442695
    %v2106 = vpow.pop %v2105
    %v2107 = vadd.f32 %v2096, 1.0
    %v2108 = vadd.f32 %v2098, 1.0
    %v2109 = vadd.f32 %v2100, 1.0
    %v2110 = vadd.f32 %v2102, 1.0
    %v2111 = vadd.f32 %v2104, 1.0
    %v2112 = vadd.f32 %v2106, 1.0
    %v2113 = vrcp.pop %v2107
    %v2114 = vmul.f32 1.0, %v2113
    %v2115 = vrcp.pop %v2108
    %v2116 = vmul.f32 1.0, %v2115
    %v2117 = vrcp.pop %v2109
    %v2118 = vmul.f32 1.0, %v2117
    %v2119 = vrcp.pop %v2110
    %v2120 = vmul.f32 1.0, %v2119
    %v2121 = vrcp.pop %v2111
    %v2122 = vmul.f32 1.0, %v2121
    %v2123 = vrcp.pop %v2112
    %v2124 = vmul.f32 1.0, %v2123
    %v2125 = vmul.f32 %v2078, %v2047
    %v2126 = vmul.f32 %v2080, %v2048
    %v2127 = vmul.f32 %v2082, %v2049
    %v2128 = vmul.f32 %v2084, %v2050
    %v2129 = vmul.f32 %v2086, %v2051
    %v2130 = vmul.f32 %v2088, %v2052
    %v2131 = vadd.f32 %v2037, %v2125
    %v2132 = vadd.f32 %v2038, %v2126
    %v2133 = vadd.f32 %v2039, %v2127
    %v2134 = vadd.f32 %v2040, %v2128
    %v2135 = vadd.f32 %v2041, %v2129
    %v2136 = vadd.f32 %v2042, %v2130
    %v2137 = vtanh.pop %v2131
    %v2138 = vtanh.pop %v2132
    %v2139 = vtanh.pop %v2133
    %v2140 = vtanh.pop %v2134
    %v2141 = vtanh.pop %v2135
    %v2142 = vtanh.pop %v2136
    %v2143 = vsub.f32 %v288, %v2137
    %v2144 = vsub.f32 %v289, %v2138
    %v2145 = vsub.f32 %v290, %v2139
    %v2146 = vsub.f32 %v291, %v2140
    %v2147 = vsub.f32 %v292, %v2141
    %v2148 = vsub.f32 %v293, %v2142
    %v2149 = vmul.f32 %v2114, %v2143
    %v2150 = vmul.f32 %v2116, %v2144
    %v2151 = vmul.f32 %v2118, %v2145
    %v2152 = vmul.f32 %v2120, %v2146
    %v2153 = vmul.f32 %v2122, %v2147
    %v2154 = vmul.f32 %v2124, %v2148
    %v2155 = vadd.f32 %v2137, %v2149
    %v2156 = vadd.f32 %v2138, %v2150
    %v2157 = vadd.f32 %v2139, %v2151
    %v2158 = vadd.f32 %v2140, %v2152
    %v2159 = vadd.f32 %v2141, %v2153
    %v2160 = vadd.f32 %v2142, %v2154
    %2161 = vst [vmem:[#allocation11] sm:$0xff] %v2155
    %2162 = vst [vmem:[#allocation11 + $0x8] sm:$0xff] %v2156
    %2163 = vst [vmem:[#allocation11 + $0x10] sm:$0xff] %v2157
    %2164 = vst [vmem:[#allocation11 + $0x18] sm:$0xff] %v2158
    %2165 = vst [vmem:[#allocation11 + $0x20] sm:$0xff] %v2159
    %2166 = vst [vmem:[#allocation11 + $0x28] sm:$0xff] %v2160
    // Predicated region
    $region42: #{tpu_custom_call.1} parent=1 // pred_check
      _
    $region43: #{tpu_custom_call.1} parent=1 // pred_check_branch
      %2168 = sbr.rel (0) target = $region45
    $region44: #{tpu_custom_call.1} parent=1 // pred_region
      %s2170 = ssub.s32 768, 768
      %2171 = vsyncadd [#allocation4], %s2170
      %s2172 = sshll.u32 [#allocation11], 4
      %s2173 = int_to_ptr.vmem [resolvable:$true] %s2172
      %2178 = dma.vmem_to_hbm [thread:$0]  %s2173, 768, %s5, [#allocation4], 128, 128, 8
    $region45: #{tpu_custom_call.1} parent=1 // pred_fallthru
      _
    // Predicated region
    $region46: #{tpu_custom_call.1} parent=1 // pred_check
      _
    $region47: #{tpu_custom_call.1} parent=1 // pred_check_branch
      %2180 = sbr.rel (0) target = $region49
    $region48: #{tpu_custom_call.1} parent=1 // pred_region
      %2181 = dma.done [#allocation4], 768
    $region49: #{tpu_custom_call.1} parent=1 // pred_fallthru
      _
    %2182 = vsyncpa [#allocation3], 1
    %2183 = vsyncpa [#allocation6], 1
    %2184 = vsyncpa [#allocation9], 1
    %2185 = vsyncpa [#allocation4], 1

// kernel: tpu_custom_call.1
$region0: #{tpu_custom_call.1}
  #allocation0 [shape = 'u32[]', space=smem, size = 0x4, offset = 0x4, fixed_abs, tag = 'smem constant byte address 0x4 - core index']
  #allocation1 [shape = 'u32[144,128]{1,0:T(1,128)}', space=vmem, size = 0x12000, scoped, tag = 'internal scratch']
  %s0 = inlined_call_operand.hbm [shape: bf16[6,8,8], index: 0, kind: input, shape index: {}]
  %s1 = inlined_call_operand.hbm [shape: bf16[6,8,8], index: 1, kind: input, shape index: {}]
  %s2 = inlined_call_operand.hbm [shape: f32[6,8,128], index: 2, kind: input, shape index: {}]
  %s3 = inlined_call_operand.hbm [shape: f32[128,1408], index: 3, kind: input, shape index: {}]
  %s4 = inlined_call_operand.hbm [shape: f32[8,128], index: 4, kind: input, shape index: {}]
  %s5 = inlined_call_operand.hbm [shape: f32[6,8,128], index: 5, kind: output, shape index: {}]
  %s6 = sld [smem:[#allocation0]]
  $region50: #{tpu_custom_call.1} parent=0
    _
  %s8 = ssub.s32 1, %s6
  %s9 = scalar_select 0, %s8, %s6
  $region1: #{tpu_custom_call.1} parent=0
    #allocation2 [shape = 'u8[12288]{0}', space=vmem, size = 0x3000, scoped, tag = 'input window, operand 0, single buffered']
    #allocation3 [shape = 's32[1]{0}', space=sflag, size = 0x4, scoped, tag = 'scoped memory for tpu_custom_call.1']
    #allocation4 [shape = 's32[1]{0}', space=sflag, size = 0x4, scoped, tag = 'scoped memory for tpu_custom_call.1']
    #allocation5 [shape = 'u8[12288]{0}', space=vmem, size = 0x3000, scoped, tag = 'input window, operand 1, single buffered']
    #allocation6 [shape = 's32[1]{0}', space=sflag, size = 0x4, scoped, tag = 'scoped memory for tpu_custom_call.1']
    #allocation7 [shape = 'u8[24576]{0}', space=vmem, size = 0x6000, scoped, tag = 'input window, operand 2, single buffered']
    #allocation8 [shape = 'u8[720896]{0}', space=vmem, size = 0xb0000, scoped, tag = 'input window, operand 3, single buffered']
    #allocation9 [shape = 's32[1]{0}', space=sflag, size = 0x4, scoped, tag = 'scoped memory for tpu_custom_call.1']
    #allocation10 [shape = 'u8[4096]{0}', space=vmem, size = 0x1000, scoped, tag = 'input window, operand 4, single buffered']
    #allocation11 [shape = 'u8[24576]{0}', space=vmem, size = 0x6000, scoped, tag = 'output window, operand 0, single buffered']
    %10 = vsyncpa [#allocation3], 0
    %11 = vsyncpa [#allocation6], 0
    %12 = vsyncpa [#allocation9], 0
    %13 = vsyncpa [#allocation4], 0
    // Predicated region
    $region2: #{tpu_custom_call.1} parent=1 // pred_check
      _
    $region3: #{tpu_custom_call.1} parent=1 // pred_check_branch
      %15 = sbr.rel (0) target = $region5
    $region4: #{tpu_custom_call.1} parent=1 // pred_region
      %s17 = ssub.s32 384, 384
      %18 = vsyncadd [#allocation3], %s17
      %s19 = sshll.u32 [#allocation2], 4
      %s20 = int_to_ptr.vmem [resolvable:$true] %s19
      %25 = dma.hbm_to_vmem [thread:$0]  %s0, 384, %s20, [#allocation3], 64, 64, 4
    $region5: #{tpu_custom_call.1} parent=1 // pred_fallthru
      _
    // Predicated region
    $region6: #{tpu_custom_call.1} parent=1 // pred_check
      _
    $region7: #{tpu_custom_call.1} parent=1 // pred_check_branch
      %27 = sbr.rel (0) target = $region9
    $region8: #{tpu_custom_call.1} parent=1 // pred_region
      %s29 = ssub.s32 384, 384
      %30 = vsyncadd [#allocation6], %s29
      %s31 = sshll.u32 [#allocation5], 4
      %s32 = int_to_ptr.vmem [resolvable:$true] %s31
      %37 = dma.hbm_to_vmem [thread:$0]  %s1, 384, %s32, [#allocation6], 64, 64, 4
    $region9: #{tpu_custom_call.1} parent=1 // pred_fallthru
      _
    // Predicated region
    $region10: #{tpu_custom_call.1} parent=1 // pred_check
      _
    $region11: #{tpu_custom_call.1} parent=1 // pred_check_branch
      %39 = sbr.rel (0) target = $region13
    $region12: #{tpu_custom_call.1} parent=1 // pred_region
      %s41 = ssub.s32 768, 768
      %42 = vsyncadd [#allocation6], %s41
      %s43 = sshll.u32 [#allocation7], 4
      %s44 = int_to_ptr.vmem [resolvable:$true] %s43
      %49 = dma.hbm_to_vmem [thread:$0]  %s2, 768, %s44, [#allocation6], 128, 128, 8
    $region13: #{tpu_custom_call.1} parent=1 // pred_fallthru
      _
    // Predicated region
    $region14: #{tpu_custom_call.1} parent=1 // pred_check
      _
    $region15: #{tpu_custom_call.1} parent=1 // pred_check_branch
      %51 = sbr.rel (0) target = $region17
    $region16: #{tpu_custom_call.1} parent=1 // pred_region
      %s53 = ssub.s32 22528, 22528
      %54 = vsyncadd [#allocation9], %s53
      %s55 = sshll.u32 [#allocation8], 4
      %s56 = int_to_ptr.vmem [resolvable:$true] %s55
      %61 = dma.hbm_to_vmem [thread:$0]  %s3, 22528, %s56, [#allocation9], 1408, 1408, 88
    $region17: #{tpu_custom_call.1} parent=1 // pred_fallthru
      _
    // Predicated region
    $region18: #{tpu_custom_call.1} parent=1 // pred_check
      _
    $region19: #{tpu_custom_call.1} parent=1 // pred_check_branch
      %63 = sbr.rel (0) target = $region21
    $region20: #{tpu_custom_call.1} parent=1 // pred_region
      %s65 = ssub.s32 128, 128
      %66 = vsyncadd [#allocation9], %s65
      %s68 = sshll.u32 [#allocation10], 4
      %s69 = int_to_ptr.vmem [resolvable:$true] %s68
      %71 = dma.hbm_to_vmem [thread:$0]  %s4, 128, %s69, [#allocation9]
    $region21: #{tpu_custom_call.1} parent=1 // pred_fallthru
      _
    // Predicated region
    $region22: #{tpu_custom_call.1} parent=1 // pred_check
      _
    $region23: #{tpu_custom_call.1} parent=1 // pred_check_branch
      %73 = sbr.rel (0) target = $region25
    $region24: #{tpu_custom_call.1} parent=1 // pred_region
      %74 = dma.done [#allocation3], 384
    $region25: #{tpu_custom_call.1} parent=1 // pred_fallthru
      _
    // Predicated region
    $region26: #{tpu_custom_call.1} parent=1 // pred_check
      _
    $region27: #{tpu_custom_call.1} parent=1 // pred_check_branch
      %76 = sbr.rel (0) target = $region29
    $region28: #{tpu_custom_call.1} parent=1 // pred_region
      %77 = dma.done [#allocation6], 384
    $region29: #{tpu_custom_call.1} parent=1 // pred_fallthru
      _
    // Predicated region
    $region30: #{tpu_custom_call.1} parent=1 // pred_check
      _
    $region31: #{tpu_custom_call.1} parent=1 // pred_check_branch
      %79 = sbr.rel (0) target = $region33
    $region32: #{tpu_custom_call.1} parent=1 // pred_region
      %80 = dma.done [#allocation6], 768
    $region33: #{tpu_custom_call.1} parent=1 // pred_fallthru
      _
    // Predicated region
    $region34: #{tpu_custom_call.1} parent=1 // pred_check
      _
    $region35: #{tpu_custom_call.1} parent=1 // pred_check_branch
      %82 = sbr.rel (0) target = $region37
    $region36: #{tpu_custom_call.1} parent=1 // pred_region
      %83 = dma.done [#allocation9], 22528
    $region37: #{tpu_custom_call.1} parent=1 // pred_fallthru
      _
    // Predicated region
    $region38: #{tpu_custom_call.1} parent=1 // pred_check
      _
    $region39: #{tpu_custom_call.1} parent=1 // pred_check_branch
      %85 = sbr.rel (0) target = $region41
    $region40: #{tpu_custom_call.1} parent=1 // pred_region
      %86 = dma.done [#allocation9], 128
    $region41: #{tpu_custom_call.1} parent=1 // pred_fallthru
      _
    %v87 = vld [vmem:[#allocation2] sm:$0xf]
    %v88 = vld [vmem:[#allocation2 + $0x4] sm:$0xf]
    %v89 = vld [vmem:[#allocation2 + $0x8] sm:$0xf]
    %v90 = vld [vmem:[#allocation2 + $0xc] sm:$0xf]
    %v91 = vld [vmem:[#allocation2 + $0x10] sm:$0xf]
    %v92 = vld [vmem:[#allocation2 + $0x14] sm:$0xf]
    %v93 = vunpack.c.l.bf16 %v87
    %v94 = vunpack.c.l.bf16 %v88
    %v95 = vunpack.c.l.bf16 %v89
    %v96 = vunpack.c.l.bf16 %v90
    %v97 = vunpack.c.l.bf16 %v91
    %v98 = vunpack.c.l.bf16 %v92
    %v99 = vld [vmem:[#allocation5] sm:$0xf]
    %v100 = vld [vmem:[#allocation5 + $0x4] sm:$0xf]
    %v101 = vld [vmem:[#allocation5 + $0x8] sm:$0xf]
    %v102 = vld [vmem:[#allocation5 + $0xc] sm:$0xf]
    %v103 = vld [vmem:[#allocation5 + $0x10] sm:$0xf]
    %v104 = vld [vmem:[#allocation5 + $0x14] sm:$0xf]
    %v105 = vunpack.c.l.bf16 %v99
    %v106 = vunpack.c.l.bf16 %v100
    %v107 = vunpack.c.l.bf16 %v101
    %v108 = vunpack.c.l.bf16 %v102
    %v109 = vunpack.c.l.bf16 %v103
    %v110 = vunpack.c.l.bf16 %v104
    %v111 = vld [vmem:[#allocation10] sm:$0xff]
    %v112 = vld [vmem:[#allocation8] sm:$0xff]
    %v113 = vld [vmem:[#allocation8 + $0x8] sm:$0xff]
    %v114 = vld [vmem:[#allocation8 + $0x10] sm:$0xff]
    %v115 = vld [vmem:[#allocation8 + $0x18] sm:$0xff]
    %v116 = vld [vmem:[#allocation8 + $0x20] sm:$0xff]
    %v117 = vld [vmem:[#allocation8 + $0x58] sm:$0xff]
    %v118 = vld [vmem:[#allocation8 + $0x60] sm:$0xff]
    %v119 = vld [vmem:[#allocation8 + $0x68] sm:$0xff]
    %v120 = vld [vmem:[#allocation8 + $0x70] sm:$0xff]
    %v121 = vld [vmem:[#allocation8 + $0x78] sm:$0xff]
    %v122 = vld [vmem:[#allocation8 + $0xb0] sm:$0xff]
    %v123 = vld [vmem:[#allocation8 + $0xb8] sm:$0xff]
    %v124 = vld [vmem:[#allocation8 + $0xc0] sm:$0xff]
    %v125 = vld [vmem:[#allocation8 + $0xc8] sm:$0xff]
    %v126 = vld [vmem:[#allocation8 + $0xd0] sm:$0xff]
    %v127 = vld [vmem:[#allocation8 + $0x108] sm:$0xff]
    %v128 = vld [vmem:[#allocation8 + $0x110] sm:$0xff]
    %v129 = vld [vmem:[#allocation8 + $0x118] sm:$0xff]
    %v130 = vld [vmem:[#allocation8 + $0x120] sm:$0xff]
    %v131 = vld [vmem:[#allocation8 + $0x128] sm:$0xff]
    %v132 = vld [vmem:[#allocation8 + $0x160] sm:$0xff]
    %v133 = vld [vmem:[#allocation8 + $0x168] sm:$0xff]
    %v134 = vld [vmem:[#allocation8 + $0x170] sm:$0xff]
    %v135 = vld [vmem:[#allocation8 + $0x178] sm:$0xff]
    %v136 = vld [vmem:[#allocation8 + $0x180] sm:$0xff]
    %v137 = vld [vmem:[#allocation8 + $0x1b8] sm:$0xff]
    %v138 = vld [vmem:[#allocation8 + $0x1c0] sm:$0xff]
    %v139 = vld [vmem:[#allocation8 + $0x1c8] sm:$0xff]
    %v140 = vld [vmem:[#allocation8 + $0x1d0] sm:$0xff]
    %v141 = vld [vmem:[#allocation8 + $0x1d8] sm:$0xff]
    %v142 = vld [vmem:[#allocation8 + $0x210] sm:$0xff]
    %v143 = vld [vmem:[#allocation8 + $0x218] sm:$0xff]
    %v144 = vld [vmem:[#allocation8 + $0x220] sm:$0xff]
    %v145 = vld [vmem:[#allocation8 + $0x228] sm:$0xff]
    %v146 = vld [vmem:[#allocation8 + $0x230] sm:$0xff]
    %v147 = vld [vmem:[#allocation8 + $0x268] sm:$0xff]
    %v148 = vld [vmem:[#allocation8 + $0x270] sm:$0xff]
    %v149 = vld [vmem:[#allocation8 + $0x278] sm:$0xff]
    %v150 = vld [vmem:[#allocation8 + $0x280] sm:$0xff]
    %v151 = vld [vmem:[#allocation8 + $0x288] sm:$0xff]
    %v152 = vld [vmem:[#allocation8 + $0x2c0] sm:$0xff]
    %v153 = vld [vmem:[#allocation8 + $0x2c8] sm:$0xff]
    %v154 = vld [vmem:[#allocation8 + $0x2d0] sm:$0xff]
    %v155 = vld [vmem:[#allocation8 + $0x2d8] sm:$0xff]
    %v156 = vld [vmem:[#allocation8 + $0x2e0] sm:$0xff]
    %v157 = vld [vmem:[#allocation8 + $0x318] sm:$0xff]
    %v158 = vld [vmem:[#allocation8 + $0x320] sm:$0xff]
    %v159 = vld [vmem:[#allocation8 + $0x328] sm:$0xff]
    %v160 = vld [vmem:[#allocation8 + $0x330] sm:$0xff]
    %v161 = vld [vmem:[#allocation8 + $0x338] sm:$0xff]
    %v162 = vld [vmem:[#allocation8 + $0x370] sm:$0xff]
    %v163 = vld [vmem:[#allocation8 + $0x378] sm:$0xff]
    %v164 = vld [vmem:[#allocation8 + $0x380] sm:$0xff]
    %v165 = vld [vmem:[#allocation8 + $0x388] sm:$0xff]
    %v166 = vld [vmem:[#allocation8 + $0x390] sm:$0xff]
    %v167 = vld [vmem:[#allocation8 + $0x3c8] sm:$0xff]
    %v168 = vld [vmem:[#allocation8 + $0x3d0] sm:$0xff]
    %v169 = vld [vmem:[#allocation8 + $0x3d8] sm:$0xff]
    %v170 = vld [vmem:[#allocation8 + $0x3e0] sm:$0xff]
    %v171 = vld [vmem:[#allocation8 + $0x3e8] sm:$0xff]
    %v172 = vld [vmem:[#allocation8 + $0x420] sm:$0xff]
    %v173 = vld [vmem:[#allocation8 + $0x428] sm:$0xff]
    %v174 = vld [vmem:[#allocation8 + $0x430] sm:$0xff]
    %v175 = vld [vmem:[#allocation8 + $0x438] sm:$0xff]
    %v176 = vld [vmem:[#allocation8 + $0x440] sm:$0xff]
    %v177 = vld [vmem:[#allocation8 + $0x478] sm:$0xff]
    %v178 = vld [vmem:[#allocation8 + $0x480] sm:$0xff]
    %v179 = vld [vmem:[#allocation8 + $0x488] sm:$0xff]
    %v180 = vld [vmem:[#allocation8 + $0x490] sm:$0xff]
    %v181 = vld [vmem:[#allocation8 + $0x498] sm:$0xff]
    %v182 = vld [vmem:[#allocation8 + $0x4d0] sm:$0xff]
    %v183 = vld [vmem:[#allocation8 + $0x4d8] sm:$0xff]
    %v184 = vld [vmem:[#allocation8 + $0x4e0] sm:$0xff]
    %v185 = vld [vmem:[#allocation8 + $0x4e8] sm:$0xff]
    %v186 = vld [vmem:[#allocation8 + $0x4f0] sm:$0xff]
    %v187 = vld [vmem:[#allocation8 + $0x528] sm:$0xff]
    %v188 = vld [vmem:[#allocation8 + $0x530] sm:$0xff]
    %v189 = vld [vmem:[#allocation8 + $0x538] sm:$0xff]
    %v190 = vld [vmem:[#allocation8 + $0x540] sm:$0xff]
    %v191 = vld [vmem:[#allocation8 + $0x548] sm:$0xff]
    %v192 = vld [vmem:[#allocation8 + $0x28] sm:$0xff]
    %v193 = vld [vmem:[#allocation8 + $0x30] sm:$0xff]
    %v194 = vld [vmem:[#allocation8 + $0x38] sm:$0xff]
    %v195 = vld [vmem:[#allocation8 + $0x80] sm:$0xff]
    %v196 = vld [vmem:[#allocation8 + $0x88] sm:$0xff]
    %v197 = vld [vmem:[#allocation8 + $0x90] sm:$0xff]
    %v198 = vld [vmem:[#allocation8 + $0xd8] sm:$0xff]
    %v199 = vld [vmem:[#allocation8 + $0xe0] sm:$0xff]
    %v200 = vld [vmem:[#allocation8 + $0xe8] sm:$0xff]
    %v201 = vld [vmem:[#allocation8 + $0x130] sm:$0xff]
    %v202 = vld [vmem:[#allocation8 + $0x138] sm:$0xff]
    %v203 = vld [vmem:[#allocation8 + $0x140] sm:$0xff]
    %v204 = vld [vmem:[#allocation8 + $0x188] sm:$0xff]
    %v205 = vld [vmem:[#allocation8 + $0x190] sm:$0xff]
    %v206 = vld [vmem:[#allocation8 + $0x198] sm:$0xff]
    %v207 = vld [vmem:[#allocation8 + $0x1e0] sm:$0xff]
    %v208 = vld [vmem:[#allocation8 + $0x1e8] sm:$0xff]
    %v209 = vld [vmem:[#allocation8 + $0x1f0] sm:$0xff]
    %v210 = vld [vmem:[#allocation8 + $0x238] sm:$0xff]
    %v211 = vld [vmem:[#allocation8 + $0x240] sm:$0xff]
    %v212 = vld [vmem:[#allocation8 + $0x248] sm:$0xff]
    %v213 = vld [vmem:[#allocation8 + $0x290] sm:$0xff]
    %v214 = vld [vmem:[#allocation8 + $0x298] sm:$0xff]
    %v215 = vld [vmem:[#allocation8 + $0x2a0] sm:$0xff]
    %v216 = vld [vmem:[#allocation8 + $0x2e8] sm:$0xff]
    %v217 = vld [vmem:[#allocation8 + $0x2f0] sm:$0xff]
    %v218 = vld [vmem:[#allocation8 + $0x2f8] sm:$0xff]
    %v219 = vld [vmem:[#allocation8 + $0x340] sm:$0xff]
    %v220 = vld [vmem:[#allocation8 + $0x348] sm:$0xff]
    %v221 = vld [vmem:[#allocation8 + $0x350] sm:$0xff]
    %v222 = vld [vmem:[#allocation8 + $0x398] sm:$0xff]
    %v223 = vld [vmem:[#allocation8 + $0x3a0] sm:$0xff]
    %v224 = vld [vmem:[#allocation8 + $0x3a8] sm:$0xff]
    %v225 = vld [vmem:[#allocation8 + $0x3f0] sm:$0xff]
    %v226 = vld [vmem:[#allocation8 + $0x3f8] sm:$0xff]
    %v227 = vld [vmem:[#allocation8 + $0x400] sm:$0xff]
    %v228 = vld [vmem:[#allocation8 + $0x448] sm:$0xff]
    %v229 = vld [vmem:[#allocation8 + $0x450] sm:$0xff]
    %v230 = vld [vmem:[#allocation8 + $0x458] sm:$0xff]
    %v231 = vld [vmem:[#allocation8 + $0x4a0] sm:$0xff]
    %v232 = vld [vmem:[#allocation8 + $0x4a8] sm:$0xff]
    %v233 = vld [vmem:[#allocation8 + $0x4b0] sm:$0xff]
    %v234 = vld [vmem:[#allocation8 + $0x4f8] sm:$0xff]
    %v235 = vld [vmem:[#allocation8 + $0x500] sm:$0xff]
    %v236 = vld [vmem:[#allocation8 + $0x508] sm:$0xff]
    %v237 = vld [vmem:[#allocation8 + $0x550] sm:$0xff]
    %v238 = vld [vmem:[#allocation8 + $0x558] sm:$0xff]
    %v239 = vld [vmem:[#allocation8 + $0x560] sm:$0xff]
    %v240 = vld [vmem:[#allocation8 + $0x40] sm:$0xff]
    %v241 = vld [vmem:[#allocation8 + $0x48] sm:$0xff]
    %v242 = vld [vmem:[#allocation8 + $0x50] sm:$0xff]
    %v243 = vld [vmem:[#allocation8 + $0x98] sm:$0xff]
    %v244 = vld [vmem:[#allocation8 + $0xa0] sm:$0xff]
    %v245 = vld [vmem:[#allocation8 + $0xa8] sm:$0xff]
    %v246 = vld [vmem:[#allocation8 + $0xf0] sm:$0xff]
    %v247 = vld [vmem:[#allocation8 + $0xf8] sm:$0xff]
    %v248 = vld [vmem:[#allocation8 + $0x100] sm:$0xff]
    %v249 = vld [vmem:[#allocation8 + $0x148] sm:$0xff]
    %v250 = vld [vmem:[#allocation8 + $0x150] sm:$0xff]
    %v251 = vld [vmem:[#allocation8 + $0x158] sm:$0xff]
    %v252 = vld [vmem:[#allocation8 + $0x1a0] sm:$0xff]
    %v253 = vld [vmem:[#allocation8 + $0x1a8] sm:$0xff]
    %v254 = vld [vmem:[#allocation8 + $0x1b0] sm:$0xff]
    %v255 = vld [vmem:[#allocation8 + $0x1f8] sm:$0xff]
    %v256 = vld [vmem:[#allocation8 + $0x200] sm:$0xff]
    %v257 = vld [vmem:[#allocation8 + $0x208] sm:$0xff]
    %v258 = vld [vmem:[#allocation8 + $0x250] sm:$0xff]
    %v259 = vld [vmem:[#allocation8 + $0x258] sm:$0xff]
    %v260 = vld [vmem:[#allocation8 + $0x260] sm:$0xff]
    %v261 = vld [vmem:[#allocation8 + $0x2a8] sm:$0xff]
    %v262 = vld [vmem:[#allocation8 + $0x2b0] sm:$0xff]
    %v263 = vld [vmem:[#allocation8 + $0x2b8] sm:$0xff]
    %v264 = vld [vmem:[#allocation8 + $0x300] sm:$0xff]
    %v265 = vld [vmem:[#allocation8 + $0x308] sm:$0xff]
    %v266 = vld [vmem:[#allocation8 + $0x310] sm:$0xff]
    %v267 = vld [vmem:[#allocation8 + $0x358] sm:$0xff]
    %v268 = vld [vmem:[#allocation8 + $0x360] sm:$0xff]
    %v269 = vld [vmem:[#allocation8 + $0x368] sm:$0xff]
    %v270 = vld [vmem:[#allocation8 + $0x3b0] sm:$0xff]
    %v271 = vld [vmem:[#allocation8 + $0x3b8] sm:$0xff]
    %v272 = vld [vmem:[#allocation8 + $0x3c0] sm:$0xff]
    %v273 = vld [vmem:[#allocation8 + $0x408] sm:$0xff]
    %v274 = vld [vmem:[#allocation8 + $0x410] sm:$0xff]
    %v275 = vld [vmem:[#allocation8 + $0x418] sm:$0xff]
    %v276 = vld [vmem:[#allocation8 + $0x460] sm:$0xff]
    %v277 = vld [vmem:[#allocation8 + $0x468] sm:$0xff]
    %v278 = vld [vmem:[#allocation8 + $0x470] sm:$0xff]
    %v279 = vld [vmem:[#allocation8 + $0x4b8] sm:$0xff]
    %v280 = vld [vmem:[#allocation8 + $0x4c0] sm:$0xff]
    %v281 = vld [vmem:[#allocation8 + $0x4c8] sm:$0xff]
    %v282 = vld [vmem:[#allocation8 + $0x510] sm:$0xff]
    %v283 = vld [vmem:[#allocation8 + $0x518] sm:$0xff]
    %v284 = vld [vmem:[#allocation8 + $0x520] sm:$0xff]
    %v285 = vld [vmem:[#allocation8 + $0x568] sm:$0xff]
    %v286 = vld [vmem:[#allocation8 + $0x570] sm:$0xff]
    %v287 = vld [vmem:[#allocation8 + $0x578] sm:$0xff]
    %v288 = vld [vmem:[#allocation7] sm:$0xff]
    %v289 = vld [vmem:[#allocation7 + $0x8] sm:$0xff]
    %v290 = vld [vmem:[#allocation7 + $0x10] sm:$0xff]
    %v291 = vld [vmem:[#allocation7 + $0x18] sm:$0xff]
    %v292 = vld [vmem:[#allocation7 + $0x20] sm:$0xff]
    %v293 = vld [vmem:[#allocation7 + $0x28] sm:$0xff]
    %294 = vmatprep.subr.mxu0 %v188
    %295 = vmatpush1.msra.mxu0 %v187
    %296 = vmatprep.subr.mxu0 %v183
    %297 = vmatpush1.msra.mxu0 %v182
    %298 = vmatprep.subr.mxu0 %v178
    %299 = vmatpush1.msra.mxu0 %v177
    %300 = vmatprep.subr.mxu0 %v173
    %301 = vmatpush1.msra.mxu0 %v172
    %302 = vmatprep.subr.mxu0 %v168
    %303 = vmatpush1.msra.mxu0 %v167
    %304 = vmatprep.subr.mxu0 %v163
    %305 = vmatpush1.msra.mxu0 %v162
    %306 = vmatprep.subr.mxu0 %v158
    %307 = vmatpush1.msra.mxu0 %v157
    %308 = vmatprep.subr.mxu0 %v153
    %309 = vmatpush1.msra.mxu0 %v152
    %310 = vmatprep.subr.mxu0 %v148
    %311 = vmatpush1.msra.mxu0 %v147
    %312 = vmatprep.subr.mxu0 %v143
    %313 = vmatpush1.msra.mxu0 %v142
    %314 = vmatprep.subr.mxu0 %v138
    %315 = vmatpush1.msra.mxu0 %v137
    %316 = vmatprep.subr.mxu0 %v133
    %317 = vmatpush1.msra.mxu0 %v132
    %318 = vmatprep.subr.mxu0 %v128
    %319 = vmatpush1.msra.mxu0 %v127
    %320 = vmatprep.subr.mxu0 %v123
    %321 = vmatpush1.msra.mxu0 %v122
    %322 = vmatprep.subr.mxu0 %v118
    %323 = vmatpush1.msra.mxu0 %v117
    %324 = vmatprep.subr.mxu0 %v113
    %325 = vmatpush1.msra.mxu0 %v112
    %326 = vmatprep.subr.mxu0 0.0
    %327 = vmatpush2.msra.mxu0 0.0
    %328 = vmatprep.subr.mxu0 0.0
    %329 = vmatpush2.msra.mxu0 0.0
    %330 = vmatprep.subr.mxu0 0.0
    %331 = vmatpush2.msra.mxu0 0.0
    %332 = vmatprep.subr.mxu0 0.0
    %333 = vmatpush2.msra.mxu0 0.0
    %334 = vmatprep.subr.mxu0 0.0
    %335 = vmatpush2.msra.mxu0 0.0
    %336 = vmatprep.subr.mxu0 0.0
    %337 = vmatpush2.msra.mxu0 0.0
    %338 = vmatprep.subr.mxu0 0.0
    %339 = vmatpush2.msra.mxu0 0.0
    %340 = vmatprep.subr.mxu0 0.0
    %341 = vmatpush2.msra.mxu0 0.0
    %342 = vmatprep.subr.mxu0 0.0
    %343 = vmatpush2.msra.mxu0 0.0
    %344 = vmatprep.subr.mxu0 0.0
    %345 = vmatpush2.msra.mxu0 0.0
    %346 = vmatprep.subr.mxu0 0.0
    %347 = vmatpush2.msra.mxu0 0.0
    %348 = vmatprep.subr.mxu0 0.0
    %349 = vmatpush2.msra.mxu0 0.0
    %350 = vmatprep.subr.mxu0 0.0
    %351 = vmatpush2.msra.mxu0 0.0
    %352 = vmatprep.subr.mxu0 0.0
    %353 = vmatpush2.msra.mxu0 0.0
    %354 = vmatprep.subr.mxu0 0.0
    %355 = vmatpush2.msra.mxu0 0.0
    %356 = vmatprep.subr.mxu0 0.0
    %357 = vmatpush2.msra.mxu0 0.0
    %358 = vmatprep.mubr.f32.mxu0 0.0
    %359 = vmatmul.mubr.f32.gmra.mxu0 %v288
    %v360 = vpop.f32.mrf.mxu0
    %v361 = vadd.f32 0.0, %v360
    %v362 = vpop.f32.mrf.mxu0
    %v363 = vadd.f32 0.0, %v362
    %364 = vmatprep.mubr.f32.mxu0 0.0
    %365 = vmatmul.mubr.f32.gmra.mxu0 %v289
    %v366 = vpop.f32.mrf.mxu0
    %v367 = vadd.f32 0.0, %v366
    %v368 = vpop.f32.mrf.mxu0
    %v369 = vadd.f32 0.0, %v368
    %370 = vmatprep.mubr.f32.mxu0 0.0
    %371 = vmatmul.mubr.f32.gmra.mxu0 %v290
    %v372 = vpop.f32.mrf.mxu0
    %v373 = vadd.f32 0.0, %v372
    %v374 = vpop.f32.mrf.mxu0
    %v375 = vadd.f32 0.0, %v374
    %376 = vmatprep.mubr.f32.mxu0 0.0
    %377 = vmatmul.mubr.f32.gmra.mxu0 %v291
    %v378 = vpop.f32.mrf.mxu0
    %v379 = vadd.f32 0.0, %v378
    %v380 = vpop.f32.mrf.mxu0
    %v381 = vadd.f32 0.0, %v380
    %382 = vmatprep.mubr.f32.mxu0 0.0
    %383 = vmatmul.mubr.f32.gmra.mxu0 %v292
    %v384 = vpop.f32.mrf.mxu0
    %v385 = vadd.f32 0.0, %v384
    %v386 = vpop.f32.mrf.mxu0
    %v387 = vadd.f32 0.0, %v386
    %388 = vmatprep.mubr.f32.mxu0 0.0
    %389 = vmatmul.mubr.f32.gmra.mxu0 %v293
    %v390 = vpop.f32.mrf.mxu0
    %v391 = vadd.f32 0.0, %v390
    %v392 = vpop.f32.mrf.mxu0
    %v393 = vadd.f32 0.0, %v392
    %394 = vdwg.mxu0
    %395 = vmatprep.subr.mxu0 %v190
    %396 = vmatpush1.msra.mxu0 %v189
    %397 = vmatprep.subr.mxu0 %v185
    %398 = vmatpush1.msra.mxu0 %v184
    %399 = vmatprep.subr.mxu0 %v180
    %400 = vmatpush1.msra.mxu0 %v179
    %401 = vmatprep.subr.mxu0 %v175
    %402 = vmatpush1.msra.mxu0 %v174
    %403 = vmatprep.subr.mxu0 %v170
    %404 = vmatpush1.msra.mxu0 %v169
    %405 = vmatprep.subr.mxu0 %v165
    %406 = vmatpush1.msra.mxu0 %v164
    %407 = vmatprep.subr.mxu0 %v160
    %408 = vmatpush1.msra.mxu0 %v159
    %409 = vmatprep.subr.mxu0 %v155
    %410 = vmatpush1.msra.mxu0 %v154
    %411 = vmatprep.subr.mxu0 %v150
    %412 = vmatpush1.msra.mxu0 %v149
    %413 = vmatprep.subr.mxu0 %v145
    %414 = vmatpush1.msra.mxu0 %v144
    %415 = vmatprep.subr.mxu0 %v140
    %416 = vmatpush1.msra.mxu0 %v139
    %417 = vmatprep.subr.mxu0 %v135
    %418 = vmatpush1.msra.mxu0 %v134
    %419 = vmatprep.subr.mxu0 %v130
    %420 = vmatpush1.msra.mxu0 %v129
    %421 = vmatprep.subr.mxu0 %v125
    %422 = vmatpush1.msra.mxu0 %v124
    %423 = vmatprep.subr.mxu0 %v120
    %424 = vmatpush1.msra.mxu0 %v119
    %425 = vmatprep.subr.mxu0 %v115
    %426 = vmatpush1.msra.mxu0 %v114
    %427 = vmatprep.subr.mxu0 0.0
    %428 = vmatpush2.msra.mxu0 0.0
    %429 = vmatprep.subr.mxu0 0.0
    %430 = vmatpush2.msra.mxu0 0.0
    %431 = vmatprep.subr.mxu0 0.0
    %432 = vmatpush2.msra.mxu0 0.0
    %433 = vmatprep.subr.mxu0 0.0
    %434 = vmatpush2.msra.mxu0 0.0
    %435 = vmatprep.subr.mxu0 0.0
    %436 = vmatpush2.msra.mxu0 0.0
    %437 = vmatprep.subr.mxu0 0.0
    %438 = vmatpush2.msra.mxu0 0.0
    %439 = vmatprep.subr.mxu0 0.0
    %440 = vmatpush2.msra.mxu0 0.0
    %441 = vmatprep.subr.mxu0 0.0
    %442 = vmatpush2.msra.mxu0 0.0
    %443 = vmatprep.subr.mxu0 0.0
    %444 = vmatpush2.msra.mxu0 0.0
    %445 = vmatprep.subr.mxu0 0.0
    %446 = vmatpush2.msra.mxu0 0.0
    %447 = vmatprep.subr.mxu0 0.0
    %448 = vmatpush2.msra.mxu0 0.0
    %449 = vmatprep.subr.mxu0 0.0
    %450 = vmatpush2.msra.mxu0 0.0
    %451 = vmatprep.subr.mxu0 0.0
    %452 = vmatpush2.msra.mxu0 0.0
    %453 = vmatprep.subr.mxu0 0.0
    %454 = vmatpush2.msra.mxu0 0.0
    %455 = vmatprep.subr.mxu0 0.0
    %456 = vmatpush2.msra.mxu0 0.0
    %457 = vmatprep.subr.mxu0 0.0
    %458 = vmatpush2.msra.mxu0 0.0
    %459 = vmatprep.mubr.f32.mxu0 0.0
    %460 = vmatmul.mubr.f32.gmra.mxu0 %v288
    %v461 = vpop.f32.mrf.mxu0
    %v462 = vadd.f32 0.0, %v461
    %v463 = vpop.f32.mrf.mxu0
    %v464 = vadd.f32 0.0, %v463
    %465 = vmatprep.mubr.f32.mxu0 0.0
    %466 = vmatmul.mubr.f32.gmra.mxu0 %v289
    %v467 = vpop.f32.mrf.mxu0
    %v468 = vadd.f32 0.0, %v467
    %v469 = vpop.f32.mrf.mxu0
    %v470 = vadd.f32 0.0, %v469
    %471 = vmatprep.mubr.f32.mxu0 0.0
    %472 = vmatmul.mubr.f32.gmra.mxu0 %v290
    %v473 = vpop.f32.mrf.mxu0
    %v474 = vadd.f32 0.0, %v473
    %v475 = vpop.f32.mrf.mxu0
    %v476 = vadd.f32 0.0, %v475
    %477 = vmatprep.mubr.f32.mxu0 0.0
    %478 = vmatmul.mubr.f32.gmra.mxu0 %v291
    %v479 = vpop.f32.mrf.mxu0
    %v480 = vadd.f32 0.0, %v479
    %v481 = vpop.f32.mrf.mxu0
    %v482 = vadd.f32 0.0, %v481
    %483 = vmatprep.mubr.f32.mxu0 0.0
    %484 = vmatmul.mubr.f32.gmra.mxu0 %v292
    %v485 = vpop.f32.mrf.mxu0
    %v486 = vadd.f32 0.0, %v485
    %v487 = vpop.f32.mrf.mxu0
    %v488 = vadd.f32 0.0, %v487
    %489 = vmatprep.mubr.f32.mxu0 0.0
    %490 = vmatmul.mubr.f32.gmra.mxu0 %v293
    %v491 = vpop.f32.mrf.mxu0
    %v492 = vadd.f32 0.0, %v491
    %v493 = vpop.f32.mrf.mxu0
    %v494 = vadd.f32 0.0, %v493
    %495 = vdwg.mxu0
    %496 = vmatprep.subr.mxu0 0.0
    %497 = vmatpush1.msra.mxu0 %v191
    %498 = vmatprep.subr.mxu0 0.0
    %499 = vmatpush1.msra.mxu0 %v186
    %500 = vmatprep.subr.mxu0 0.0
    %501 = vmatpush1.msra.mxu0 %v181
    %502 = vmatprep.subr.mxu0 0.0
    %503 = vmatpush1.msra.mxu0 %v176
    %504 = vmatprep.subr.mxu0 0.0
    %505 = vmatpush1.msra.mxu0 %v171
    %506 = vmatprep.subr.mxu0 0.0
    %507 = vmatpush1.msra.mxu0 %v166
    %508 = vmatprep.subr.mxu0 0.0
    %509 = vmatpush1.msra.mxu0 %v161
    %510 = vmatprep.subr.mxu0 0.0
    %511 = vmatpush1.msra.mxu0 %v156
    %512 = vmatprep.subr.mxu0 0.0
    %513 = vmatpush1.msra.mxu0 %v151
    %514 = vmatprep.subr.mxu0 0.0
    %515 = vmatpush1.msra.mxu0 %v146
    %516 = vmatprep.subr.mxu0 0.0
    %517 = vmatpush1.msra.mxu0 %v141
    %518 = vmatprep.subr.mxu0 0.0
    %519 = vmatpush1.msra.mxu0 %v136
    %520 = vmatprep.subr.mxu0 0.0
    %521 = vmatpush1.msra.mxu0 %v131
    %522 = vmatprep.subr.mxu0 0.0
    %523 = vmatpush1.msra.mxu0 %v126
    %524 = vmatprep.subr.mxu0 0.0
    %525 = vmatpush1.msra.mxu0 %v121
    %526 = vmatprep.subr.mxu0 0.0
    %527 = vmatpush1.msra.mxu0 %v116
    %528 = vmatprep.subr.mxu0 0.0
    %529 = vmatpush2.msra.mxu0 0.0
    %530 = vmatprep.subr.mxu0 0.0
    %531 = vmatpush2.msra.mxu0 0.0
    %532 = vmatprep.subr.mxu0 0.0
    %533 = vmatpush2.msra.mxu0 0.0
    %534 = vmatprep.subr.mxu0 0.0
    %535 = vmatpush2.msra.mxu0 0.0
    %536 = vmatprep.subr.mxu0 0.0
    %537 = vmatpush2.msra.mxu0 0.0
    %538 = vmatprep.subr.mxu0 0.0
    %539 = vmatpush2.msra.mxu0 0.0
    %540 = vmatprep.subr.mxu0 0.0
    %541 = vmatpush2.msra.mxu0 0.0
    %542 = vmatprep.subr.mxu0 0.0
    %543 = vmatpush2.msra.mxu0 0.0
    %544 = vmatprep.subr.mxu0 0.0
    %545 = vmatpush2.msra.mxu0 0.0
    %546 = vmatprep.subr.mxu0 0.0
    %547 = vmatpush2.msra.mxu0 0.0
    %548 = vmatprep.subr.mxu0 0.0
    %549 = vmatpush2.msra.mxu0 0.0
    %550 = vmatprep.subr.mxu0 0.0
    %551 = vmatpush2.msra.mxu0 0.0
    %552 = vmatprep.subr.mxu0 0.0
    %553 = vmatpush2.msra.mxu0 0.0
    %554 = vmatprep.subr.mxu0 0.0
    %555 = vmatpush2.msra.mxu0 0.0
    %556 = vmatprep.subr.mxu0 0.0
    %557 = vmatpush2.msra.mxu0 0.0
    %558 = vmatprep.subr.mxu0 0.0
    %559 = vmatpush2.msra.mxu0 0.0
    %560 = vmatprep.mubr.f32.mxu0 0.0
    %561 = vmatmul.mubr.f32.gmra.mxu0 %v288
    %v562 = vpop.f32.mrf.mxu0
    %v563 = vadd.f32 0.0, %v562
    %v564 = vpop.f32.mrf.mxu0
    %565 = vmatprep.mubr.f32.mxu0 0.0
    %566 = vmatmul.mubr.f32.gmra.mxu0 %v289
    %v567 = vpop.f32.mrf.mxu0
    %v568 = vadd.f32 0.0, %v567
    %v569 = vpop.f32.mrf.mxu0
    %570 = vmatprep.mubr.f32.mxu0 0.0
    %571 = vmatmul.mubr.f32.gmra.mxu0 %v290
    %v572 = vpop.f32.mrf.mxu0
    %v573 = vadd.f32 0.0, %v572
    %v574 = vpop.f32.mrf.mxu0
    %575 = vmatprep.mubr.f32.mxu0 0.0
    %576 = vmatmul.mubr.f32.gmra.mxu0 %v291
    %v577 = vpop.f32.mrf.mxu0
    %v578 = vadd.f32 0.0, %v577
    %v579 = vpop.f32.mrf.mxu0
    %580 = vmatprep.mubr.f32.mxu0 0.0
    %581 = vmatmul.mubr.f32.gmra.mxu0 %v292
    %v582 = vpop.f32.mrf.mxu0
    %v583 = vadd.f32 0.0, %v582
    %v584 = vpop.f32.mrf.mxu0
    %585 = vmatprep.mubr.f32.mxu0 0.0
    %586 = vmatmul.mubr.f32.gmra.mxu0 %v293
    %v587 = vpop.f32.mrf.mxu0
    %v588 = vadd.f32 0.0, %v587
    %v589 = vpop.f32.mrf.mxu0
    %590 = vdwg.mxu0
    %v591 = vlaneseq
    %v592 = vshrl.u32 %v591, 7
    %v593 = vsub.s32 0, %v592
    %v594 = vrot.slane %v111, %v593
    %v595 = vadd.f32 %v361, %v594
    %v596 = vadd.f32 %v367, %v594
    %v597 = vadd.f32 %v373, %v594
    %v598 = vadd.f32 %v379, %v594
    %v599 = vadd.f32 %v385, %v594
    %v600 = vadd.f32 %v391, %v594
    %v601 = vlaneseq
    %v602 = vshrl.u32 %v601, 7
    %v603 = vsub.s32 1, %v602
    %v604 = vrot.slane %v111, %v603
    %v605 = vadd.f32 %v363, %v604
    %v606 = vadd.f32 %v369, %v604
    %v607 = vadd.f32 %v375, %v604
    %v608 = vadd.f32 %v381, %v604
    %v609 = vadd.f32 %v387, %v604
    %v610 = vadd.f32 %v393, %v604
    %612 = vset.pattern.permute.xlu0 0
    %613 = vperm.xlu0 %612, %v93
    %v614 = vpop.permute.xlu0 %613
    %617 = vset.pattern.permute.xlu0 0
    %618 = vperm.xlu0 %617, %v94
    %v619 = vpop.permute.xlu0 %618
    %622 = vset.pattern.permute.xlu0 0
    %623 = vperm.xlu0 %622, %v95
    %v624 = vpop.permute.xlu0 %623
    %627 = vset.pattern.permute.xlu0 0
    %628 = vperm.xlu0 %627, %v96
    %v629 = vpop.permute.xlu0 %628
    %632 = vset.pattern.permute.xlu0 0
    %633 = vperm.xlu0 %632, %v97
    %v634 = vpop.permute.xlu0 %633
    %637 = vset.pattern.permute.xlu0 0
    %638 = vperm.xlu0 %637, %v98
    %v639 = vpop.permute.xlu0 %638
    %v641 = vlaneseq
    %v642 = vshrl.u32 %v641, 7
    %v643 = vsub.s32 0, %v642
    %v644 = vrot.slane %v595, %v643
    %v645 = vlaneseq
    %v646 = vshrl.u32 %v645, 7
    %v647 = vsub.s32 0, %v646
    %v648 = vrot.slane %v596, %v647
    %v649 = vlaneseq
    %v650 = vshrl.u32 %v649, 7
    %v651 = vsub.s32 0, %v650
    %v652 = vrot.slane %v597, %v651
    %v653 = vlaneseq
    %v654 = vshrl.u32 %v653, 7
    %v655 = vsub.s32 0, %v654
    %v656 = vrot.slane %v598, %v655
    %v657 = vlaneseq
    %v658 = vshrl.u32 %v657, 7
    %v659 = vsub.s32 0, %v658
    %v660 = vrot.slane %v599, %v659
    %v661 = vlaneseq
    %v662 = vshrl.u32 %v661, 7
    %v663 = vsub.s32 0, %v662
    %v664 = vrot.slane %v600, %v663
    %v665 = vmul.f32 %v614, %v644
    %v666 = vmul.f32 %v619, %v648
    %v667 = vmul.f32 %v624, %v652
    %v668 = vmul.f32 %v629, %v656
    %v669 = vmul.f32 %v634, %v660
    %v670 = vmul.f32 %v639, %v664
    %671 = vset.pattern.permute.xlu0 1
    %672 = vperm.xlu0 %671, %v93
    %v673 = vpop.permute.xlu0 %672
    %675 = vset.pattern.permute.xlu0 1
    %676 = vperm.xlu0 %675, %v94
    %v677 = vpop.permute.xlu0 %676
    %679 = vset.pattern.permute.xlu0 1
    %680 = vperm.xlu0 %679, %v95
    %v681 = vpop.permute.xlu0 %680
    %683 = vset.pattern.permute.xlu0 1
    %684 = vperm.xlu0 %683, %v96
    %v685 = vpop.permute.xlu0 %684
    %687 = vset.pattern.permute.xlu0 1
    %688 = vperm.xlu0 %687, %v97
    %v689 = vpop.permute.xlu0 %688
    %691 = vset.pattern.permute.xlu0 1
    %692 = vperm.xlu0 %691, %v98
    %v693 = vpop.permute.xlu0 %692
    %v695 = vlaneseq
    %v696 = vshrl.u32 %v695, 7
    %v697 = vsub.s32 1, %v696
    %v698 = vrot.slane %v595, %v697
    %v699 = vlaneseq
    %v700 = vshrl.u32 %v699, 7
    %v701 = vsub.s32 1, %v700
    %v702 = vrot.slane %v596, %v701
    %v703 = vlaneseq
    %v704 = vshrl.u32 %v703, 7
    %v705 = vsub.s32 1, %v704
    %v706 = vrot.slane %v597, %v705
    %v707 = vlaneseq
    %v708 = vshrl.u32 %v707, 7
    %v709 = vsub.s32 1, %v708
    %v710 = vrot.slane %v598, %v709
    %v711 = vlaneseq
    %v712 = vshrl.u32 %v711, 7
    %v713 = vsub.s32 1, %v712
    %v714 = vrot.slane %v599, %v713
    %v715 = vlaneseq
    %v716 = vshrl.u32 %v715, 7
    %v717 = vsub.s32 1, %v716
    %v718 = vrot.slane %v600, %v717
    %v719 = vmul.f32 %v673, %v698
    %v720 = vmul.f32 %v677, %v702
    %v721 = vmul.f32 %v681, %v706
    %v722 = vmul.f32 %v685, %v710
    %v723 = vmul.f32 %v689, %v714
    %v724 = vmul.f32 %v693, %v718
    %v725 = vadd.f32 %v665, %v719
    %v726 = vadd.f32 %v666, %v720
    %v727 = vadd.f32 %v667, %v721
    %v728 = vadd.f32 %v668, %v722
    %v729 = vadd.f32 %v669, %v723
    %v730 = vadd.f32 %v670, %v724
    %731 = vset.pattern.permute.xlu0 2
    %732 = vperm.xlu0 %731, %v93
    %v733 = vpop.permute.xlu0 %732
    %735 = vset.pattern.permute.xlu0 2
    %736 = vperm.xlu0 %735, %v94
    %v737 = vpop.permute.xlu0 %736
    %739 = vset.pattern.permute.xlu0 2
    %740 = vperm.xlu0 %739, %v95
    %v741 = vpop.permute.xlu0 %740
    %743 = vset.pattern.permute.xlu0 2
    %744 = vperm.xlu0 %743, %v96
    %v745 = vpop.permute.xlu0 %744
    %747 = vset.pattern.permute.xlu0 2
    %748 = vperm.xlu0 %747, %v97
    %v749 = vpop.permute.xlu0 %748
    %751 = vset.pattern.permute.xlu0 2
    %752 = vperm.xlu0 %751, %v98
    %v753 = vpop.permute.xlu0 %752
    %v755 = vlaneseq
    %v756 = vshrl.u32 %v755, 7
    %v757 = vsub.s32 2, %v756
    %v758 = vrot.slane %v595, %v757
    %v759 = vlaneseq
    %v760 = vshrl.u32 %v759, 7
    %v761 = vsub.s32 2, %v760
    %v762 = vrot.slane %v596, %v761
    %v763 = vlaneseq
    %v764 = vshrl.u32 %v763, 7
    %v765 = vsub.s32 2, %v764
    %v766 = vrot.slane %v597, %v765
    %v767 = vlaneseq
    %v768 = vshrl.u32 %v767, 7
    %v769 = vsub.s32 2, %v768
    %v770 = vrot.slane %v598, %v769
    %v771 = vlaneseq
    %v772 = vshrl.u32 %v771, 7
    %v773 = vsub.s32 2, %v772
    %v774 = vrot.slane %v599, %v773
    %v775 = vlaneseq
    %v776 = vshrl.u32 %v775, 7
    %v777 = vsub.s32 2, %v776
    %v778 = vrot.slane %v600, %v777
    %v779 = vmul.f32 %v733, %v758
    %v780 = vmul.f32 %v737, %v762
    %v781 = vmul.f32 %v741, %v766
    %v782 = vmul.f32 %v745, %v770
    %v783 = vmul.f32 %v749, %v774
    %v784 = vmul.f32 %v753, %v778
    %v785 = vadd.f32 %v725, %v779
    %v786 = vadd.f32 %v726, %v780
    %v787 = vadd.f32 %v727, %v781
    %v788 = vadd.f32 %v728, %v782
    %v789 = vadd.f32 %v729, %v783
    %v790 = vadd.f32 %v730, %v784
    %791 = vset.pattern.permute.xlu0 3
    %792 = vperm.xlu0 %791, %v93
    %v793 = vpop.permute.xlu0 %792
    %795 = vset.pattern.permute.xlu0 3
    %796 = vperm.xlu0 %795, %v94
    %v797 = vpop.permute.xlu0 %796
    %799 = vset.pattern.permute.xlu0 3
    %800 = vperm.xlu0 %799, %v95
    %v801 = vpop.permute.xlu0 %800
    %803 = vset.pattern.permute.xlu0 3
    %804 = vperm.xlu0 %803, %v96
    %v805 = vpop.permute.xlu0 %804
    %807 = vset.pattern.permute.xlu0 3
    %808 = vperm.xlu0 %807, %v97
    %v809 = vpop.permute.xlu0 %808
    %811 = vset.pattern.permute.xlu0 3
    %812 = vperm.xlu0 %811, %v98
    %v813 = vpop.permute.xlu0 %812
    %v815 = vlaneseq
    %v816 = vshrl.u32 %v815, 7
    %v817 = vsub.s32 3, %v816
    %v818 = vrot.slane %v595, %v817
    %v819 = vlaneseq
    %v820 = vshrl.u32 %v819, 7
    %v821 = vsub.s32 3, %v820
    %v822 = vrot.slane %v596, %v821
    %v823 = vlaneseq
    %v824 = vshrl.u32 %v823, 7
    %v825 = vsub.s32 3, %v824
    %v826 = vrot.slane %v597, %v825
    %v827 = vlaneseq
    %v828 = vshrl.u32 %v827, 7
    %v829 = vsub.s32 3, %v828
    %v830 = vrot.slane %v598, %v829
    %v831 = vlaneseq
    %v832 = vshrl.u32 %v831, 7
    %v833 = vsub.s32 3, %v832
    %v834 = vrot.slane %v599, %v833
    %v835 = vlaneseq
    %v836 = vshrl.u32 %v835, 7
    %v837 = vsub.s32 3, %v836
    %v838 = vrot.slane %v600, %v837
    %v839 = vmul.f32 %v793, %v818
    %v840 = vmul.f32 %v797, %v822
    %v841 = vmul.f32 %v801, %v826
    %v842 = vmul.f32 %v805, %v830
    %v843 = vmul.f32 %v809, %v834
    %v844 = vmul.f32 %v813, %v838
    %v845 = vadd.f32 %v785, %v839
    %v846 = vadd.f32 %v786, %v840
    %v847 = vadd.f32 %v787, %v841
    %v848 = vadd.f32 %v788, %v842
    %v849 = vadd.f32 %v789, %v843
    %v850 = vadd.f32 %v790, %v844
    %851 = vset.pattern.permute.xlu0 4
    %852 = vperm.xlu0 %851, %v93
    %v853 = vpop.permute.xlu0 %852
    %855 = vset.pattern.permute.xlu0 4
    %856 = vperm.xlu0 %855, %v94
    %v857 = vpop.permute.xlu0 %856
    %859 = vset.pattern.permute.xlu0 4
    %860 = vperm.xlu0 %859, %v95
    %v861 = vpop.permute.xlu0 %860
    %863 = vset.pattern.permute.xlu0 4
    %864 = vperm.xlu0 %863, %v96
    %v865 = vpop.permute.xlu0 %864
    %867 = vset.pattern.permute.xlu0 4
    %868 = vperm.xlu0 %867, %v97
    %v869 = vpop.permute.xlu0 %868
    %871 = vset.pattern.permute.xlu0 4
    %872 = vperm.xlu0 %871, %v98
    %v873 = vpop.permute.xlu0 %872
    %v875 = vlaneseq
    %v876 = vshrl.u32 %v875, 7
    %v877 = vsub.s32 4, %v876
    %v878 = vrot.slane %v595, %v877
    %v879 = vlaneseq
    %v880 = vshrl.u32 %v879, 7
    %v881 = vsub.s32 4, %v880
    %v882 = vrot.slane %v596, %v881
    %v883 = vlaneseq
    %v884 = vshrl.u32 %v883, 7
    %v885 = vsub.s32 4, %v884
    %v886 = vrot.slane %v597, %v885
    %v887 = vlaneseq
    %v888 = vshrl.u32 %v887, 7
    %v889 = vsub.s32 4, %v888
    %v890 = vrot.slane %v598, %v889
    %v891 = vlaneseq
    %v892 = vshrl.u32 %v891, 7
    %v893 = vsub.s32 4, %v892
    %v894 = vrot.slane %v599, %v893
    %v895 = vlaneseq
    %v896 = vshrl.u32 %v895, 7
    %v897 = vsub.s32 4, %v896
    %v898 = vrot.slane %v600, %v897
    %v899 = vmul.f32 %v853, %v878
    %v900 = vmul.f32 %v857, %v882
    %v901 = vmul.f32 %v861, %v886
    %v902 = vmul.f32 %v865, %v890
    %v903 = vmul.f32 %v869, %v894
    %v904 = vmul.f32 %v873, %v898
    %v905 = vadd.f32 %v845, %v899
    %v906 = vadd.f32 %v846, %v900
    %v907 = vadd.f32 %v847, %v901
    %v908 = vadd.f32 %v848, %v902
    %v909 = vadd.f32 %v849, %v903
    %v910 = vadd.f32 %v850, %v904
    %911 = vset.pattern.permute.xlu0 5
    %912 = vperm.xlu0 %911, %v93
    %v913 = vpop.permute.xlu0 %912
    %915 = vset.pattern.permute.xlu0 5
    %916 = vperm.xlu0 %915, %v94
    %v917 = vpop.permute.xlu0 %916
    %919 = vset.pattern.permute.xlu0 5
    %920 = vperm.xlu0 %919, %v95
    %v921 = vpop.permute.xlu0 %920
    %923 = vset.pattern.permute.xlu0 5
    %924 = vperm.xlu0 %923, %v96
    %v925 = vpop.permute.xlu0 %924
    %927 = vset.pattern.permute.xlu0 5
    %928 = vperm.xlu0 %927, %v97
    %v929 = vpop.permute.xlu0 %928
    %931 = vset.pattern.permute.xlu0 5
    %932 = vperm.xlu0 %931, %v98
    %v933 = vpop.permute.xlu0 %932
    %v935 = vlaneseq
    %v936 = vshrl.u32 %v935, 7
    %v937 = vsub.s32 5, %v936
    %v938 = vrot.slane %v595, %v937
    %v939 = vlaneseq
    %v940 = vshrl.u32 %v939, 7
    %v941 = vsub.s32 5, %v940
    %v942 = vrot.slane %v596, %v941
    %v943 = vlaneseq
    %v944 = vshrl.u32 %v943, 7
    %v945 = vsub.s32 5, %v944
    %v946 = vrot.slane %v597, %v945
    %v947 = vlaneseq
    %v948 = vshrl.u32 %v947, 7
    %v949 = vsub.s32 5, %v948
    %v950 = vrot.slane %v598, %v949
    %v951 = vlaneseq
    %v952 = vshrl.u32 %v951, 7
    %v953 = vsub.s32 5, %v952
    %v954 = vrot.slane %v599, %v953
    %v955 = vlaneseq
    %v956 = vshrl.u32 %v955, 7
    %v957 = vsub.s32 5, %v956
    %v958 = vrot.slane %v600, %v957
    %v959 = vmul.f32 %v913, %v938
    %v960 = vmul.f32 %v917, %v942
    %v961 = vmul.f32 %v921, %v946
    %v962 = vmul.f32 %v925, %v950
    %v963 = vmul.f32 %v929, %v954
    %v964 = vmul.f32 %v933, %v958
    %v965 = vadd.f32 %v905, %v959
    %v966 = vadd.f32 %v906, %v960
    %v967 = vadd.f32 %v907, %v961
    %v968 = vadd.f32 %v908, %v962
    %v969 = vadd.f32 %v909, %v963
    %v970 = vadd.f32 %v910, %v964
    %971 = vset.pattern.permute.xlu0 6
    %972 = vperm.xlu0 %971, %v93
    %v973 = vpop.permute.xlu0 %972
    %975 = vset.pattern.permute.xlu0 6
    %976 = vperm.xlu0 %975, %v94
    %v977 = vpop.permute.xlu0 %976
    %979 = vset.pattern.permute.xlu0 6
    %980 = vperm.xlu0 %979, %v95
    %v981 = vpop.permute.xlu0 %980
    %983 = vset.pattern.permute.xlu0 6
    %984 = vperm.xlu0 %983, %v96
    %v985 = vpop.permute.xlu0 %984
    %987 = vset.pattern.permute.xlu0 6
    %988 = vperm.xlu0 %987, %v97
    %v989 = vpop.permute.xlu0 %988
    %991 = vset.pattern.permute.xlu0 6
    %992 = vperm.xlu0 %991, %v98
    %v993 = vpop.permute.xlu0 %992
    %v995 = vlaneseq
    %v996 = vshrl.u32 %v995, 7
    %v997 = vsub.s32 6, %v996
    %v998 = vrot.slane %v595, %v997
    %v999 = vlaneseq
    %v1000 = vshrl.u32 %v999, 7
    %v1001 = vsub.s32 6, %v1000
    %v1002 = vrot.slane %v596, %v1001
    %v1003 = vlaneseq
    %v1004 = vshrl.u32 %v1003, 7
    %v1005 = vsub.s32 6, %v1004
    %v1006 = vrot.slane %v597, %v1005
    %v1007 = vlaneseq
    %v1008 = vshrl.u32 %v1007, 7
    %v1009 = vsub.s32 6, %v1008
    %v1010 = vrot.slane %v598, %v1009
    %v1011 = vlaneseq
    %v1012 = vshrl.u32 %v1011, 7
    %v1013 = vsub.s32 6, %v1012
    %v1014 = vrot.slane %v599, %v1013
    %v1015 = vlaneseq
    %v1016 = vshrl.u32 %v1015, 7
    %v1017 = vsub.s32 6, %v1016
    %v1018 = vrot.slane %v600, %v1017
    %v1019 = vmul.f32 %v973, %v998
    %v1020 = vmul.f32 %v977, %v1002
    %v1021 = vmul.f32 %v981, %v1006
    %v1022 = vmul.f32 %v985, %v1010
    %v1023 = vmul.f32 %v989, %v1014
    %v1024 = vmul.f32 %v993, %v1018
    %v1025 = vadd.f32 %v965, %v1019
    %v1026 = vadd.f32 %v966, %v1020
    %v1027 = vadd.f32 %v967, %v1021
    %v1028 = vadd.f32 %v968, %v1022
    %v1029 = vadd.f32 %v969, %v1023
    %v1030 = vadd.f32 %v970, %v1024
    %1031 = vset.pattern.permute.xlu0 7
    %1032 = vperm.xlu0 %1031, %v93
    %v1033 = vpop.permute.xlu0 %1032
    %1035 = vset.pattern.permute.xlu0 7
    %1036 = vperm.xlu0 %1035, %v94
    %v1037 = vpop.permute.xlu0 %1036
    %1039 = vset.pattern.permute.xlu0 7
    %1040 = vperm.xlu0 %1039, %v95
    %v1041 = vpop.permute.xlu0 %1040
    %1043 = vset.pattern.permute.xlu0 7
    %1044 = vperm.xlu0 %1043, %v96
    %v1045 = vpop.permute.xlu0 %1044
    %1047 = vset.pattern.permute.xlu0 7
    %1048 = vperm.xlu0 %1047, %v97
    %v1049 = vpop.permute.xlu0 %1048
    %1051 = vset.pattern.permute.xlu0 7
    %1052 = vperm.xlu0 %1051, %v98
    %v1053 = vpop.permute.xlu0 %1052
    %v1055 = vlaneseq
    %v1056 = vshrl.u32 %v1055, 7
    %v1057 = vsub.s32 7, %v1056
    %v1058 = vrot.slane %v595, %v1057
    %v1059 = vlaneseq
    %v1060 = vshrl.u32 %v1059, 7
    %v1061 = vsub.s32 7, %v1060
    %v1062 = vrot.slane %v596, %v1061
    %v1063 = vlaneseq
    %v1064 = vshrl.u32 %v1063, 7
    %v1065 = vsub.s32 7, %v1064
    %v1066 = vrot.slane %v597, %v1065
    %v1067 = vlaneseq
    %v1068 = vshrl.u32 %v1067, 7
    %v1069 = vsub.s32 7, %v1068
    %v1070 = vrot.slane %v598, %v1069
    %v1071 = vlaneseq
    %v1072 = vshrl.u32 %v1071, 7
    %v1073 = vsub.s32 7, %v1072
    %v1074 = vrot.slane %v599, %v1073
    %v1075 = vlaneseq
    %v1076 = vshrl.u32 %v1075, 7
    %v1077 = vsub.s32 7, %v1076
    %v1078 = vrot.slane %v600, %v1077
    %v1079 = vmul.f32 %v1033, %v1058
    %v1080 = vmul.f32 %v1037, %v1062
    %v1081 = vmul.f32 %v1041, %v1066
    %v1082 = vmul.f32 %v1045, %v1070
    %v1083 = vmul.f32 %v1049, %v1074
    %v1084 = vmul.f32 %v1053, %v1078
    %v1085 = vadd.f32 %v1025, %v1079
    %v1086 = vadd.f32 %v1026, %v1080
    %v1087 = vadd.f32 %v1027, %v1081
    %v1088 = vadd.f32 %v1028, %v1082
    %v1089 = vadd.f32 %v1029, %v1083
    %v1090 = vadd.f32 %v1030, %v1084
    %v1091 = vlaneseq
    %v1092 = vshrl.u32 %v1091, 7
    %v1093 = vsub.s32 2, %v1092
    %v1094 = vrot.slane %v111, %v1093
    %v1095 = vadd.f32 %v1085, %v1094
    %v1096 = vadd.f32 %v1086, %v1094
    %v1097 = vadd.f32 %v1087, %v1094
    %v1098 = vadd.f32 %v1088, %v1094
    %v1099 = vadd.f32 %v1089, %v1094
    %v1100 = vadd.f32 %v1090, %v1094
    %1102 = vset.pattern.permute.xlu0 0
    %1103 = vperm.xlu0 %1102, %v105
    %v1104 = vpop.permute.xlu0 %1103
    %1107 = vset.pattern.permute.xlu0 0
    %1108 = vperm.xlu0 %1107, %v106
    %v1109 = vpop.permute.xlu0 %1108
    %1112 = vset.pattern.permute.xlu0 0
    %1113 = vperm.xlu0 %1112, %v107
    %v1114 = vpop.permute.xlu0 %1113
    %1117 = vset.pattern.permute.xlu0 0
    %1118 = vperm.xlu0 %1117, %v108
    %v1119 = vpop.permute.xlu0 %1118
    %1122 = vset.pattern.permute.xlu0 0
    %1123 = vperm.xlu0 %1122, %v109
    %v1124 = vpop.permute.xlu0 %1123
    %1127 = vset.pattern.permute.xlu0 0
    %1128 = vperm.xlu0 %1127, %v110
    %v1129 = vpop.permute.xlu0 %1128
    %v1131 = vlaneseq
    %v1132 = vshrl.u32 %v1131, 7
    %v1133 = vsub.s32 0, %v1132
    %v1134 = vrot.slane %v605, %v1133
    %v1135 = vlaneseq
    %v1136 = vshrl.u32 %v1135, 7
    %v1137 = vsub.s32 0, %v1136
    %v1138 = vrot.slane %v606, %v1137
    %v1139 = vlaneseq
    %v1140 = vshrl.u32 %v1139, 7
    %v1141 = vsub.s32 0, %v1140
    %v1142 = vrot.slane %v607, %v1141
    %v1143 = vlaneseq
    %v1144 = vshrl.u32 %v1143, 7
    %v1145 = vsub.s32 0, %v1144
    %v1146 = vrot.slane %v608, %v1145
    %v1147 = vlaneseq
    %v1148 = vshrl.u32 %v1147, 7
    %v1149 = vsub.s32 0, %v1148
    %v1150 = vrot.slane %v609, %v1149
    %v1151 = vlaneseq
    %v1152 = vshrl.u32 %v1151, 7
    %v1153 = vsub.s32 0, %v1152
    %v1154 = vrot.slane %v610, %v1153
    %v1155 = vmul.f32 %v1104, %v1134
    %v1156 = vmul.f32 %v1109, %v1138
    %v1157 = vmul.f32 %v1114, %v1142
    %v1158 = vmul.f32 %v1119, %v1146
    %v1159 = vmul.f32 %v1124, %v1150
    %v1160 = vmul.f32 %v1129, %v1154
    %1161 = vset.pattern.permute.xlu0 1
    %1162 = vperm.xlu0 %1161, %v105
    %v1163 = vpop.permute.xlu0 %1162
    %1165 = vset.pattern.permute.xlu0 1
    %1166 = vperm.xlu0 %1165, %v106
    %v1167 = vpop.permute.xlu0 %1166
    %1169 = vset.pattern.permute.xlu0 1
    %1170 = vperm.xlu0 %1169, %v107
    %v1171 = vpop.permute.xlu0 %1170
    %1173 = vset.pattern.permute.xlu0 1
    %1174 = vperm.xlu0 %1173, %v108
    %v1175 = vpop.permute.xlu0 %1174
    %1177 = vset.pattern.permute.xlu0 1
    %1178 = vperm.xlu0 %1177, %v109
    %v1179 = vpop.permute.xlu0 %1178
    %1181 = vset.pattern.permute.xlu0 1
    %1182 = vperm.xlu0 %1181, %v110
    %v1183 = vpop.permute.xlu0 %1182
    %v1185 = vlaneseq
    %v1186 = vshrl.u32 %v1185, 7
    %v1187 = vsub.s32 1, %v1186
    %v1188 = vrot.slane %v605, %v1187
    %v1189 = vlaneseq
    %v1190 = vshrl.u32 %v1189, 7
    %v1191 = vsub.s32 1, %v1190
    %v1192 = vrot.slane %v606, %v1191
    %v1193 = vlaneseq
    %v1194 = vshrl.u32 %v1193, 7
    %v1195 = vsub.s32 1, %v1194
    %v1196 = vrot.slane %v607, %v1195
    %v1197 = vlaneseq
    %v1198 = vshrl.u32 %v1197, 7
    %v1199 = vsub.s32 1, %v1198
    %v1200 = vrot.slane %v608, %v1199
    %v1201 = vlaneseq
    %v1202 = vshrl.u32 %v1201, 7
    %v1203 = vsub.s32 1, %v1202
    %v1204 = vrot.slane %v609, %v1203
    %v1205 = vlaneseq
    %v1206 = vshrl.u32 %v1205, 7
    %v1207 = vsub.s32 1, %v1206
    %v1208 = vrot.slane %v610, %v1207
    %v1209 = vmul.f32 %v1163, %v1188
    %v1210 = vmul.f32 %v1167, %v1192
    %v1211 = vmul.f32 %v1171, %v1196
    %v1212 = vmul.f32 %v1175, %v1200
    %v1213 = vmul.f32 %v1179, %v1204
    %v1214 = vmul.f32 %v1183, %v1208
    %v1215 = vadd.f32 %v1155, %v1209
    %v1216 = vadd.f32 %v1156, %v1210
    %v1217 = vadd.f32 %v1157, %v1211
    %v1218 = vadd.f32 %v1158, %v1212
    %v1219 = vadd.f32 %v1159, %v1213
    %v1220 = vadd.f32 %v1160, %v1214
    %1221 = vset.pattern.permute.xlu0 2
    %1222 = vperm.xlu0 %1221, %v105
    %v1223 = vpop.permute.xlu0 %1222
    %1225 = vset.pattern.permute.xlu0 2
    %1226 = vperm.xlu0 %1225, %v106
    %v1227 = vpop.permute.xlu0 %1226
    %1229 = vset.pattern.permute.xlu0 2
    %1230 = vperm.xlu0 %1229, %v107
    %v1231 = vpop.permute.xlu0 %1230
    %1233 = vset.pattern.permute.xlu0 2
    %1234 = vperm.xlu0 %1233, %v108
    %v1235 = vpop.permute.xlu0 %1234
    %1237 = vset.pattern.permute.xlu0 2
    %1238 = vperm.xlu0 %1237, %v109
    %v1239 = vpop.permute.xlu0 %1238
    %1241 = vset.pattern.permute.xlu0 2
    %1242 = vperm.xlu0 %1241, %v110
    %v1243 = vpop.permute.xlu0 %1242
    %v1245 = vlaneseq
    %v1246 = vshrl.u32 %v1245, 7
    %v1247 = vsub.s32 2, %v1246
    %v1248 = vrot.slane %v605, %v1247
    %v1249 = vlaneseq
    %v1250 = vshrl.u32 %v1249, 7
    %v1251 = vsub.s32 2, %v1250
    %v1252 = vrot.slane %v606, %v1251
    %v1253 = vlaneseq
    %v1254 = vshrl.u32 %v1253, 7
    %v1255 = vsub.s32 2, %v1254
    %v1256 = vrot.slane %v607, %v1255
    %v1257 = vlaneseq
    %v1258 = vshrl.u32 %v1257, 7
    %v1259 = vsub.s32 2, %v1258
    %v1260 = vrot.slane %v608, %v1259
    %v1261 = vlaneseq
    %v1262 = vshrl.u32 %v1261, 7
    %v1263 = vsub.s32 2, %v1262
    %v1264 = vrot.slane %v609, %v1263
    %v1265 = vlaneseq
    %v1266 = vshrl.u32 %v1265, 7
    %v1267 = vsub.s32 2, %v1266
    %v1268 = vrot.slane %v610, %v1267
    %v1269 = vmul.f32 %v1223, %v1248
    %v1270 = vmul.f32 %v1227, %v1252
    %v1271 = vmul.f32 %v1231, %v1256
    %v1272 = vmul.f32 %v1235, %v1260
    %v1273 = vmul.f32 %v1239, %v1264
    %v1274 = vmul.f32 %v1243, %v1268
    %v1275 = vadd.f32 %v1215, %v1269
    %v1276 = vadd.f32 %v1216, %v1270
    %v1277 = vadd.f32 %v1217, %v1271
    %v1278 = vadd.f32 %v1218, %v1272
    %v1279 = vadd.f32 %v1219, %v1273
    %v1280 = vadd.f32 %v1220, %v1274
    %1281 = vset.pattern.permute.xlu0 3
    %1282 = vperm.xlu0 %1281, %v105
    %v1283 = vpop.permute.xlu0 %1282
    %1285 = vset.pattern.permute.xlu0 3
    %1286 = vperm.xlu0 %1285, %v106
    %v1287 = vpop.permute.xlu0 %1286
    %1289 = vset.pattern.permute.xlu0 3
    %1290 = vperm.xlu0 %1289, %v107
    %v1291 = vpop.permute.xlu0 %1290
    %1293 = vset.pattern.permute.xlu0 3
    %1294 = vperm.xlu0 %1293, %v108
    %v1295 = vpop.permute.xlu0 %1294
    %1297 = vset.pattern.permute.xlu0 3
    %1298 = vperm.xlu0 %1297, %v109
    %v1299 = vpop.permute.xlu0 %1298
    %1301 = vset.pattern.permute.xlu0 3
    %1302 = vperm.xlu0 %1301, %v110
    %v1303 = vpop.permute.xlu0 %1302
    %v1305 = vlaneseq
    %v1306 = vshrl.u32 %v1305, 7
    %v1307 = vsub.s32 3, %v1306
    %v1308 = vrot.slane %v605, %v1307
    %v1309 = vlaneseq
    %v1310 = vshrl.u32 %v1309, 7
    %v1311 = vsub.s32 3, %v1310
    %v1312 = vrot.slane %v606, %v1311
    %v1313 = vlaneseq
    %v1314 = vshrl.u32 %v1313, 7
    %v1315 = vsub.s32 3, %v1314
    %v1316 = vrot.slane %v607, %v1315
    %v1317 = vlaneseq
    %v1318 = vshrl.u32 %v1317, 7
    %v1319 = vsub.s32 3, %v1318
    %v1320 = vrot.slane %v608, %v1319
    %v1321 = vlaneseq
    %v1322 = vshrl.u32 %v1321, 7
    %v1323 = vsub.s32 3, %v1322
    %v1324 = vrot.slane %v609, %v1323
    %v1325 = vlaneseq
    %v1326 = vshrl.u32 %v1325, 7
    %v1327 = vsub.s32 3, %v1326
    %v1328 = vrot.slane %v610, %v1327
    %v1329 = vmul.f32 %v1283, %v1308
    %v1330 = vmul.f32 %v1287, %v1312
    %v1331 = vmul.f32 %v1291, %v1316
    %v1332 = vmul.f32 %v1295, %v1320
    %v1333 = vmul.f32 %v1299, %v1324
    %v1334 = vmul.f32 %v1303, %v1328
    %v1335 = vadd.f32 %v1275, %v1329
    %v1336 = vadd.f32 %v1276, %v1330
    %v1337 = vadd.f32 %v1277, %v1331
    %v1338 = vadd.f32 %v1278, %v1332
    %v1339 = vadd.f32 %v1279, %v1333
    %v1340 = vadd.f32 %v1280, %v1334
    %1341 = vset.pattern.permute.xlu0 4
    %1342 = vperm.xlu0 %1341, %v105
    %v1343 = vpop.permute.xlu0 %1342
    %1345 = vset.pattern.permute.xlu0 4
    %1346 = vperm.xlu0 %1345, %v106
    %v1347 = vpop.permute.xlu0 %1346
    %1349 = vset.pattern.permute.xlu0 4
    %1350 = vperm.xlu0 %1349, %v107
    %v1351 = vpop.permute.xlu0 %1350
    %1353 = vset.pattern.permute.xlu0 4
    %1354 = vperm.xlu0 %1353, %v108
    %v1355 = vpop.permute.xlu0 %1354
    %1357 = vset.pattern.permute.xlu0 4
    %1358 = vperm.xlu0 %1357, %v109
    %v1359 = vpop.permute.xlu0 %1358
    %1361 = vset.pattern.permute.xlu0 4
    %1362 = vperm.xlu0 %1361, %v110
    %v1363 = vpop.permute.xlu0 %1362
    %v1365 = vlaneseq
    %v1366 = vshrl.u32 %v1365, 7
    %v1367 = vsub.s32 4, %v1366
    %v1368 = vrot.slane %v605, %v1367
    %v1369 = vlaneseq
    %v1370 = vshrl.u32 %v1369, 7
    %v1371 = vsub.s32 4, %v1370
    %v1372 = vrot.slane %v606, %v1371
    %v1373 = vlaneseq
    %v1374 = vshrl.u32 %v1373, 7
    %v1375 = vsub.s32 4, %v1374
    %v1376 = vrot.slane %v607, %v1375
    %v1377 = vlaneseq
    %v1378 = vshrl.u32 %v1377, 7
    %v1379 = vsub.s32 4, %v1378
    %v1380 = vrot.slane %v608, %v1379
    %v1381 = vlaneseq
    %v1382 = vshrl.u32 %v1381, 7
    %v1383 = vsub.s32 4, %v1382
    %v1384 = vrot.slane %v609, %v1383
    %v1385 = vlaneseq
    %v1386 = vshrl.u32 %v1385, 7
    %v1387 = vsub.s32 4, %v1386
    %v1388 = vrot.slane %v610, %v1387
    %v1389 = vmul.f32 %v1343, %v1368
    %v1390 = vmul.f32 %v1347, %v1372
    %v1391 = vmul.f32 %v1351, %v1376
    %v1392 = vmul.f32 %v1355, %v1380
    %v1393 = vmul.f32 %v1359, %v1384
    %v1394 = vmul.f32 %v1363, %v1388
    %v1395 = vadd.f32 %v1335, %v1389
    %v1396 = vadd.f32 %v1336, %v1390
    %v1397 = vadd.f32 %v1337, %v1391
    %v1398 = vadd.f32 %v1338, %v1392
    %v1399 = vadd.f32 %v1339, %v1393
    %v1400 = vadd.f32 %v1340, %v1394
    %1401 = vset.pattern.permute.xlu0 5
    %1402 = vperm.xlu0 %1401, %v105
    %v1403 = vpop.permute.xlu0 %1402
    %1405 = vset.pattern.permute.xlu0 5
    %1406 = vperm.xlu0 %1405, %v106
    %v1407 = vpop.permute.xlu0 %1406
    %1409 = vset.pattern.permute.xlu0 5
    %1410 = vperm.xlu0 %1409, %v107
    %v1411 = vpop.permute.xlu0 %1410
    %1413 = vset.pattern.permute.xlu0 5
    %1414 = vperm.xlu0 %1413, %v108
    %v1415 = vpop.permute.xlu0 %1414
    %1417 = vset.pattern.permute.xlu0 5
    %1418 = vperm.xlu0 %1417, %v109
    %v1419 = vpop.permute.xlu0 %1418
    %1421 = vset.pattern.permute.xlu0 5
    %1422 = vperm.xlu0 %1421, %v110
    %v1423 = vpop.permute.xlu0 %1422
    %v1425 = vlaneseq
    %v1426 = vshrl.u32 %v1425, 7
    %v1427 = vsub.s32 5, %v1426
    %v1428 = vrot.slane %v605, %v1427
    %v1429 = vlaneseq
    %v1430 = vshrl.u32 %v1429, 7
    %v1431 = vsub.s32 5, %v1430
    %v1432 = vrot.slane %v606, %v1431
    %v1433 = vlaneseq
    %v1434 = vshrl.u32 %v1433, 7
    %v1435 = vsub.s32 5, %v1434
    %v1436 = vrot.slane %v607, %v1435
    %v1437 = vlaneseq
    %v1438 = vshrl.u32 %v1437, 7
    %v1439 = vsub.s32 5, %v1438
    %v1440 = vrot.slane %v608, %v1439
    %v1441 = vlaneseq
    %v1442 = vshrl.u32 %v1441, 7
    %v1443 = vsub.s32 5, %v1442
    %v1444 = vrot.slane %v609, %v1443
    %v1445 = vlaneseq
    %v1446 = vshrl.u32 %v1445, 7
    %v1447 = vsub.s32 5, %v1446
    %v1448 = vrot.slane %v610, %v1447
    %v1449 = vmul.f32 %v1403, %v1428
    %v1450 = vmul.f32 %v1407, %v1432
    %v1451 = vmul.f32 %v1411, %v1436
    %v1452 = vmul.f32 %v1415, %v1440
    %v1453 = vmul.f32 %v1419, %v1444
    %v1454 = vmul.f32 %v1423, %v1448
    %v1455 = vadd.f32 %v1395, %v1449
    %v1456 = vadd.f32 %v1396, %v1450
    %v1457 = vadd.f32 %v1397, %v1451
    %v1458 = vadd.f32 %v1398, %v1452
    %v1459 = vadd.f32 %v1399, %v1453
    %v1460 = vadd.f32 %v1400, %v1454
    %1461 = vset.pattern.permute.xlu0 6
    %1462 = vperm.xlu0 %1461, %v105
    %v1463 = vpop.permute.xlu0 %1462
    %1465 = vset.pattern.permute.xlu0 6
    %1466 = vperm.xlu0 %1465, %v106
    %v1467 = vpop.permute.xlu0 %1466
    %1469 = vset.pattern.permute.xlu0 6
    %1470 = vperm.xlu0 %1469, %v107
    %v1471 = vpop.permute.xlu0 %1470
    %1473 = vset.pattern.permute.xlu0 6
    %1474 = vperm.xlu0 %1473, %v108
    %v1475 = vpop.permute.xlu0 %1474
    %1477 = vset.pattern.permute.xlu0 6
    %1478 = vperm.xlu0 %1477, %v109
    %v1479 = vpop.permute.xlu0 %1478
    %1481 = vset.pattern.permute.xlu0 6
    %1482 = vperm.xlu0 %1481, %v110
    %v1483 = vpop.permute.xlu0 %1482
    %v1485 = vlaneseq
    %v1486 = vshrl.u32 %v1485, 7
    %v1487 = vsub.s32 6, %v1486
    %v1488 = vrot.slane %v605, %v1487
    %v1489 = vlaneseq
    %v1490 = vshrl.u32 %v1489, 7
    %v1491 = vsub.s32 6, %v1490
    %v1492 = vrot.slane %v606, %v1491
    %v1493 = vlaneseq
    %v1494 = vshrl.u32 %v1493, 7
    %v1495 = vsub.s32 6, %v1494
    %v1496 = vrot.slane %v607, %v1495
    %v1497 = vlaneseq
    %v1498 = vshrl.u32 %v1497, 7
    %v1499 = vsub.s32 6, %v1498
    %v1500 = vrot.slane %v608, %v1499
    %v1501 = vlaneseq
    %v1502 = vshrl.u32 %v1501, 7
    %v1503 = vsub.s32 6, %v1502
    %v1504 = vrot.slane %v609, %v1503
    %v1505 = vlaneseq
    %v1506 = vshrl.u32 %v1505, 7
    %v1507 = vsub.s32 6, %v1506
    %v1508 = vrot.slane %v610, %v1507
    %v1509 = vmul.f32 %v1463, %v1488
    %v1510 = vmul.f32 %v1467, %v1492
    %v1511 = vmul.f32 %v1471, %v1496
    %v1512 = vmul.f32 %v1475, %v1500
    %v1513 = vmul.f32 %v1479, %v1504
    %v1514 = vmul.f32 %v1483, %v1508
    %v1515 = vadd.f32 %v1455, %v1509
    %v1516 = vadd.f32 %v1456, %v1510
    %v1517 = vadd.f32 %v1457, %v1511
    %v1518 = vadd.f32 %v1458, %v1512
    %v1519 = vadd.f32 %v1459, %v1513
    %v1520 = vadd.f32 %v1460, %v1514
    %1521 = vset.pattern.permute.xlu0 7
    %1522 = vperm.xlu0 %1521, %v105
    %v1523 = vpop.permute.xlu0 %1522
    %1525 = vset.pattern.permute.xlu0 7
    %1526 = vperm.xlu0 %1525, %v106
    %v1527 = vpop.permute.xlu0 %1526
    %1529 = vset.pattern.permute.xlu0 7
    %1530 = vperm.xlu0 %1529, %v107
    %v1531 = vpop.permute.xlu0 %1530
    %1533 = vset.pattern.permute.xlu0 7
    %1534 = vperm.xlu0 %1533, %v108
    %v1535 = vpop.permute.xlu0 %1534
    %1537 = vset.pattern.permute.xlu0 7
    %1538 = vperm.xlu0 %1537, %v109
    %v1539 = vpop.permute.xlu0 %1538
    %1541 = vset.pattern.permute.xlu0 7
    %1542 = vperm.xlu0 %1541, %v110
    %v1543 = vpop.permute.xlu0 %1542
    %v1545 = vlaneseq
    %v1546 = vshrl.u32 %v1545, 7
    %v1547 = vsub.s32 7, %v1546
    %v1548 = vrot.slane %v605, %v1547
    %v1549 = vlaneseq
    %v1550 = vshrl.u32 %v1549, 7
    %v1551 = vsub.s32 7, %v1550
    %v1552 = vrot.slane %v606, %v1551
    %v1553 = vlaneseq
    %v1554 = vshrl.u32 %v1553, 7
    %v1555 = vsub.s32 7, %v1554
    %v1556 = vrot.slane %v607, %v1555
    %v1557 = vlaneseq
    %v1558 = vshrl.u32 %v1557, 7
    %v1559 = vsub.s32 7, %v1558
    %v1560 = vrot.slane %v608, %v1559
    %v1561 = vlaneseq
    %v1562 = vshrl.u32 %v1561, 7
    %v1563 = vsub.s32 7, %v1562
    %v1564 = vrot.slane %v609, %v1563
    %v1565 = vlaneseq
    %v1566 = vshrl.u32 %v1565, 7
    %v1567 = vsub.s32 7, %v1566
    %v1568 = vrot.slane %v610, %v1567
    %v1569 = vmul.f32 %v1523, %v1548
    %v1570 = vmul.f32 %v1527, %v1552
    %v1571 = vmul.f32 %v1531, %v1556
    %v1572 = vmul.f32 %v1535, %v1560
    %v1573 = vmul.f32 %v1539, %v1564
    %v1574 = vmul.f32 %v1543, %v1568
    %v1575 = vadd.f32 %v1515, %v1569
    %v1576 = vadd.f32 %v1516, %v1570
    %v1577 = vadd.f32 %v1517, %v1571
    %v1578 = vadd.f32 %v1518, %v1572
    %v1579 = vadd.f32 %v1519, %v1573
    %v1580 = vadd.f32 %v1520, %v1574
    %v1581 = vlaneseq
    %v1582 = vshrl.u32 %v1581, 7
    %v1583 = vsub.s32 3, %v1582
    %v1584 = vrot.slane %v111, %v1583
    %v1585 = vadd.f32 %v1575, %v1584
    %v1586 = vadd.f32 %v1576, %v1584
    %v1587 = vadd.f32 %v1577, %v1584
    %v1588 = vadd.f32 %v1578, %v1584
    %v1589 = vadd.f32 %v1579, %v1584
    %v1590 = vadd.f32 %v1580, %v1584
    %1591 = vmatprep.subr.mxu0 %v238
    %1592 = vmatpush1.msra.mxu0 %v237
    %1593 = vmatprep.subr.mxu0 %v235
    %1594 = vmatpush1.msra.mxu0 %v234
    %1595 = vmatprep.subr.mxu0 %v232
    %1596 = vmatpush1.msra.mxu0 %v231
    %1597 = vmatprep.subr.mxu0 %v229
    %1598 = vmatpush1.msra.mxu0 %v228
    %1599 = vmatprep.subr.mxu0 %v226
    %1600 = vmatpush1.msra.mxu0 %v225
    %1601 = vmatprep.subr.mxu0 %v223
    %1602 = vmatpush1.msra.mxu0 %v222
    %1603 = vmatprep.subr.mxu0 %v220
    %1604 = vmatpush1.msra.mxu0 %v219
    %1605 = vmatprep.subr.mxu0 %v217
    %1606 = vmatpush1.msra.mxu0 %v216
    %1607 = vmatprep.subr.mxu0 %v214
    %1608 = vmatpush1.msra.mxu0 %v213
    %1609 = vmatprep.subr.mxu0 %v211
    %1610 = vmatpush1.msra.mxu0 %v210
    %1611 = vmatprep.subr.mxu0 %v208
    %1612 = vmatpush1.msra.mxu0 %v207
    %1613 = vmatprep.subr.mxu0 %v205
    %1614 = vmatpush1.msra.mxu0 %v204
    %1615 = vmatprep.subr.mxu0 %v202
    %1616 = vmatpush1.msra.mxu0 %v201
    %1617 = vmatprep.subr.mxu0 %v199
    %1618 = vmatpush1.msra.mxu0 %v198
    %1619 = vmatprep.subr.mxu0 %v196
    %1620 = vmatpush1.msra.mxu0 %v195
    %1621 = vmatprep.subr.mxu0 %v193
    %1622 = vmatpush1.msra.mxu0 %v192
    %1623 = vmatprep.subr.mxu0 0.0
    %1624 = vmatpush2.msra.mxu0 0.0
    %1625 = vmatprep.subr.mxu0 0.0
    %1626 = vmatpush2.msra.mxu0 0.0
    %1627 = vmatprep.subr.mxu0 0.0
    %1628 = vmatpush2.msra.mxu0 0.0
    %1629 = vmatprep.subr.mxu0 0.0
    %1630 = vmatpush2.msra.mxu0 0.0
    %1631 = vmatprep.subr.mxu0 0.0
    %1632 = vmatpush2.msra.mxu0 0.0
    %1633 = vmatprep.subr.mxu0 0.0
    %1634 = vmatpush2.msra.mxu0 0.0
    %1635 = vmatprep.subr.mxu0 0.0
    %1636 = vmatpush2.msra.mxu0 0.0
    %1637 = vmatprep.subr.mxu0 0.0
    %1638 = vmatpush2.msra.mxu0 0.0
    %1639 = vmatprep.subr.mxu0 0.0
    %1640 = vmatpush2.msra.mxu0 0.0
    %1641 = vmatprep.subr.mxu0 0.0
    %1642 = vmatpush2.msra.mxu0 0.0
    %1643 = vmatprep.subr.mxu0 0.0
    %1644 = vmatpush2.msra.mxu0 0.0
    %1645 = vmatprep.subr.mxu0 0.0
    %1646 = vmatpush2.msra.mxu0 0.0
    %1647 = vmatprep.subr.mxu0 0.0
    %1648 = vmatpush2.msra.mxu0 0.0
    %1649 = vmatprep.subr.mxu0 0.0
    %1650 = vmatpush2.msra.mxu0 0.0
    %1651 = vmatprep.subr.mxu0 0.0
    %1652 = vmatpush2.msra.mxu0 0.0
    %1653 = vmatprep.subr.mxu0 0.0
    %1654 = vmatpush2.msra.mxu0 0.0
    %1655 = vmatprep.mubr.f32.mxu0 0.0
    %1656 = vmatmul.mubr.f32.gmra.mxu0 %v1095
    %v1657 = vpop.f32.mrf.mxu0
    %v1658 = vadd.f32 0.0, %v1657
    %v1659 = vpop.f32.mrf.mxu0
    %v1660 = vadd.f32 0.0, %v1659
    %1661 = vmatprep.mubr.f32.mxu0 0.0
    %1662 = vmatmul.mubr.f32.gmra.mxu0 %v1096
    %v1663 = vpop.f32.mrf.mxu0
    %v1664 = vadd.f32 0.0, %v1663
    %v1665 = vpop.f32.mrf.mxu0
    %v1666 = vadd.f32 0.0, %v1665
    %1667 = vmatprep.mubr.f32.mxu0 0.0
    %1668 = vmatmul.mubr.f32.gmra.mxu0 %v1097
    %v1669 = vpop.f32.mrf.mxu0
    %v1670 = vadd.f32 0.0, %v1669
    %v1671 = vpop.f32.mrf.mxu0
    %v1672 = vadd.f32 0.0, %v1671
    %1673 = vmatprep.mubr.f32.mxu0 0.0
    %1674 = vmatmul.mubr.f32.gmra.mxu0 %v1098
    %v1675 = vpop.f32.mrf.mxu0
    %v1676 = vadd.f32 0.0, %v1675
    %v1677 = vpop.f32.mrf.mxu0
    %v1678 = vadd.f32 0.0, %v1677
    %1679 = vmatprep.mubr.f32.mxu0 0.0
    %1680 = vmatmul.mubr.f32.gmra.mxu0 %v1099
    %v1681 = vpop.f32.mrf.mxu0
    %v1682 = vadd.f32 0.0, %v1681
    %v1683 = vpop.f32.mrf.mxu0
    %v1684 = vadd.f32 0.0, %v1683
    %1685 = vmatprep.mubr.f32.mxu0 0.0
    %1686 = vmatmul.mubr.f32.gmra.mxu0 %v1100
    %v1687 = vpop.f32.mrf.mxu0
    %v1688 = vadd.f32 0.0, %v1687
    %v1689 = vpop.f32.mrf.mxu0
    %v1690 = vadd.f32 0.0, %v1689
    %1691 = vdwg.mxu0
    %1692 = vmatprep.subr.mxu0 0.0
    %1693 = vmatpush1.msra.mxu0 %v239
    %1694 = vmatprep.subr.mxu0 0.0
    %1695 = vmatpush1.msra.mxu0 %v236
    %1696 = vmatprep.subr.mxu0 0.0
    %1697 = vmatpush1.msra.mxu0 %v233
    %1698 = vmatprep.subr.mxu0 0.0
    %1699 = vmatpush1.msra.mxu0 %v230
    %1700 = vmatprep.subr.mxu0 0.0
    %1701 = vmatpush1.msra.mxu0 %v227
    %1702 = vmatprep.subr.mxu0 0.0
    %1703 = vmatpush1.msra.mxu0 %v224
    %1704 = vmatprep.subr.mxu0 0.0
    %1705 = vmatpush1.msra.mxu0 %v221
    %1706 = vmatprep.subr.mxu0 0.0
    %1707 = vmatpush1.msra.mxu0 %v218
    %1708 = vmatprep.subr.mxu0 0.0
    %1709 = vmatpush1.msra.mxu0 %v215
    %1710 = vmatprep.subr.mxu0 0.0
    %1711 = vmatpush1.msra.mxu0 %v212
    %1712 = vmatprep.subr.mxu0 0.0
    %1713 = vmatpush1.msra.mxu0 %v209
    %1714 = vmatprep.subr.mxu0 0.0
    %1715 = vmatpush1.msra.mxu0 %v206
    %1716 = vmatprep.subr.mxu0 0.0
    %1717 = vmatpush1.msra.mxu0 %v203
    %1718 = vmatprep.subr.mxu0 0.0
    %1719 = vmatpush1.msra.mxu0 %v200
    %1720 = vmatprep.subr.mxu0 0.0
    %1721 = vmatpush1.msra.mxu0 %v197
    %1722 = vmatprep.subr.mxu0 0.0
    %1723 = vmatpush1.msra.mxu0 %v194
    %1724 = vmatprep.subr.mxu0 0.0
    %1725 = vmatpush2.msra.mxu0 0.0
    %1726 = vmatprep.subr.mxu0 0.0
    %1727 = vmatpush2.msra.mxu0 0.0
    %1728 = vmatprep.subr.mxu0 0.0
    %1729 = vmatpush2.msra.mxu0 0.0
    %1730 = vmatprep.subr.mxu0 0.0
    %1731 = vmatpush2.msra.mxu0 0.0
    %1732 = vmatprep.subr.mxu0 0.0
    %1733 = vmatpush2.msra.mxu0 0.0
    %1734 = vmatprep.subr.mxu0 0.0
    %1735 = vmatpush2.msra.mxu0 0.0
    %1736 = vmatprep.subr.mxu0 0.0
    %1737 = vmatpush2.msra.mxu0 0.0
    %1738 = vmatprep.subr.mxu0 0.0
    %1739 = vmatpush2.msra.mxu0 0.0
    %1740 = vmatprep.subr.mxu0 0.0
    %1741 = vmatpush2.msra.mxu0 0.0
    %1742 = vmatprep.subr.mxu0 0.0
    %1743 = vmatpush2.msra.mxu0 0.0
    %1744 = vmatprep.subr.mxu0 0.0
    %1745 = vmatpush2.msra.mxu0 0.0
    %1746 = vmatprep.subr.mxu0 0.0
    %1747 = vmatpush2.msra.mxu0 0.0
    %1748 = vmatprep.subr.mxu0 0.0
    %1749 = vmatpush2.msra.mxu0 0.0
    %1750 = vmatprep.subr.mxu0 0.0
    %1751 = vmatpush2.msra.mxu0 0.0
    %1752 = vmatprep.subr.mxu0 0.0
    %1753 = vmatpush2.msra.mxu0 0.0
    %1754 = vmatprep.subr.mxu0 0.0
    %1755 = vmatpush2.msra.mxu0 0.0
    %1756 = vmatprep.mubr.f32.mxu0 0.0
    %1757 = vmatmul.mubr.f32.gmra.mxu0 %v1095
    %v1758 = vpop.f32.mrf.mxu0
    %v1759 = vadd.f32 0.0, %v1758
    %v1760 = vpop.f32.mrf.mxu0
    %1761 = vmatprep.mubr.f32.mxu0 0.0
    %1762 = vmatmul.mubr.f32.gmra.mxu0 %v1096
    %v1763 = vpop.f32.mrf.mxu0
    %v1764 = vadd.f32 0.0, %v1763
    %v1765 = vpop.f32.mrf.mxu0
    %1766 = vmatprep.mubr.f32.mxu0 0.0
    %1767 = vmatmul.mubr.f32.gmra.mxu0 %v1097
    %v1768 = vpop.f32.mrf.mxu0
    %v1769 = vadd.f32 0.0, %v1768
    %v1770 = vpop.f32.mrf.mxu0
    %1771 = vmatprep.mubr.f32.mxu0 0.0
    %1772 = vmatmul.mubr.f32.gmra.mxu0 %v1098
    %v1773 = vpop.f32.mrf.mxu0
    %v1774 = vadd.f32 0.0, %v1773
    %v1775 = vpop.f32.mrf.mxu0
    %1776 = vmatprep.mubr.f32.mxu0 0.0
    %1777 = vmatmul.mubr.f32.gmra.mxu0 %v1099
    %v1778 = vpop.f32.mrf.mxu0
    %v1779 = vadd.f32 0.0, %v1778
    %v1780 = vpop.f32.mrf.mxu0
    %1781 = vmatprep.mubr.f32.mxu0 0.0
    %1782 = vmatmul.mubr.f32.gmra.mxu0 %v1100
    %v1783 = vpop.f32.mrf.mxu0
    %v1784 = vadd.f32 0.0, %v1783
    %v1785 = vpop.f32.mrf.mxu0
    %1786 = vdwg.mxu0
    %1787 = vmatprep.subr.mxu0 %v286
    %1788 = vmatpush1.msra.mxu0 %v285
    %1789 = vmatprep.subr.mxu0 %v283
    %1790 = vmatpush1.msra.mxu0 %v282
    %1791 = vmatprep.subr.mxu0 %v280
    %1792 = vmatpush1.msra.mxu0 %v279
    %1793 = vmatprep.subr.mxu0 %v277
    %1794 = vmatpush1.msra.mxu0 %v276
    %1795 = vmatprep.subr.mxu0 %v274
    %1796 = vmatpush1.msra.mxu0 %v273
    %1797 = vmatprep.subr.mxu0 %v271
    %1798 = vmatpush1.msra.mxu0 %v270
    %1799 = vmatprep.subr.mxu0 %v268
    %1800 = vmatpush1.msra.mxu0 %v267
    %1801 = vmatprep.subr.mxu0 %v265
    %1802 = vmatpush1.msra.mxu0 %v264
    %1803 = vmatprep.subr.mxu0 %v262
    %1804 = vmatpush1.msra.mxu0 %v261
    %1805 = vmatprep.subr.mxu0 %v259
    %1806 = vmatpush1.msra.mxu0 %v258
    %1807 = vmatprep.subr.mxu0 %v256
    %1808 = vmatpush1.msra.mxu0 %v255
    %1809 = vmatprep.subr.mxu0 %v253
    %1810 = vmatpush1.msra.mxu0 %v252
    %1811 = vmatprep.subr.mxu0 %v250
    %1812 = vmatpush1.msra.mxu0 %v249
    %1813 = vmatprep.subr.mxu0 %v247
    %1814 = vmatpush1.msra.mxu0 %v246
    %1815 = vmatprep.subr.mxu0 %v244
    %1816 = vmatpush1.msra.mxu0 %v243
    %1817 = vmatprep.subr.mxu0 %v241
    %1818 = vmatpush1.msra.mxu0 %v240
    %1819 = vmatprep.subr.mxu0 0.0
    %1820 = vmatpush2.msra.mxu0 0.0
    %1821 = vmatprep.subr.mxu0 0.0
    %1822 = vmatpush2.msra.mxu0 0.0
    %1823 = vmatprep.subr.mxu0 0.0
    %1824 = vmatpush2.msra.mxu0 0.0
    %1825 = vmatprep.subr.mxu0 0.0
    %1826 = vmatpush2.msra.mxu0 0.0
    %1827 = vmatprep.subr.mxu0 0.0
    %1828 = vmatpush2.msra.mxu0 0.0
    %1829 = vmatprep.subr.mxu0 0.0
    %1830 = vmatpush2.msra.mxu0 0.0
    %1831 = vmatprep.subr.mxu0 0.0
    %1832 = vmatpush2.msra.mxu0 0.0
    %1833 = vmatprep.subr.mxu0 0.0
    %1834 = vmatpush2.msra.mxu0 0.0
    %1835 = vmatprep.subr.mxu0 0.0
    %1836 = vmatpush2.msra.mxu0 0.0
    %1837 = vmatprep.subr.mxu0 0.0
    %1838 = vmatpush2.msra.mxu0 0.0
    %1839 = vmatprep.subr.mxu0 0.0
    %1840 = vmatpush2.msra.mxu0 0.0
    %1841 = vmatprep.subr.mxu0 0.0
    %1842 = vmatpush2.msra.mxu0 0.0
    %1843 = vmatprep.subr.mxu0 0.0
    %1844 = vmatpush2.msra.mxu0 0.0
    %1845 = vmatprep.subr.mxu0 0.0
    %1846 = vmatpush2.msra.mxu0 0.0
    %1847 = vmatprep.subr.mxu0 0.0
    %1848 = vmatpush2.msra.mxu0 0.0
    %1849 = vmatprep.subr.mxu0 0.0
    %1850 = vmatpush2.msra.mxu0 0.0
    %1851 = vmatprep.mubr.f32.mxu0 0.0
    %1852 = vmatmul.mubr.f32.gmra.mxu0 %v1585
    %v1853 = vpop.f32.mrf.mxu0
    %v1854 = vadd.f32 0.0, %v1853
    %v1855 = vpop.f32.mrf.mxu0
    %v1856 = vadd.f32 0.0, %v1855
    %1857 = vmatprep.mubr.f32.mxu0 0.0
    %1858 = vmatmul.mubr.f32.gmra.mxu0 %v1586
    %v1859 = vpop.f32.mrf.mxu0
    %v1860 = vadd.f32 0.0, %v1859
    %v1861 = vpop.f32.mrf.mxu0
    %v1862 = vadd.f32 0.0, %v1861
    %1863 = vmatprep.mubr.f32.mxu0 0.0
    %1864 = vmatmul.mubr.f32.gmra.mxu0 %v1587
    %v1865 = vpop.f32.mrf.mxu0
    %v1866 = vadd.f32 0.0, %v1865
    %v1867 = vpop.f32.mrf.mxu0
    %v1868 = vadd.f32 0.0, %v1867
    %1869 = vmatprep.mubr.f32.mxu0 0.0
    %1870 = vmatmul.mubr.f32.gmra.mxu0 %v1588
    %v1871 = vpop.f32.mrf.mxu0
    %v1872 = vadd.f32 0.0, %v1871
    %v1873 = vpop.f32.mrf.mxu0
    %v1874 = vadd.f32 0.0, %v1873
    %1875 = vmatprep.mubr.f32.mxu0 0.0
    %1876 = vmatmul.mubr.f32.gmra.mxu0 %v1589
    %v1877 = vpop.f32.mrf.mxu0
    %v1878 = vadd.f32 0.0, %v1877
    %v1879 = vpop.f32.mrf.mxu0
    %v1880 = vadd.f32 0.0, %v1879
    %1881 = vmatprep.mubr.f32.mxu0 0.0
    %1882 = vmatmul.mubr.f32.gmra.mxu0 %v1590
    %v1883 = vpop.f32.mrf.mxu0
    %v1884 = vadd.f32 0.0, %v1883
    %v1885 = vpop.f32.mrf.mxu0
    %v1886 = vadd.f32 0.0, %v1885
    %1887 = vdwg.mxu0
    %1888 = vmatprep.subr.mxu0 0.0
    %1889 = vmatpush1.msra.mxu0 %v287
    %1890 = vmatprep.subr.mxu0 0.0
    %1891 = vmatpush1.msra.mxu0 %v284
    %1892 = vmatprep.subr.mxu0 0.0
    %1893 = vmatpush1.msra.mxu0 %v281
    %1894 = vmatprep.subr.mxu0 0.0
    %1895 = vmatpush1.msra.mxu0 %v278
    %1896 = vmatprep.subr.mxu0 0.0
    %1897 = vmatpush1.msra.mxu0 %v275
    %1898 = vmatprep.subr.mxu0 0.0
    %1899 = vmatpush1.msra.mxu0 %v272
    %1900 = vmatprep.subr.mxu0 0.0
    %1901 = vmatpush1.msra.mxu0 %v269
    %1902 = vmatprep.subr.mxu0 0.0
    %1903 = vmatpush1.msra.mxu0 %v266
    %1904 = vmatprep.subr.mxu0 0.0
    %1905 = vmatpush1.msra.mxu0 %v263
    %1906 = vmatprep.subr.mxu0 0.0
    %1907 = vmatpush1.msra.mxu0 %v260
    %1908 = vmatprep.subr.mxu0 0.0
    %1909 = vmatpush1.msra.mxu0 %v257
    %1910 = vmatprep.subr.mxu0 0.0
    %1911 = vmatpush1.msra.mxu0 %v254
    %1912 = vmatprep.subr.mxu0 0.0
    %1913 = vmatpush1.msra.mxu0 %v251
    %1914 = vmatprep.subr.mxu0 0.0
    %1915 = vmatpush1.msra.mxu0 %v248
    %1916 = vmatprep.subr.mxu0 0.0
    %1917 = vmatpush1.msra.mxu0 %v245
    %1918 = vmatprep.subr.mxu0 0.0
    %1919 = vmatpush1.msra.mxu0 %v242
    %1920 = vmatprep.subr.mxu0 0.0
    %1921 = vmatpush2.msra.mxu0 0.0
    %1922 = vmatprep.subr.mxu0 0.0
    %1923 = vmatpush2.msra.mxu0 0.0
    %1924 = vmatprep.subr.mxu0 0.0
    %1925 = vmatpush2.msra.mxu0 0.0
    %1926 = vmatprep.subr.mxu0 0.0
    %1927 = vmatpush2.msra.mxu0 0.0
    %1928 = vmatprep.subr.mxu0 0.0
    %1929 = vmatpush2.msra.mxu0 0.0
    %1930 = vmatprep.subr.mxu0 0.0
    %1931 = vmatpush2.msra.mxu0 0.0
    %1932 = vmatprep.subr.mxu0 0.0
    %1933 = vmatpush2.msra.mxu0 0.0
    %1934 = vmatprep.subr.mxu0 0.0
    %1935 = vmatpush2.msra.mxu0 0.0
    %1936 = vmatprep.subr.mxu0 0.0
    %1937 = vmatpush2.msra.mxu0 0.0
    %1938 = vmatprep.subr.mxu0 0.0
    %1939 = vmatpush2.msra.mxu0 0.0
    %1940 = vmatprep.subr.mxu0 0.0
    %1941 = vmatpush2.msra.mxu0 0.0
    %1942 = vmatprep.subr.mxu0 0.0
    %1943 = vmatpush2.msra.mxu0 0.0
    %1944 = vmatprep.subr.mxu0 0.0
    %1945 = vmatpush2.msra.mxu0 0.0
    %1946 = vmatprep.subr.mxu0 0.0
    %1947 = vmatpush2.msra.mxu0 0.0
    %1948 = vmatprep.subr.mxu0 0.0
    %1949 = vmatpush2.msra.mxu0 0.0
    %1950 = vmatprep.subr.mxu0 0.0
    %1951 = vmatpush2.msra.mxu0 0.0
    %1952 = vmatprep.mubr.f32.mxu0 0.0
    %1953 = vmatmul.mubr.f32.gmra.mxu0 %v1585
    %v1954 = vpop.f32.mrf.mxu0
    %v1955 = vadd.f32 0.0, %v1954
    %v1956 = vpop.f32.mrf.mxu0
    %1957 = vmatprep.mubr.f32.mxu0 0.0
    %1958 = vmatmul.mubr.f32.gmra.mxu0 %v1586
    %v1959 = vpop.f32.mrf.mxu0
    %v1960 = vadd.f32 0.0, %v1959
    %v1961 = vpop.f32.mrf.mxu0
    %1962 = vmatprep.mubr.f32.mxu0 0.0
    %1963 = vmatmul.mubr.f32.gmra.mxu0 %v1587
    %v1964 = vpop.f32.mrf.mxu0
    %v1965 = vadd.f32 0.0, %v1964
    %v1966 = vpop.f32.mrf.mxu0
    %1967 = vmatprep.mubr.f32.mxu0 0.0
    %1968 = vmatmul.mubr.f32.gmra.mxu0 %v1588
    %v1969 = vpop.f32.mrf.mxu0
    %v1970 = vadd.f32 0.0, %v1969
    %v1971 = vpop.f32.mrf.mxu0
    %1972 = vmatprep.mubr.f32.mxu0 0.0
    %1973 = vmatmul.mubr.f32.gmra.mxu0 %v1589
    %v1974 = vpop.f32.mrf.mxu0
    %v1975 = vadd.f32 0.0, %v1974
    %v1976 = vpop.f32.mrf.mxu0
    %1977 = vmatprep.mubr.f32.mxu0 0.0
    %1978 = vmatmul.mubr.f32.gmra.mxu0 %v1590
    %v1979 = vpop.f32.mrf.mxu0
    %v1980 = vadd.f32 0.0, %v1979
    %v1981 = vpop.f32.mrf.mxu0
    %1982 = vdwg.mxu0
    %v1983 = vadd.f32 %v1658, %v1854
    %v1984 = vadd.f32 %v1664, %v1860
    %v1985 = vadd.f32 %v1670, %v1866
    %v1986 = vadd.f32 %v1676, %v1872
    %v1987 = vadd.f32 %v1682, %v1878
    %v1988 = vadd.f32 %v1688, %v1884
    %v1989 = vadd.f32 %v1983, %v462
    %v1990 = vadd.f32 %v1984, %v468
    %v1991 = vadd.f32 %v1985, %v474
    %v1992 = vadd.f32 %v1986, %v480
    %v1993 = vadd.f32 %v1987, %v486
    %v1994 = vadd.f32 %v1988, %v492
    %v1995 = vlaneseq
    %v1996 = vshrl.u32 %v1995, 7
    %v1997 = vsub.s32 4, %v1996
    %v1998 = vrot.slane %v111, %v1997
    %v1999 = vadd.f32 %v1989, %v1998
    %v2000 = vadd.f32 %v1990, %v1998
    %v2001 = vadd.f32 %v1991, %v1998
    %v2002 = vadd.f32 %v1992, %v1998
    %v2003 = vadd.f32 %v1993, %v1998
    %v2004 = vadd.f32 %v1994, %v1998
    %v2005 = vadd.f32 %v1660, %v1856
    %v2006 = vadd.f32 %v1666, %v1862
    %v2007 = vadd.f32 %v1672, %v1868
    %v2008 = vadd.f32 %v1678, %v1874
    %v2009 = vadd.f32 %v1684, %v1880
    %v2010 = vadd.f32 %v1690, %v1886
    %v2011 = vadd.f32 %v2005, %v464
    %v2012 = vadd.f32 %v2006, %v470
    %v2013 = vadd.f32 %v2007, %v476
    %v2014 = vadd.f32 %v2008, %v482
    %v2015 = vadd.f32 %v2009, %v488
    %v2016 = vadd.f32 %v2010, %v494
    %v2017 = vlaneseq
    %v2018 = vshrl.u32 %v2017, 7
    %v2019 = vsub.s32 5, %v2018
    %v2020 = vrot.slane %v111, %v2019
    %v2021 = vadd.f32 %v2011, %v2020
    %v2022 = vadd.f32 %v2012, %v2020
    %v2023 = vadd.f32 %v2013, %v2020
    %v2024 = vadd.f32 %v2014, %v2020
    %v2025 = vadd.f32 %v2015, %v2020
    %v2026 = vadd.f32 %v2016, %v2020
    %v2027 = vadd.f32 %v1759, %v1955
    %v2028 = vadd.f32 %v1764, %v1960
    %v2029 = vadd.f32 %v1769, %v1965
    %v2030 = vadd.f32 %v1774, %v1970
    %v2031 = vadd.f32 %v1779, %v1975
    %v2032 = vadd.f32 %v1784, %v1980
    %v2033 = vlaneseq
    %v2034 = vshrl.u32 %v2033, 7
    %v2035 = vsub.s32 6, %v2034
    %v2036 = vrot.slane %v111, %v2035
    %v2037 = vadd.f32 %v2027, %v2036
    %v2038 = vadd.f32 %v2028, %v2036
    %v2039 = vadd.f32 %v2029, %v2036
    %v2040 = vadd.f32 %v2030, %v2036
    %v2041 = vadd.f32 %v2031, %v2036
    %v2042 = vadd.f32 %v2032, %v2036
    %v2043 = vlaneseq
    %v2044 = vshrl.u32 %v2043, 7
    %v2045 = vsub.s32 7, %v2044
    %v2046 = vrot.slane %v111, %v2045
    %v2047 = vadd.f32 %v563, %v2046
    %v2048 = vadd.f32 %v568, %v2046
    %v2049 = vadd.f32 %v573, %v2046
    %v2050 = vadd.f32 %v578, %v2046
    %v2051 = vadd.f32 %v583, %v2046
    %v2052 = vadd.f32 %v588, %v2046
    %v2053 = vxor.u32 %v1999, 2147483648
    %v2054 = vxor.u32 %v2000, 2147483648
    %v2055 = vxor.u32 %v2001, 2147483648
    %v2056 = vxor.u32 %v2002, 2147483648
    %v2057 = vxor.u32 %v2003, 2147483648
    %v2058 = vxor.u32 %v2004, 2147483648
    %v2059 = vmul.f32 %v2053, 1.442695
    %v2060 = vpow.pop %v2059
    %v2061 = vmul.f32 %v2054, 1.442695
    %v2062 = vpow.pop %v2061
    %v2063 = vmul.f32 %v2055, 1.442695
    %v2064 = vpow.pop %v2063
    %v2065 = vmul.f32 %v2056, 1.442695
    %v2066 = vpow.pop %v2065
    %v2067 = vmul.f32 %v2057, 1.442695
    %v2068 = vpow.pop %v2067
    %v2069 = vmul.f32 %v2058, 1.442695
    %v2070 = vpow.pop %v2069
    %v2071 = vadd.f32 %v2060, 1.0
    %v2072 = vadd.f32 %v2062, 1.0
    %v2073 = vadd.f32 %v2064, 1.0
    %v2074 = vadd.f32 %v2066, 1.0
    %v2075 = vadd.f32 %v2068, 1.0
    %v2076 = vadd.f32 %v2070, 1.0
    %v2077 = vrcp.pop %v2071
    %v2078 = vmul.f32 1.0, %v2077
    %v2079 = vrcp.pop %v2072
    %v2080 = vmul.f32 1.0, %v2079
    %v2081 = vrcp.pop %v2073
    %v2082 = vmul.f32 1.0, %v2081
    %v2083 = vrcp.pop %v2074
    %v2084 = vmul.f32 1.0, %v2083
    %v2085 = vrcp.pop %v2075
    %v2086 = vmul.f32 1.0, %v2085
    %v2087 = vrcp.pop %v2076
    %v2088 = vmul.f32 1.0, %v2087
    %v2089 = vxor.u32 %v2021, 2147483648
    %v2090 = vxor.u32 %v2022, 2147483648
    %v2091 = vxor.u32 %v2023, 2147483648
    %v2092 = vxor.u32 %v2024, 2147483648
    %v2093 = vxor.u32 %v2025, 2147483648
    %v2094 = vxor.u32 %v2026, 2147483648
    %v2095 = vmul.f32 %v2089, 1.442695
    %v2096 = vpow.pop %v2095
    %v2097 = vmul.f32 %v2090, 1.442695
    %v2098 = vpow.pop %v2097
    %v2099 = vmul.f32 %v2091, 1.442695
    %v2100 = vpow.pop %v2099
    %v2101 = vmul.f32 %v2092, 1.442695
    %v2102 = vpow.pop %v2101
    %v2103 = vmul.f32 %v2093, 1.442695
    %v2104 = vpow.pop %v2103
    %v2105 = vmul.f32 %v2094, 1.442695
    %v2106 = vpow.pop %v2105
    %v2107 = vadd.f32 %v2096, 1.0
    %v2108 = vadd.f32 %v2098, 1.0
    %v2109 = vadd.f32 %v2100, 1.0
    %v2110 = vadd.f32 %v2102, 1.0
    %v2111 = vadd.f32 %v2104, 1.0
    %v2112 = vadd.f32 %v2106, 1.0
    %v2113 = vrcp.pop %v2107
    %v2114 = vmul.f32 1.0, %v2113
    %v2115 = vrcp.pop %v2108
    %v2116 = vmul.f32 1.0, %v2115
    %v2117 = vrcp.pop %v2109
    %v2118 = vmul.f32 1.0, %v2117
    %v2119 = vrcp.pop %v2110
    %v2120 = vmul.f32 1.0, %v2119
    %v2121 = vrcp.pop %v2111
    %v2122 = vmul.f32 1.0, %v2121
    %v2123 = vrcp.pop %v2112
    %v2124 = vmul.f32 1.0, %v2123
    %v2125 = vmul.f32 %v2078, %v2047
    %v2126 = vmul.f32 %v2080, %v2048
    %v2127 = vmul.f32 %v2082, %v2049
    %v2128 = vmul.f32 %v2084, %v2050
    %v2129 = vmul.f32 %v2086, %v2051
    %v2130 = vmul.f32 %v2088, %v2052
    %v2131 = vadd.f32 %v2037, %v2125
    %v2132 = vadd.f32 %v2038, %v2126
    %v2133 = vadd.f32 %v2039, %v2127
    %v2134 = vadd.f32 %v2040, %v2128
    %v2135 = vadd.f32 %v2041, %v2129
    %v2136 = vadd.f32 %v2042, %v2130
    %v2137 = vtanh.pop %v2131
    %v2138 = vtanh.pop %v2132
    %v2139 = vtanh.pop %v2133
    %v2140 = vtanh.pop %v2134
    %v2141 = vtanh.pop %v2135
    %v2142 = vtanh.pop %v2136
    %v2143 = vsub.f32 %v288, %v2137
    %v2144 = vsub.f32 %v289, %v2138
    %v2145 = vsub.f32 %v290, %v2139
    %v2146 = vsub.f32 %v291, %v2140
    %v2147 = vsub.f32 %v292, %v2141
    %v2148 = vsub.f32 %v293, %v2142
    %v2149 = vmul.f32 %v2114, %v2143
    %v2150 = vmul.f32 %v2116, %v2144
    %v2151 = vmul.f32 %v2118, %v2145
    %v2152 = vmul.f32 %v2120, %v2146
    %v2153 = vmul.f32 %v2122, %v2147
    %v2154 = vmul.f32 %v2124, %v2148
    %v2155 = vadd.f32 %v2137, %v2149
    %v2156 = vadd.f32 %v2138, %v2150
    %v2157 = vadd.f32 %v2139, %v2151
    %v2158 = vadd.f32 %v2140, %v2152
    %v2159 = vadd.f32 %v2141, %v2153
    %v2160 = vadd.f32 %v2142, %v2154
    %2161 = vst [vmem:[#allocation11] sm:$0xff] %v2155
    %2162 = vst [vmem:[#allocation11 + $0x8] sm:$0xff] %v2156
    %2163 = vst [vmem:[#allocation11 + $0x10] sm:$0xff] %v2157
    %2164 = vst [vmem:[#allocation11 + $0x18] sm:$0xff] %v2158
    %2165 = vst [vmem:[#allocation11 + $0x20] sm:$0xff] %v2159
    %2166 = vst [vmem:[#allocation11 + $0x28] sm:$0xff] %v2160
    // Predicated region
    $region42: #{tpu_custom_call.1} parent=1 // pred_check
      _
    $region43: #{tpu_custom_call.1} parent=1 // pred_check_branch
      %2168 = sbr.rel (0) target = $region45
    $region44: #{tpu_custom_call.1} parent=1 // pred_region
      %s2170 = ssub.s32 768, 768
      %2171 = vsyncadd [#allocation4], %s2170
      %s2172 = sshll.u32 [#allocation11], 4
      %s2173 = int_to_ptr.vmem [resolvable:$true] %s2172
      %2178 = dma.vmem_to_hbm [thread:$0]  %s2173, 768, %s5, [#allocation4], 128, 128, 8
    $region45: #{tpu_custom_call.1} parent=1 // pred_fallthru
      _
    // Predicated region
    $region46: #{tpu_custom_call.1} parent=1 // pred_check
      _
    $region47: #{tpu_custom_call.1} parent=1 // pred_check_branch
      %2180 = sbr.rel (0) target = $region49
    $region48: #{tpu_custom_call.1} parent=1 // pred_region
      %2181 = dma.done [#allocation4], 768
    $region49: #{tpu_custom_call.1} parent=1 // pred_fallthru
      _
    %2182 = vsyncpa [#allocation3], 1
    %2183 = vsyncpa [#allocation6], 1
    %2184 = vsyncpa [#allocation9], 1
    %2185 = vsyncpa [#allocation4], 1

</llo_original>
